<compile_context>
chip_gen: v6e
topology: v6e:2x2x1
jax: 0.10.0
libtpu: 0.0.40
codegen_flags: <defaults>
</compile_context>

<pallas_src>
import functools

import jax
import jax.numpy as jnp
from jax.experimental import pallas as pl
from jax.experimental.pallas import tpu as pltpu


def _round_down(x, m):
    return (x // m) * m


def _wkm_gram_kernel(emb_ref, asg_ref, w_ref, acc_ref, *,
                     n_valid, block_rows, mask_rows):
    # emb_ref: (Tn, D), asg_ref: (Tn, C), w_ref: (Tn, 1)
    # acc_ref: (D+C, D+C) per-batch accumulator;  final gram = acc + acc^T.

    @pl.when(pl.program_id(1) == 0)
    def _init():
        acc_ref[...] = jnp.zeros_like(acc_ref)

    # Cast in-kernel (HBM traffic stays at the native input dtype).
    emb = emb_ref[...].astype(jnp.float32)   # (Tn, D)
    asg = asg_ref[...].astype(jnp.float32)   # (Tn, C)
    w = w_ref[...].astype(jnp.float32)       # (Tn, 1)

    # torch.nn.functional.normalize: x / max(||x||_2, 1e-12)
    #   == x * rsqrt(max(||x||^2, 1e-24));  rsqrt runs on the EUP.
    eps2 = 1e-24
    se = w * jax.lax.rsqrt(
        jnp.maximum(jnp.sum(emb * emb, axis=-1, keepdims=True), eps2))
    sa = w * jax.lax.rsqrt(
        jnp.maximum(jnp.sum(asg * asg, axis=-1, keepdims=True), eps2))

    # Fused Z = [V | Y]: one Gram matmul covers vTv, vTy and yTy at once.
    z = jnp.concatenate([emb * se, asg * sa], axis=-1)   # (Tn, D+C) f32

    if mask_rows:
        # Ragged edge tile: zero out rows past N (their block contents are
        # undefined), so they contribute nothing to the Gram accumulation.
        row = (pl.program_id(1) * block_rows
               + jax.lax.broadcasted_iota(jnp.int32, (block_rows, 1), 0))
        z = jnp.where(row < n_valid, z, 0.0)

    # Manual bf16 hi/lo split: f32-accurate Gram with two single-pass bf16
    # MXU matmuls (vs. 6 passes for precision=HIGHEST f32).
    zh = z.astype(jnp.bfloat16)
    zl = (z - zh.astype(jnp.float32)).astype(jnp.bfloat16)

    dims = (((0,), (0,)), ((), ()))          # contract over rows: z^T @ z
    hh = jax.lax.dot_general(zh, zh, dims, preferred_element_type=jnp.float32)
    cr = jax.lax.dot_general(zh, zl, dims, preferred_element_type=jnp.float32)

    # Z^T Z ≈ hh + cr + cr^T.  Fold symmetry: acc = Σ (hh/2 + cr),
    # then gram = acc + acc^T (hh is symmetric, so hh/2 + (hh/2)^T = hh).
    acc_ref[...] += 0.5 * hh + cr


def whitened_kmeans_loss(embedding, assignments, weights, *, block_n=4096):
    """Pallas TPU implementation of WhitenedKMeansLoss.forward."""
    B = embedding.shape[0]
    D = embedding.shape[-1]
    C = assignments.shape[-1]
    DC = D + C

    emb = embedding.reshape(B, -1, D)
    asg = assignments.reshape(B, -1, C)
    w = weights.reshape(B, -1, 1)
    N = emb.shape[1]
    assert asg.shape[1] == N and w.shape[1] == N, (
        "embedding/assignments/weights must flatten to the same length")

    # Row tile: multiple of 8 sublanes (or the full N when N < 8).  Ragged
    # last tiles are masked in-kernel -- no wrapper-side padding copy.
    if N >= 8:
        tn = min(block_n, _round_down(N, 8))
    else:
        tn = N
    n_tiles = pl.cdiv(N, tn)
    mask_rows = (N % tn) != 0

    kernel = functools.partial(_wkm_gram_kernel, n_valid=N, block_rows=tn,
                               mask_rows=mask_rows)

    acc = pl.pallas_call(
        kernel,
        out_shape=jax.ShapeDtypeStruct((B, DC, DC), jnp.float32),
        grid_spec=pl.GridSpec(
            grid=(B, n_tiles),
            in_specs=[
                pl.BlockSpec((None, tn, D), lambda b, t: (b, t, 0)),
                pl.BlockSpec((None, tn, C), lambda b, t: (b, t, 0)),
                pl.BlockSpec((None, tn, 1), lambda b, t: (b, t, 0)),
            ],
            out_specs=pl.BlockSpec((None, DC, DC), lambda b, t: (b, 0, 0)),
        ),
        compiler_params=pltpu.CompilerParams(
            dimension_semantics=("parallel", "arbitrary")),
    )(emb, asg, w)

    # gram = [[vTv, vTy], [vTy^T, yTy]]
    gram = acc + jnp.swapaxes(acc, 1, 2)
    vtv = gram[:, :D, :D]
    vty = gram[:, :D, D:]
    yty = gram[:, D:, D:]

    # TODO(synk): torch.inverse has no Pallas primitive (no LU/solve); the tiny
    # per-batch (D,D)/(C,C) inverses and the trace stay in XLA.
    ivtv = jnp.linalg.inv(vtv + jnp.eye(D, dtype=jnp.float32))
    iyty = jnp.linalg.inv(yty + jnp.eye(C, dtype=jnp.float32))
    trace = jnp.sum((ivtv @ vty) * (vty @ iyty))
    total = float((D + C) * B)
    return (total - 2.0 * trace) / B


def _reference(embedding, assignments, weights):
    """Pure-JAX transcription of the PyTorch forward, for verification."""
    B = embedding.shape[0]
    D = embedding.shape[-1]
    C = assignments.shape[-1]
    hi = jax.lax.Precision.HIGHEST
    w = weights.reshape(B, -1, 1).astype(jnp.float32)
    e = embedding.reshape(B, -1, D).astype(jnp.float32)
    a = assignments.reshape(B, -1, C).astype(jnp.float32)
    e = e / jnp.maximum(jnp.sqrt(jnp.sum(e * e, -1, keepdims=True)), 1e-12)
    a = a / jnp.maximum(jnp.sqrt(jnp.sum(a * a, -1, keepdims=True)), 1e-12)
    e = w * e
    a = w * a
    vtv = jnp.einsum('bnd,bne->bde', e, e, precision=hi)
    vty = jnp.einsum('bnd,bnc->bdc', e, a, precision=hi)
    yty = jnp.einsum('bnc,bnk->bck', a, a, precision=hi)
    ivtv = jnp.linalg.inv(vtv + jnp.eye(D, dtype=jnp.float32))
    iyty = jnp.linalg.inv(yty + jnp.eye(C, dtype=jnp.float32))
    trace = jnp.sum((ivtv @ vty) * (vty @ iyty))
    return (float((D + C) * B) - 2.0 * trace) / B


if __name__ == "__main__":
    key = jax.random.PRNGKey(0)
    k1, k2, k3 = jax.random.split(key, 3)

    # batch=2, seq=8, freq=16 (N = 128 TF bins), embedding_size=20, num_sources=4
    B, S, F, D, C = 2, 8, 16, 20, 4
    embedding = jax.random.normal(k1, (B, S, F, D), dtype=jnp.float32)
    assignments = jax.random.uniform(k2, (B, S, F, C), dtype=jnp.float32)
    weights = jax.random.uniform(k3, (B, S, F), dtype=jnp.float32)

    loss_fn = jax.jit(whitened_kmeans_loss)
    loss = jax.block_until_ready(loss_fn(embedding, assignments, weights))
    ref = jax.block_until_ready(_reference(embedding, assignments, weights))
    assert jnp.allclose(loss, ref, rtol=1e-3, atol=1e-3), (loss, ref)

    print("KERNEL_OK")
</pallas_src>

<mosaic_0001>
module attributes {stable_mosaic.version = 11 : i64} {
  func.func @_wkm_gram_kernel(%arg0: i32, %arg1: i32, %arg2: memref<1x128x20xf32, #tpu.memory_space<vmem>>, %arg3: memref<1x128x4xf32, #tpu.memory_space<vmem>>, %arg4: memref<1x128x1xf32, #tpu.memory_space<vmem>>, %arg5: memref<1x24x24xf32, #tpu.memory_space<vmem>>) attributes {dimension_semantics = [#tpu.dimension_semantics<parallel>, #tpu.dimension_semantics<arbitrary>], iteration_bounds = array<i64: 2, 1>, scalar_prefetch = 0 : i64, scratch_operands = 0 : i64, tpu.core_type = #tpu.core_type<tc>, window_params = [{transform_indices = @transform_0, window_bounds = array<i64: 1, 128, 20>}, {transform_indices = @transform_1, window_bounds = array<i64: 1, 128, 4>}, {transform_indices = @transform_2, window_bounds = array<i64: 1, 128, 1>}, {transform_indices = @transform_3, window_bounds = array<i64: 1, 24, 24>}]} {
    %c0_i32 = arith.constant 0 : i32
    %0 = arith.cmpi eq, %arg1, %c0_i32 : i32
    %1 = arith.extui %0 : i1 to i32
    %c0_i32_0 = arith.constant 0 : i32
    %2 = arith.cmpi ne, %1, %c0_i32_0 : i32
    scf.if %2 {
      %cst_21 = arith.constant 0.000000e+00 : f32
      %43 = vector.broadcast %cst_21 : f32 to vector<24x24xf32>
      %c0_22 = arith.constant 0 : index
      %c0_23 = arith.constant 0 : index
      %c0_24 = arith.constant 0 : index
      %44 = vector.load %arg5[%c0_22, %c0_23, %c0_24] : memref<1x24x24xf32, #tpu.memory_space<vmem>>, vector<1x24x24xf32>
      %45 = vector.shape_cast %44 : vector<1x24x24xf32> to vector<24x24xf32>
      %46 = vector.shape_cast %43 : vector<24x24xf32> to vector<1x24x24xf32>
      tpu.vector_store %arg5[%c0_22, %c0_23, %c0_24], %46 {strides = array<i32>} : memref<1x24x24xf32, #tpu.memory_space<vmem>>, vector<1x24x24xf32>,
    } else {
    }
    %c0 = arith.constant 0 : index
    %c0_1 = arith.constant 0 : index
    %c0_2 = arith.constant 0 : index
    %3 = vector.load %arg2[%c0, %c0_1, %c0_2] : memref<1x128x20xf32, #tpu.memory_space<vmem>>, vector<1x128x20xf32>
    %4 = vector.shape_cast %3 : vector<1x128x20xf32> to vector<128x20xf32>
    %c0_3 = arith.constant 0 : index
    %c0_4 = arith.constant 0 : index
    %c0_5 = arith.constant 0 : index
    %5 = vector.load %arg3[%c0_3, %c0_4, %c0_5] : memref<1x128x4xf32, #tpu.memory_space<vmem>>, vector<1x128x4xf32>
    %6 = vector.shape_cast %5 : vector<1x128x4xf32> to vector<128x4xf32>
    %c0_6 = arith.constant 0 : index
    %c0_7 = arith.constant 0 : index
    %c0_8 = arith.constant 0 : index
    %7 = vector.load %arg4[%c0_6, %c0_7, %c0_8] : memref<1x128x1xf32, #tpu.memory_space<vmem>>, vector<1x128x1xf32>
    %8 = vector.shape_cast %7 : vector<1x128x1xf32> to vector<128x1xf32>
    %9 = arith.mulf %4, %4 : vector<128x20xf32>
    %cst = arith.constant dense<0.000000e+00> : vector<128xf32>
    %10 = vector.multi_reduction <add>, %9, %cst [1] : vector<128x20xf32> to vector<128xf32>
    %11 = vector.shape_cast %10 : vector<128xf32> to vector<128x1xf32>
    %cst_9 = arith.constant 1.000000e-24 : f32
    %12 = vector.broadcast %cst_9 : f32 to vector<128x1xf32>
    %13 = arith.maximumf %11, %12 : vector<128x1xf32>
    %14 = math.rsqrt %13 : vector<128x1xf32>
    %15 = arith.mulf %8, %14 : vector<128x1xf32>
    %16 = arith.mulf %6, %6 : vector<128x4xf32>
    %cst_10 = arith.constant dense<0.000000e+00> : vector<128xf32>
    %17 = vector.multi_reduction <add>, %16, %cst_10 [1] : vector<128x4xf32> to vector<128xf32>
    %18 = vector.shape_cast %17 : vector<128xf32> to vector<128x1xf32>
    %cst_11 = arith.constant 1.000000e-24 : f32
    %19 = vector.broadcast %cst_11 : f32 to vector<128x1xf32>
    %20 = arith.maximumf %18, %19 : vector<128x1xf32>
    %21 = math.rsqrt %20 : vector<128x1xf32>
    %22 = arith.mulf %8, %21 : vector<128x1xf32>
    %23 = vector.broadcast %15 : vector<128x1xf32> to vector<128x20xf32>
    %24 = arith.mulf %4, %23 : vector<128x20xf32>
    %25 = vector.broadcast %22 : vector<128x1xf32> to vector<128x4xf32>
    %26 = arith.mulf %6, %25 : vector<128x4xf32>
    %27 = tpu.concatenate %24, %26 in 1 : vector<128x20xf32>, vector<128x4xf32> -> vector<128x24xf32>
    %28 = arith.truncf %27 : vector<128x24xf32> to vector<128x24xbf16>
    %29 = arith.extf %28 : vector<128x24xbf16> to vector<128x24xf32>
    %30 = arith.subf %27, %29 : vector<128x24xf32>
    %31 = arith.truncf %30 : vector<128x24xf32> to vector<128x24xbf16>
    %cst_12 = arith.constant dense<0.000000e+00> : vector<24x24xf32>
    %32 = tpu.matmul %28, %28, %cst_12 {dimension_numbers = #tpu.dot_dimension_numbers<[0], [0], [1], [1], [0, 1, 1, 1], [], []>} : vector<128x24xbf16>, vector<128x24xbf16>, vector<24x24xf32> -> vector<24x24xf32>
    %cst_13 = arith.constant dense<0.000000e+00> : vector<24x24xf32>
    %33 = tpu.matmul %28, %31, %cst_13 {dimension_numbers = #tpu.dot_dimension_numbers<[0], [0], [1], [1], [0, 1, 1, 1], [], []>} : vector<128x24xbf16>, vector<128x24xbf16>, vector<24x24xf32> -> vector<24x24xf32>
    %c0_14 = arith.constant 0 : index
    %c0_15 = arith.constant 0 : index
    %c0_16 = arith.constant 0 : index
    %34 = vector.load %arg5[%c0_14, %c0_15, %c0_16] : memref<1x24x24xf32, #tpu.memory_space<vmem>>, vector<1x24x24xf32>
    %35 = vector.shape_cast %34 : vector<1x24x24xf32> to vector<24x24xf32>
    %cst_17 = arith.constant 5.000000e-01 : f32
    %36 = vector.broadcast %cst_17 : f32 to vector<24x24xf32>
    %37 = arith.mulf %36, %32 : vector<24x24xf32>
    %38 = arith.addf %37, %33 : vector<24x24xf32>
    %39 = arith.addf %35, %38 : vector<24x24xf32>
    %c0_18 = arith.constant 0 : index
    %c0_19 = arith.constant 0 : index
    %c0_20 = arith.constant 0 : index
    %40 = vector.load %arg5[%c0_18, %c0_19, %c0_20] : memref<1x24x24xf32, #tpu.memory_space<vmem>>, vector<1x24x24xf32>
    %41 = vector.shape_cast %40 : vector<1x24x24xf32> to vector<24x24xf32>
    %42 = vector.shape_cast %39 : vector<24x24xf32> to vector<1x24x24xf32>
    tpu.vector_store %arg5[%c0_18, %c0_19, %c0_20], %42 {strides = array<i32>} : memref<1x24x24xf32, #tpu.memory_space<vmem>>, vector<1x24x24xf32>,
    return
  }
  func.func @transform_0(%arg0: i32, %arg1: i32) -> (i32, i32, i32) {
    %c0_i32 = arith.constant 0 : i32
    %c0_i32_0 = arith.constant 0 : i32
    return %arg0, %arg1, %c0_i32 : i32, i32, i32
  }
  func.func @transform_1(%arg0: i32, %arg1: i32) -> (i32, i32, i32) {
    %c0_i32 = arith.constant 0 : i32
    %c0_i32_0 = arith.constant 0 : i32
    return %arg0, %arg1, %c0_i32 : i32, i32, i32
  }
  func.func @transform_2(%arg0: i32, %arg1: i32) -> (i32, i32, i32) {
    %c0_i32 = arith.constant 0 : i32
    %c0_i32_0 = arith.constant 0 : i32
    return %arg0, %arg1, %c0_i32 : i32, i32, i32
  }
  func.func @transform_3(%arg0: i32, %arg1: i32) -> (i32, i32, i32) {
    %c0_i32 = arith.constant 0 : i32
    %c0_i32_0 = arith.constant 0 : i32
    %c0_i32_1 = arith.constant 0 : i32
    return %arg0, %c0_i32, %c0_i32_0 : i32, i32, i32
  }
}

</mosaic_0001>

<llo_original>
// kernel: custom-call.22
$region0: #{custom-call.22}
  %s0 = inlined_call_operand.vmem [shape: f32[2,20,20], index: 0, kind: input, shape index: {}]
  %s1 = inlined_call_operand.vmem [shape: f32[2,20,20], index: 1, kind: output, shape index: {0}]
  %s2 = inlined_call_operand.hbm [shape: s32[2,20], index: 2, kind: output, shape index: {1}]
  %s3 = inlined_call_operand.vmem [shape: s32[2,20], index: 3, kind: output, shape index: {2}]
  %4 = xla_tuple %s1, %s2, %s3
  $region1: #{custom-call.22} parent=0
    #allocation0 [shape = 'u8[24576]{0}', space=vmem, size = 0x6000, scoped, tag = 'operand span for operand 0']
    #allocation1 [shape = 'u8[24576]{0}', space=vmem, size = 0x6000, scoped, tag = 'operand span for operand 1']
    #allocation2 [shape = 'u8[4096]{0}', space=vmem, size = 0x1000, scoped, tag = 'operand span for operand 2']
    #allocation3 [shape = 'u8[2048]{0}', space=vmem, size = 0x800, scoped, tag = 'packed  for operand 2']
    #allocation4 [shape = 's32[2]{0}', space=sflag, size = 0x8, scoped, tag = 'scoped memory for custom-call.22']
    #allocation5 [shape = 'u8[4096]{0}', space=vmem, size = 0x1000, scoped, tag = 'operand span for operand 3']
    #allocation6 [shape = 'u8[2048]{0}', space=vmem, size = 0x800, scoped, tag = 'packed  for operand 3']
    %5 = vsyncpa [#allocation4], 0
    %s6 = scalar_lea.sflag [#allocation4], 1
    %7 = vsyncpa %s6, 0
    loop: start=0, step=1, limit=4
    $region2: #{custom-call.22} parent=1 // loop_pre_header
      _
    $region3: #{custom-call.22} parent=1 // loop_header
      %s9 = sphi 0, %s13
      %p10 = scmp.ge.s32.totalorder %s9, 4
      %s21 = sphi 0, %s23
      %s24 = sphi 0, %s21
      %s25 = sphi 0, %s24
      %s41 = sphi 0, %s25
      %s49 = sphi 0, %s51
      %s52 = sphi 0, %s49
      %s53 = sphi 0, %s52
      %s69 = sphi 0, %s53
    $region4: #{custom-call.22} parent=1 // loop_header_branch
      %12 = sbr.rel (%p10) target = $region8
    $region5: #{custom-call.22} parent=1 // loop_body
      %s14 = ssub.s32 %s9, 1
      %s15 = ssub.s32 %s9, 2
      %s16 = sadd.s32 %s9, 1
      %s17 = sshrl.u32 %s9, 3
      %s18 = sshrl.u32 %s16, 3
      %s19 = ssub.s32 %s17, %s18
      %p20 = scmp.eq.s32.totalorder %s19, 0
      %s22 = sadd.s32 %s21, 1
      %s23 = scalar_select %p20, %s21, %s22
      %p26 = pneg %p20
      %p27 = scmp.eq.s32.totalorder %s9, 1
      %p28 = por %p26, %p27
      %p29 = scmp.ne.s32.totalorder %s21, %s24
      %p30 = scmp.eq.s32.totalorder %s9, 0
      %p31 = por %p29, %p30
      %p32 = scmp.ne.s32.totalorder %s21, %s24
      %p33 = scmp.eq.s32.totalorder %s14, 1
      %p34 = por %p32, %p33
      %p35 = scmp.ne.s32.totalorder %s24, %s25
      %p36 = scmp.eq.s32.totalorder %s14, 0
      %p37 = por %p35, %p36
      %p38 = scmp.ne.s32.totalorder %s24, %s25
      %p39 = scmp.eq.s32.totalorder %s15, 1
      %p40 = por %p38, %p39
      %p42 = scmp.ne.s32.totalorder %s25, %s41
      %p43 = scmp.eq.s32.totalorder %s15, 0
      %p44 = por %p42, %p43
      %s45 = sshrl.u32 %s9, 3
      %s46 = sshrl.u32 %s16, 3
      %s47 = ssub.s32 %s45, %s46
      %p48 = scmp.eq.s32.totalorder %s47, 0
      %s50 = sadd.s32 %s49, 1
      %s51 = scalar_select %p48, %s49, %s50
      %p54 = pneg %p48
      %p55 = scmp.eq.s32.totalorder %s9, 1
      %p56 = por %p54, %p55
      %p57 = scmp.ne.s32.totalorder %s49, %s52
      %p58 = scmp.eq.s32.totalorder %s9, 0
      %p59 = por %p57, %p58
      %p60 = scmp.ne.s32.totalorder %s49, %s52
      %p61 = scmp.eq.s32.totalorder %s14, 1
      %p62 = por %p60, %p61
      %p63 = scmp.ne.s32.totalorder %s52, %s53
      %p64 = scmp.eq.s32.totalorder %s14, 0
      %p65 = por %p63, %p64
      %p66 = scmp.ne.s32.totalorder %s52, %s53
      %p67 = scmp.eq.s32.totalorder %s15, 1
      %p68 = por %p66, %p67
      %p70 = scmp.ne.s32.totalorder %s53, %s69
      %p71 = scmp.eq.s32.totalorder %s15, 0
      %p72 = por %p70, %p71
      %p73 = scmp.le.s32.totalorder 1, %s9
      %p74 = scmp.lt.s32.totalorder %s9, 3
      %p75 = pnand %p73, %p74
      %p76 = pneg %p75
      // Predicated region
      $region9: #{custom-call.22} parent=5 // pred_check
        _
      $region10: #{custom-call.22} parent=5 // pred_check_branch
        %78 = sbr.rel (%p75) target = $region12
      $region11: #{custom-call.22} parent=5 // pred_region
        %s79 = ssub.s32 %s9, 1
      $region12: #{custom-call.22} parent=5 // pred_fallthru
        _
      %p80 = scmp.lt.s32.totalorder %s9, 2
      // Predicated region
      $region13: #{custom-call.22} parent=5 // pred_check
        %p81 = pneg %p80
      $region14: #{custom-call.22} parent=5 // pred_check_branch
        %83 = sbr.rel (%p81) target = $region16
      $region15: #{custom-call.22} parent=5 // pred_region
        %s84 = sand.u32 %s9, 1
        %s85 = sand.u32 %s9, 1
        %s86 = smul.addr %s85, 24
        %s87 = scalar_lea.vmem [#allocation0], %s86
        %s88 = smul.addr %s9, 24
        %s89 = scalar_lea.vmem %s0, %s88
        // Predicated region
        $region17: #{custom-call.22} parent=15 // pred_check
          _
        $region18: #{custom-call.22} parent=15 // pred_check_branch
          %91 = sbr.rel (0) target = $region20
        $region19: #{custom-call.22} parent=15 // pred_region
          // Predicated region
          $region21: #{custom-call.22} parent=19 // pred_check
            _
          $region22: #{custom-call.22} parent=19 // pred_check_branch
            %93 = sbr.rel (0) target = $region24
          $region23: #{custom-call.22} parent=19 // pred_region
            loop: start=0, step=1, limit=1
            $region25: #{custom-call.22} parent=23 // loop_pre_header
              _
            $region26: #{custom-call.22} parent=23 // loop_header
              %s95 = sphi 0, %s99
              %p96 = scmp.ge.s32.totalorder %s95, 1
              %s100 = sphi %s89, %s89
              %s101 = sphi %s87, %s87
            $region27: #{custom-call.22} parent=23 // loop_header_branch
              %98 = sbr.rel (%p96) target = $region31
            $region28: #{custom-call.22} parent=23 // loop_body
              %v102 = vld [vmem:[%s100] sm:$0xff]
              %103 = vst [vmem:[%s101] sm:$0xff] %v102
              %v104 = vld [vmem:[%s100 + $0x8] sm:$0xff]
              %105 = vst [vmem:[%s101 + $0x8] sm:$0xff] %v104
              %v106 = vld [vmem:[%s100 + $0x10] sm:$0xff]
              %107 = vst [vmem:[%s101 + $0x10] sm:$0xff] %v106
            $region29: #{custom-call.22} parent=23 // loop_footer
              %s99 = sadd.s32 1, %s95
            $region30: #{custom-call.22} parent=23 // loop_footer_branch
              %94 = sbr.rel target = $region26
            $region31: #{custom-call.22} parent=23 // loop_exit
              _
          $region24: #{custom-call.22} parent=19 // pred_fallthru
            _
          // Predicated region
          $region32: #{custom-call.22} parent=19 // pred_check
            _
          $region33: #{custom-call.22} parent=19 // pred_check_branch
            %109 = sbr.rel target = $region35
          $region34: #{custom-call.22} parent=19 // pred_region
            _
          $region35: #{custom-call.22} parent=19 // pred_fallthru
            _
        $region20: #{custom-call.22} parent=15 // pred_fallthru
          _
        %110 = vnop
      $region16: #{custom-call.22} parent=5 // pred_fallthru
        _
      %p111 = scmp.le.s32.totalorder 1, %s9
      %p112 = scmp.lt.s32.totalorder %s9, 3
      %p113 = pnand %p111, %p112
      %p114 = pneg %p113
      // Predicated region
      $region36: #{custom-call.22} parent=5 // pred_check
        _
      $region37: #{custom-call.22} parent=5 // pred_check_branch
        %116 = sbr.rel (%p113) target = $region39
      $region38: #{custom-call.22} parent=5 // pred_region
        #allocation7 [shape = 's32[20,128]{1,0}', space=vmem, size = 0x3000, scoped, tag = 'scratch for permutations']
        %s117 = ssub.s32 %s9, 1
        %s118 = sand.u32 %s14, 1
        %s119 = sand.u32 %s14, 1
        %s120 = smul.addr %s119, 24
        %s121 = scalar_lea.vmem [#allocation0], %s120
        %s122 = sand.u32 %s14, 1
        %s123 = sand.u32 %s14, 1
        %s124 = smul.addr %s123, 24
        %s125 = scalar_lea.vmem [#allocation0], %s124
        %s126 = sand.u32 %s14, 1
        %s127 = sand.u32 %s14, 1
        %s128 = smul.addr %s127, 24
        %s129 = scalar_lea.vmem [#allocation1], %s128
        %p130 = pneg %p37
        %p131 = pneg %p34
        %s132 = sand.u32 %s24, 1
        %s133 = scalar_lea.sflag [#allocation4], %s132
        %s134 = sand.u32 %s24, 1
        %s135 = smul.addr %s134, 2
        %s136 = scalar_lea.vmem [#allocation3], %s135
        %p137 = pneg %p65
        %p138 = pneg %p62
        %s139 = sand.u32 %s52, 1
        %s140 = sand.u32 %s52, 1
        %s141 = smul.addr %s140, 2
        %s142 = scalar_lea.vmem [#allocation6], %s141
        %s143 = sshrl.u32 %s14, 3
        %s144 = sshrl.u32 %s14, 3
        %v145 = vld [vmem:[%s121] sm:$0xff]
        %146 = vst [vmem:[%s129] sm:$0xff] %v145
        %s147 = scalar_lea.vmem %s129, 8 [#allocation1]
        %s148 = scalar_lea.vmem %s121, 8 [#allocation0]
        %v149 = vld [vmem:[%s148] sm:$0xff]
        %150 = vst [vmem:[%s147] sm:$0xff] %v149
        %s151 = scalar_lea.vmem %s129, 16 [#allocation1]
        %s152 = scalar_lea.vmem %s121, 16 [#allocation0]
        %v153 = vld [vmem:[%s152] sm:$0xff]
        %154 = vst [vmem:[%s151] sm:$0xff] %v153
        %s155 = sand.u32 %s14, 7
        %s156 = scalar_lea.vmem [#allocation2], %s155
        %s157 = sand.u32 %s14, 7
        %s158 = scalar_lea.vmem [#allocation5], %s157
        %159 = vst [vmem:[%s156] sm:$0x1] 0
        %v160 = vlaneseq
        %v161 = vshrl.u32 %v160, 7
        %v162 = vmov %v161
        loop: start=0, step=1, limit=3
        $region40: #{custom-call.22} parent=38 // loop_pre_header
          _
        $region41: #{custom-call.22} parent=38 // loop_header
          %s164 = sphi 0, %s168
          %p165 = scmp.ge.s32.totalorder %s164, 3
        $region42: #{custom-call.22} parent=38 // loop_header_branch
          %167 = sbr.rel (%p165) target = $region46
        $region43: #{custom-call.22} parent=38 // loop_body
          %s169 = smul.addr %s164, 8
          %s170 = scalar_lea.vmem [#allocation7], %s169
          %s171 = smul.u32 %s164, 8
          %v172 = vstv %s171
          %v173 = vadd.s32 %v162, %v172
          %174 = vst [vmem:[%s170] sm:$0xff] %v173
        $region44: #{custom-call.22} parent=38 // loop_footer
          %s168 = sadd.s32 1, %s164
        $region45: #{custom-call.22} parent=38 // loop_footer_branch
          %163 = sbr.rel target = $region41
        $region46: #{custom-call.22} parent=38 // loop_exit
          _
        loop: start=0, step=1, limit=20
        $region47: #{custom-call.22} parent=38 // loop_pre_header
          _
        $region48: #{custom-call.22} parent=38 // loop_header
          %s176 = sphi 0, %s180
          %p177 = scmp.ge.s32.totalorder %s176, 20
        $region49: #{custom-call.22} parent=38 // loop_header_branch
          %179 = sbr.rel (%p177) target = $region53
        $region50: #{custom-call.22} parent=38 // loop_body
          %v181 = vstv %s176
          %v182 = vlaneseq
          %v183 = vshrl.u32 %v182, 7
          %v184 = vmov %v183
          %v185 = vld [vmem:[%s129] sm:$0xff]
          %v186 = vand.u32 2147483647, %v185
          %v188 = vstv %s176
          %vm189 = vcmp.ge.s32.totalorder %v184, %v188
          %vm190 = vcmp.lt.s32.totalorder %v184, 20
          %vm191 = vmand %vm189, %vm190
          %vm192 = vcmp.lt.f32.partialorder -inf, %v186
          %vm193 = vmand %vm191, %vm192
          %v194 = vsel %vm193, %v184, %v181
          %v195 = vsel %vm193, %v186, -inf
          %s196 = scalar_lea.vmem %s129, 8 [#allocation1]
          %v197 = vld [vmem:[%s196] sm:$0xff]
          %v198 = vand.u32 2147483647, %v197
          %v199 = vadd.s32 %v184, 8
          %v200 = vstv %s176
          %vm201 = vcmp.ge.s32.totalorder %v199, %v200
          %vm202 = vcmp.lt.s32.totalorder %v199, 20
          %vm203 = vmand %vm201, %vm202
          %vm204 = vcmp.lt.f32.partialorder %v195, %v198
          %vm205 = vmand %vm203, %vm204
          %v206 = vsel %vm205, %v199, %v194
          %v207 = vsel %vm205, %v198, %v195
          %s208 = scalar_lea.vmem %s129, 16 [#allocation1]
          %v209 = vld [vmem:[%s208] sm:$0xff]
          %v210 = vand.u32 2147483647, %v209
          %v211 = vadd.s32 %v184, 16
          %v212 = vstv %s176
          %vm213 = vcmp.ge.s32.totalorder %v211, %v212
          %vm214 = vcmp.lt.s32.totalorder %v211, 20
          %vm215 = vmand %vm213, %vm214
          %vm216 = vcmp.lt.f32.partialorder %v207, %v210
          %vm217 = vmand %vm215, %vm216
          %v218 = vsel %vm217, %v211, %v206
          %v219 = vsel %vm217, %v210, %v207
          %v220 = vrot.slane %v219, 1
          %v221 = vrot.slane %v218, 1
          %vm222 = vcmp.ge.f32.partialorder %v220, %v219
          %v223 = vsel %vm222, %v220, %v219
          %v224 = vsel %vm222, %v221, %v218
          %v225 = vrot.slane %v220, 1
          %v226 = vrot.slane %v221, 1
          %vm227 = vcmp.ge.f32.partialorder %v225, %v223
          %v228 = vsel %vm227, %v225, %v223
          %v229 = vsel %vm227, %v226, %v224
          %v230 = vrot.slane %v225, 1
          %v231 = vrot.slane %v226, 1
          %vm232 = vcmp.ge.f32.partialorder %v230, %v228
          %v233 = vsel %vm232, %v230, %v228
          %v234 = vsel %vm232, %v231, %v229
          %v235 = vrot.slane %v230, 1
          %v236 = vrot.slane %v231, 1
          %vm237 = vcmp.ge.f32.partialorder %v235, %v233
          %v238 = vsel %vm237, %v235, %v233
          %v239 = vsel %vm237, %v236, %v234
          %v240 = vrot.slane %v235, 1
          %v241 = vrot.slane %v236, 1
          %vm242 = vcmp.ge.f32.partialorder %v240, %v238
          %v243 = vsel %vm242, %v240, %v238
          %v244 = vsel %vm242, %v241, %v239
          %v245 = vrot.slane %v240, 1
          %v246 = vrot.slane %v241, 1
          %vm247 = vcmp.ge.f32.partialorder %v245, %v243
          %v248 = vsel %vm247, %v245, %v243
          %v249 = vsel %vm247, %v246, %v244
          %v250 = vrot.slane %v245, 1
          %v251 = vrot.slane %v246, 1
          %vm252 = vcmp.ge.f32.partialorder %v250, %v248
          %v253 = vsel %vm252, %v250, %v248
          %v254 = vsel %vm252, %v251, %v249
          %s255 = ssub.s32 128, %s176
          %256 = vrot.lane.b32.xlu0 %v254, %s255
          %v257 = vpop.permute.xlu0 %256
          %s258 = vtos %v257
          %v259 = vstv %s176
          %v260 = vlaneseq
          %v261 = vand.u32 %v260, 127
          %vm262 = vcmp.eq.s32.totalorder %v261, %v259
          %v263 = vstv %s258
          %v264 = vld [vmem:[%s156] ss:$0 sm:$0xff]
          %v265 = vsel %vm262, %v263, %v264
          %266 = vst [vmem:[%s156] sm:$0x1] %v265
          %s267 = scalar_lea.vmem %s129, %s176 [#allocation1]
          %s268 = scalar_lea.vmem %s129, %s258 [#allocation1]
          %v269 = vld [vmem:[%s267] ss:$0 sm:$0xff]
          %v270 = vld [vmem:[%s268] ss:$0 sm:$0xff]
          %271 = vst [vmem:[%s268] sm:$0x1] %v269
          %272 = vst [vmem:[%s267] sm:$0x1] %v270
          %s273 = scalar_lea.vmem [#allocation7], %s176
          %s274 = scalar_lea.vmem [#allocation7], %s258
          %v275 = vld [vmem:[%s273] ss:$0 sm:$0xff]
          %v276 = vld [vmem:[%s274] ss:$0 sm:$0xff]
          %277 = vst [vmem:[%s274] sm:$0x1] %v275
          %278 = vst [vmem:[%s273] sm:$0x1] %v276
          %vm279 = vcmp.ne.f32.partialorder %v270, 0.0
          %vm280 = vmand %vm262, %vm279
          %v281 = vsel %vm280, %v270, 1.0
          %v282 = vlaneseq
          %v283 = vand.u32 %v282, 127
          %v284 = vstv %s176
          %vm285 = vcmp.gt.s32.totalorder %v283, %v284
          %v286 = vsel %vm285, %v270, 0.0
          %v287 = vlaneseq
          %v288 = vshrl.u32 %v287, 7
          %v289 = vmov %v288
          %v290 = vld [vmem:[%s129] sm:$0xff]
          %v292 = vstv %s176
          %vm293 = vcmp.gt.s32.totalorder %v289, %v292
          %v294 = vsel %vm293, %v281, 1.0
          %v295 = vrcp.pop %v294
          %v296 = vmul.f32 %v290, %v295
          %vm297 = vmand %vm293, %vm262
          %v298 = vsel %vm297, %v296, 0.0
          %299 = vadd.xlane.f32.xlu0 %v298
          %v300 = vpop.xlane.xlu0 %299
          %v301 = vmul.f32 %v300, %v286
          %v302 = vsub.f32 %v296, %v301
          %303 = vst [vmem:[%s129] sm:$0xff] %v302
          %s304 = scalar_lea.vmem %s129, 8 [#allocation1]
          %v305 = vld [vmem:[%s304] sm:$0xff]
          %v306 = vadd.s32 %v289, 8
          %v307 = vstv %s176
          %vm308 = vcmp.gt.s32.totalorder %v306, %v307
          %v309 = vsel %vm308, %v281, 1.0
          %v310 = vrcp.pop %v309
          %v311 = vmul.f32 %v305, %v310
          %vm312 = vmand %vm308, %vm262
          %v313 = vsel %vm312, %v311, 0.0
          %314 = vadd.xlane.f32.xlu0 %v313
          %v315 = vpop.xlane.xlu0 %314
          %v316 = vmul.f32 %v315, %v286
          %v317 = vsub.f32 %v311, %v316
          %318 = vst [vmem:[%s304] sm:$0xff] %v317
          %s319 = scalar_lea.vmem %s129, 16 [#allocation1]
          %v320 = vld [vmem:[%s319] sm:$0xff]
          %v321 = vadd.s32 %v289, 16
          %v322 = vstv %s176
          %vm323 = vcmp.gt.s32.totalorder %v321, %v322
          %v324 = vsel %vm323, %v281, 1.0
          %v325 = vrcp.pop %v324
          %v326 = vmul.f32 %v320, %v325
          %vm327 = vmand %vm323, %vm262
          %v328 = vsel %vm327, %v326, 0.0
          %329 = vadd.xlane.f32.xlu0 %v328
          %v330 = vpop.xlane.xlu0 %329
          %v331 = vmul.f32 %v330, %v286
          %v332 = vsub.f32 %v326, %v331
          %333 = vst [vmem:[%s319] sm:$0xff] %v332
        $region51: #{custom-call.22} parent=38 // loop_footer
          %s180 = sadd.s32 1, %s176
        $region52: #{custom-call.22} parent=38 // loop_footer_branch
          %175 = sbr.rel target = $region48
        $region53: #{custom-call.22} parent=38 // loop_exit
          _
        %v334 = vld [vmem:[#allocation7] sm:$0xff]
        %s335 = scalar_lea.vmem [#allocation7], 8
        %v336 = vld [vmem:[%s335] sm:$0xff]
        %s337 = scalar_lea.vmem [#allocation7], 16
        %v338 = vld [vmem:[%s337] sm:$0xff]
        %s339 = scalar_lea.vmem [#allocation7], 24
        %s340 = scalar_lea.vmem [#allocation7], 32
        %s341 = scalar_lea.vmem [#allocation7], 40
        %s342 = scalar_lea.vmem [#allocation7], 48
        %s343 = scalar_lea.vmem [#allocation7], 56
        %s344 = scalar_lea.vmem [#allocation7], 64
        %s345 = scalar_lea.vmem [#allocation7], 72
        %s346 = scalar_lea.vmem [#allocation7], 80
        %s347 = scalar_lea.vmem [#allocation7], 88
        %s348 = scalar_lea.vmem [#allocation7], 96
        %s349 = scalar_lea.vmem [#allocation7], 104
        %s350 = scalar_lea.vmem [#allocation7], 112
        %s351 = scalar_lea.vmem [#allocation7], 120
        %352 = vxpose.xlu0.b32.start [1/16] %v334, 128
        %353 = vxpose.xlu0.b32.cont [2/16] %v336, 128
        %354 = vxpose.xlu0.b32.cont [3/16] %v338, 128
        %355 = vxpose.xlu0.b32.cont [4/16] 0, 128
        %356 = vxpose.xlu0.b32.cont [5/16] 0, 128
        %357 = vxpose.xlu0.b32.cont [6/16] 0, 128
        %358 = vxpose.xlu0.b32.cont [7/16] 0, 128
        %359 = vxpose.xlu0.b32.cont [8/16] 0, 128
        %360 = vxpose.xlu0.b32.cont [9/16] 0, 128
        %361 = vxpose.xlu0.b32.cont [10/16] 0, 128
        %362 = vxpose.xlu0.b32.cont [11/16] 0, 128
        %363 = vxpose.xlu0.b32.cont [12/16] 0, 128
        %364 = vxpose.xlu0.b32.cont [13/16] 0, 128
        %365 = vxpose.xlu0.b32.cont [14/16] 0, 128
        %366 = vxpose.xlu0.b32.cont [15/16] 0, 128
        %367 = vxpose.xlu0.b32.end [16/16] 0, 128
        %v368 = vpop.trf.xlu0
        %v369 = vpop.trf.xlu0
        %v370 = vpop.trf.xlu0
        %v371 = vpop.trf.xlu0
        %v372 = vpop.trf.xlu0
        %v373 = vpop.trf.xlu0
        %v374 = vpop.trf.xlu0
        %v375 = vpop.trf.xlu0
        %v376 = vpop.trf.xlu0
        %v377 = vpop.trf.xlu0
        %v378 = vpop.trf.xlu0
        %v379 = vpop.trf.xlu0
        %v380 = vpop.trf.xlu0
        %v381 = vpop.trf.xlu0
        %v382 = vpop.trf.xlu0
        %v383 = vpop.trf.xlu0
        %384 = vst [vmem:[%s158] sm:$0x1] %v368
        %s386 = sshll.u32 1, 2
        %s387 = ssub.s32 %s386, 1
        %v389 = vld [vmem:[#allocation2] sm:%s387]
        %s390 = sshll.u32 1, 2
        %s391 = ssub.s32 %s390, 1
        %392 = vst [vmem:[%s136] sm:%s391] %v389
        %s394 = sshll.u32 1, 2
        %s395 = ssub.s32 %s394, 1
        %v397 = vld [vmem:[#allocation5] sm:%s395]
        %s398 = sshll.u32 1, 2
        %s399 = ssub.s32 %s398, 1
        %400 = vst [vmem:[%s142] sm:%s399] %v397
        %s401 = sand.u32 %s14, 1
        %s402 = sand.u32 %s14, 1
        %s403 = smul.addr %s402, 24
        %s404 = scalar_lea.vmem [#allocation1], %s403
        %s405 = sand.u32 %s24, 1
        %s406 = scalar_lea.sflag [#allocation4], %s405
        %s407 = sand.u32 %s24, 1
        %s408 = smul.addr %s407, 2
        %s409 = scalar_lea.vmem [#allocation3], %s408
        %s410 = sand.u32 %s52, 1
        %s411 = sand.u32 %s52, 1
        %s412 = smul.addr %s411, 2
        %s413 = scalar_lea.vmem [#allocation6], %s412
        %s414 = smul.addr %s14, 24
        %s415 = scalar_lea.vmem %s1, %s414
        // Predicated region
        $region54: #{custom-call.22} parent=38 // pred_check
          _
        $region55: #{custom-call.22} parent=38 // pred_check_branch
          %417 = sbr.rel (0) target = $region57
        $region56: #{custom-call.22} parent=38 // pred_region
          // Predicated region
          $region58: #{custom-call.22} parent=56 // pred_check
            _
          $region59: #{custom-call.22} parent=56 // pred_check_branch
            %419 = sbr.rel (0) target = $region61
          $region60: #{custom-call.22} parent=56 // pred_region
            loop: start=0, step=1, limit=1
            $region62: #{custom-call.22} parent=60 // loop_pre_header
              _
            $region63: #{custom-call.22} parent=60 // loop_header
              %s421 = sphi 0, %s425
              %p422 = scmp.ge.s32.totalorder %s421, 1
              %s426 = sphi %s404, %s404
              %s427 = sphi %s415, %s415
            $region64: #{custom-call.22} parent=60 // loop_header_branch
              %424 = sbr.rel (%p422) target = $region68
            $region65: #{custom-call.22} parent=60 // loop_body
              %v428 = vld [vmem:[%s426] sm:$0xff]
              %429 = vst [vmem:[%s427] sm:$0xff] %v428
              %v430 = vld [vmem:[%s426 + $0x8] sm:$0xff]
              %431 = vst [vmem:[%s427 + $0x8] sm:$0xff] %v430
              %v432 = vld [vmem:[%s426 + $0x10] sm:$0xff]
              %433 = vst [vmem:[%s427 + $0x10] sm:$0xff] %v432
            $region66: #{custom-call.22} parent=60 // loop_footer
              %s425 = sadd.s32 1, %s421
            $region67: #{custom-call.22} parent=60 // loop_footer_branch
              %420 = sbr.rel target = $region63
            $region68: #{custom-call.22} parent=60 // loop_exit
              _
          $region61: #{custom-call.22} parent=56 // pred_fallthru
            _
          // Predicated region
          $region69: #{custom-call.22} parent=56 // pred_check
            _
          $region70: #{custom-call.22} parent=56 // pred_check_branch
            %435 = sbr.rel target = $region72
          $region71: #{custom-call.22} parent=56 // pred_region
            _
          $region72: #{custom-call.22} parent=56 // pred_fallthru
            _
        $region57: #{custom-call.22} parent=38 // pred_fallthru
          _
        %436 = vnop
        // Predicated region
        $region73: #{custom-call.22} parent=38 // pred_check
          %p437 = pneg %p34
        $region74: #{custom-call.22} parent=38 // pred_check_branch
          %439 = sbr.rel (%p437) target = $region76
        $region75: #{custom-call.22} parent=38 // pred_region
          %s440 = sshrl.u32 %s14, 3
          %s442 = ssub.s32 32, 32
          %443 = vsyncadd %s406, %s442
          %s444 = smul.addr %s440, 32
          %s445 = scalar_lea.hbm %s2, %s444
          %s447 = sshll.u32 %s409, 4
          %s448 = int_to_ptr.vmem [resolvable:$true] %s447
          %450 = dma.vmem_to_hbm [thread:$0]  %s448, 32, %s445, %s406
        $region76: #{custom-call.22} parent=38 // pred_fallthru
          _
        // Predicated region
        $region77: #{custom-call.22} parent=38 // pred_check
          %p451 = pneg %p62
        $region78: #{custom-call.22} parent=38 // pred_check_branch
          %453 = sbr.rel (%p451) target = $region80
        $region79: #{custom-call.22} parent=38 // pred_region
          %s454 = sshrl.u32 %s14, 3
          %s455 = smul.addr %s454, 2
          %s456 = scalar_lea.vmem %s3, %s455
          // Predicated region
          $region81: #{custom-call.22} parent=79 // pred_check
            _
          $region82: #{custom-call.22} parent=79 // pred_check_branch
            %458 = sbr.rel (0) target = $region84
          $region83: #{custom-call.22} parent=79 // pred_region
            // Predicated region
            $region85: #{custom-call.22} parent=83 // pred_check
              _
            $region86: #{custom-call.22} parent=83 // pred_check_branch
              %460 = sbr.rel target = $region88
            $region87: #{custom-call.22} parent=83 // pred_region
              // Predicated region
              $region100: #{custom-call.22} parent=87 // pred_check
                _
              $region101: #{custom-call.22} parent=87 // pred_check_branch
                %476 = sbr.rel (0) target = $region103
              $region102: #{custom-call.22} parent=87 // pred_region
                %s478 = ssub.s32 4, 1
                loop: start=0, step=1, limit=1
                $region104: #{custom-call.22} parent=102 // loop_pre_header
                  _
                $region105: #{custom-call.22} parent=102 // loop_header
                  %s480 = sphi 0, %s484
                  %p481 = scmp.ge.s32.totalorder %s480, 1
                  %s485 = sphi %s413, %s413
                  %s486 = sphi %s456, %s456
                $region106: #{custom-call.22} parent=102 // loop_header_branch
                  %483 = sbr.rel (%p481) target = $region110
                $region107: #{custom-call.22} parent=102 // loop_body
                  %v487 = vld [vmem:[%s485] sm:%s478]
                  %488 = vst [vmem:[%s486] sm:%s478] %v487
                $region108: #{custom-call.22} parent=102 // loop_footer
                  %s484 = sadd.s32 1, %s480
                $region109: #{custom-call.22} parent=102 // loop_footer_branch
                  %479 = sbr.rel target = $region105
                $region110: #{custom-call.22} parent=102 // loop_exit
                  _
              $region103: #{custom-call.22} parent=87 // pred_fallthru
                _
            $region88: #{custom-call.22} parent=83 // pred_fallthru
              _
            // Predicated region
            $region89: #{custom-call.22} parent=83 // pred_check
              _
            $region90: #{custom-call.22} parent=83 // pred_check_branch
              %462 = sbr.rel (0) target = $region92
            $region91: #{custom-call.22} parent=83 // pred_region
              %s464 = ssub.s32 4, 1
              loop: start=0, step=1, limit=1
              $region93: #{custom-call.22} parent=91 // loop_pre_header
                _
              $region94: #{custom-call.22} parent=91 // loop_header
                %s466 = sphi 0, %s470
                %p467 = scmp.ge.s32.totalorder %s466, 1
                %s471 = sphi %s413, %s413
                %s472 = sphi %s456, %s456
              $region95: #{custom-call.22} parent=91 // loop_header_branch
                %469 = sbr.rel (%p467) target = $region99
              $region96: #{custom-call.22} parent=91 // loop_body
                %v473 = vld [vmem:[%s471] sm:%s464]
                %474 = vst [vmem:[%s472] sm:%s464] %v473
              $region97: #{custom-call.22} parent=91 // loop_footer
                %s470 = sadd.s32 1, %s466
              $region98: #{custom-call.22} parent=91 // loop_footer_branch
                %465 = sbr.rel target = $region94
              $region99: #{custom-call.22} parent=91 // loop_exit
                _
            $region92: #{custom-call.22} parent=83 // pred_fallthru
              _
          $region84: #{custom-call.22} parent=79 // pred_fallthru
            _
          %489 = vnop
        $region80: #{custom-call.22} parent=38 // pred_fallthru
          _
      $region39: #{custom-call.22} parent=5 // pred_fallthru
        _
      %p490 = scmp.le.s32.totalorder 2, %s9
      // Predicated region
      $region111: #{custom-call.22} parent=5 // pred_check
        %p491 = pneg %p490
      $region112: #{custom-call.22} parent=5 // pred_check_branch
        %493 = sbr.rel (%p491) target = $region114
      $region113: #{custom-call.22} parent=5 // pred_region
        %s494 = ssub.s32 %s9, 2
        %s495 = sand.u32 %s15, 1
        %s496 = sand.u32 %s15, 1
        %s497 = smul.addr %s496, 24
        %s498 = scalar_lea.vmem [#allocation1], %s497
        // Predicated region
        $region115: #{custom-call.22} parent=113 // pred_check
          %p499 = pneg %p40
        $region116: #{custom-call.22} parent=113 // pred_check_branch
          %501 = sbr.rel (%p499) target = $region118
        $region117: #{custom-call.22} parent=113 // pred_region
          %s502 = sand.u32 %s25, 1
          %s503 = scalar_lea.sflag [#allocation4], %s502
          %s504 = sand.u32 %s25, 1
          %s505 = smul.addr %s504, 2
          %s506 = scalar_lea.vmem [#allocation3], %s505
          %507 = dma.done %s503, 32
        $region118: #{custom-call.22} parent=113 // pred_fallthru
          _
        // Predicated region
        $region119: #{custom-call.22} parent=113 // pred_check
          %p508 = pneg %p68
        $region120: #{custom-call.22} parent=113 // pred_check_branch
          %510 = sbr.rel (%p508) target = $region122
        $region121: #{custom-call.22} parent=113 // pred_region
          %s511 = sand.u32 %s53, 1
          %s512 = sand.u32 %s53, 1
          %s513 = smul.addr %s512, 2
          %s514 = scalar_lea.vmem [#allocation6], %s513
        $region122: #{custom-call.22} parent=113 // pred_fallthru
          _
      $region114: #{custom-call.22} parent=5 // pred_fallthru
        _
    $region6: #{custom-call.22} parent=1 // loop_footer
      %s13 = sadd.s32 1, %s9
    $region7: #{custom-call.22} parent=1 // loop_footer_branch
      %8 = sbr.rel target = $region3
    $region8: #{custom-call.22} parent=1 // loop_exit
      _
    %515 = vsyncpa [#allocation4], 1
    %s516 = scalar_lea.sflag [#allocation4], 1
    %517 = vsyncpa %s516, 1

// kernel: custom-call.24
$region0: #{custom-call.24}
  %s0 = inlined_call_operand.vmem [shape: f32[2,1,20,20], index: 0, kind: input, shape index: {}]
  %s1 = inlined_call_operand.vmem [shape: f32[2,1,20,20], index: 1, kind: output, shape index: {}]
  $region1: #{custom-call.24} parent=0
    #allocation0 [shape = 'u8[24576]{0}', space=vmem, size = 0x6000, scoped, tag = 'operand span for operand 0']
    #allocation1 [shape = 'u8[24576]{0}', space=vmem, size = 0x6000, scoped, tag = 'operand span for operand 1']
    loop: start=0, step=1, limit=4
    $region2: #{custom-call.24} parent=1 // loop_pre_header
      _
    $region3: #{custom-call.24} parent=1 // loop_header
      %s3 = sphi 0, %s7
      %p4 = scmp.ge.s32.totalorder %s3, 4
      %s10 = sphi 0, %s36
      %s11 = sphi 0, %s32
      %s12 = sphi 0, %s28
      %s13 = sphi 0, %s24
      %s14 = sphi 0, %s10
      %s15 = sphi 0, %s11
      %s16 = sphi 0, %s12
      %s17 = sphi 0, %s13
      %s18 = sphi 0, %s14
      %s19 = sphi 0, %s15
      %s20 = sphi 0, %s16
      %s21 = sphi 0, %s17
    $region4: #{custom-call.24} parent=1 // loop_header_branch
      %6 = sbr.rel (%p4) target = $region8
    $region5: #{custom-call.24} parent=1 // loop_body
      %s8 = ssub.s32 %s3, 1
      %s9 = ssub.s32 %s3, 2
      %s22 = sadd.s32 1, %s13
      %p23 = scmp.ge.s32.totalorder %s22, 1
      %s24 = scalar_select %p23, 0, %s22
      %s25 = sadd.s32 1, %s12
      %s26 = scalar_select %p23, %s25, %s12
      %p27 = scmp.ge.s32.totalorder %s26, 1
      %s28 = scalar_select %p27, 0, %s26
      %s29 = sadd.s32 1, %s11
      %s30 = scalar_select %p27, %s29, %s11
      %p31 = scmp.ge.s32.totalorder %s30, 1
      %s32 = scalar_select %p31, 0, %s30
      %s33 = sadd.s32 1, %s10
      %s34 = scalar_select %p31, %s33, %s10
      %p35 = scmp.ge.s32.totalorder %s34, 2
      %s36 = scalar_select %p35, 0, %s34
      %p37 = scmp.le.s32.totalorder 1, %s3
      %p38 = scmp.lt.s32.totalorder %s3, 3
      %p39 = pnand %p37, %p38
      %p40 = pneg %p39
      // Predicated region
      $region9: #{custom-call.24} parent=5 // pred_check
        _
      $region10: #{custom-call.24} parent=5 // pred_check_branch
        %42 = sbr.rel (%p39) target = $region12
      $region11: #{custom-call.24} parent=5 // pred_region
        %s43 = ssub.s32 %s3, 1
      $region12: #{custom-call.24} parent=5 // pred_fallthru
        _
      %p44 = scmp.lt.s32.totalorder %s3, 2
      // Predicated region
      $region13: #{custom-call.24} parent=5 // pred_check
        %p45 = pneg %p44
      $region14: #{custom-call.24} parent=5 // pred_check_branch
        %47 = sbr.rel (%p45) target = $region16
      $region15: #{custom-call.24} parent=5 // pred_region
        %s48 = sand.u32 %s3, 1
        %s49 = sand.u32 %s3, 1
        %s50 = smul.addr %s49, 24
        %s51 = scalar_lea.vmem [#allocation0], %s50
        %s52 = sadd.s32 %s13, %s12
        %s53 = smul.addr %s11, 3
        %s54 = sadd.s32 %s52, %s53
        %s55 = smul.addr %s10, 3
        %s56 = sadd.s32 %s54, %s55
        %s57 = smul.addr %s56, 8
        %s58 = scalar_lea.vmem %s0, %s57
        // Predicated region
        $region17: #{custom-call.24} parent=15 // pred_check
          _
        $region18: #{custom-call.24} parent=15 // pred_check_branch
          %60 = sbr.rel (0) target = $region20
        $region19: #{custom-call.24} parent=15 // pred_region
          // Predicated region
          $region21: #{custom-call.24} parent=19 // pred_check
            _
          $region22: #{custom-call.24} parent=19 // pred_check_branch
            %62 = sbr.rel (0) target = $region24
          $region23: #{custom-call.24} parent=19 // pred_region
            // Predicated region
            $region36: #{custom-call.24} parent=23 // pred_check
              _
            $region37: #{custom-call.24} parent=23 // pred_check_branch
              %82 = sbr.rel (0) target = $region39
            $region38: #{custom-call.24} parent=23 // pred_region
              loop: start=0, step=1, limit=1
              $region40: #{custom-call.24} parent=38 // loop_pre_header
                _
              $region41: #{custom-call.24} parent=38 // loop_header
                %s84 = sphi 0, %s88
                %p85 = scmp.ge.s32.totalorder %s84, 1
                %s89 = sphi %s58, %s58
                %s90 = sphi %s51, %s51
              $region42: #{custom-call.24} parent=38 // loop_header_branch
                %87 = sbr.rel (%p85) target = $region46
              $region43: #{custom-call.24} parent=38 // loop_body
                %v91 = vld [vmem:[%s89] sm:$0xff]
                %92 = vst [vmem:[%s90] sm:$0xff] %v91
                %v93 = vld [vmem:[%s89 + $0x8] sm:$0xff]
                %94 = vst [vmem:[%s90 + $0x8] sm:$0xff] %v93
                %v95 = vld [vmem:[%s89 + $0x10] sm:$0xff]
                %96 = vst [vmem:[%s90 + $0x10] sm:$0xff] %v95
              $region44: #{custom-call.24} parent=38 // loop_footer
                %s88 = sadd.s32 1, %s84
              $region45: #{custom-call.24} parent=38 // loop_footer_branch
                %83 = sbr.rel target = $region41
              $region46: #{custom-call.24} parent=38 // loop_exit
                _
            $region39: #{custom-call.24} parent=23 // pred_fallthru
              _
            // Predicated region
            $region47: #{custom-call.24} parent=23 // pred_check
              _
            $region48: #{custom-call.24} parent=23 // pred_check_branch
              %98 = sbr.rel target = $region50
            $region49: #{custom-call.24} parent=23 // pred_region
              _
            $region50: #{custom-call.24} parent=23 // pred_fallthru
              _
          $region24: #{custom-call.24} parent=19 // pred_fallthru
            _
          // Predicated region
          $region25: #{custom-call.24} parent=19 // pred_check
            _
          $region26: #{custom-call.24} parent=19 // pred_check_branch
            %64 = sbr.rel target = $region28
          $region27: #{custom-call.24} parent=19 // pred_region
            %s66 = ssub.s32 256, 1
            loop: start=0, step=1, limit=1
            $region29: #{custom-call.24} parent=27 // loop_pre_header
              _
            $region30: #{custom-call.24} parent=27 // loop_header
              %s68 = sphi 0, %s72
              %p69 = scmp.ge.s32.totalorder %s68, 1
              %s73 = sphi %s58, %s58
              %s74 = sphi %s51, %s51
            $region31: #{custom-call.24} parent=27 // loop_header_branch
              %71 = sbr.rel (%p69) target = $region35
            $region32: #{custom-call.24} parent=27 // loop_body
              %v75 = vld [vmem:[%s73] sm:%s66]
              %76 = vst [vmem:[%s74] sm:%s66] %v75
              %v77 = vld [vmem:[%s73 + $0x8] sm:%s66]
              %78 = vst [vmem:[%s74 + $0x8] sm:%s66] %v77
              %v79 = vld [vmem:[%s73 + $0x10] sm:%s66]
              %80 = vst [vmem:[%s74 + $0x10] sm:%s66] %v79
            $region33: #{custom-call.24} parent=27 // loop_footer
              %s72 = sadd.s32 1, %s68
            $region34: #{custom-call.24} parent=27 // loop_footer_branch
              %67 = sbr.rel target = $region30
            $region35: #{custom-call.24} parent=27 // loop_exit
              _
          $region28: #{custom-call.24} parent=19 // pred_fallthru
            _
        $region20: #{custom-call.24} parent=15 // pred_fallthru
          _
        %99 = vnop
      $region16: #{custom-call.24} parent=5 // pred_fallthru
        _
      %p100 = scmp.le.s32.totalorder 1, %s3
      %p101 = scmp.lt.s32.totalorder %s3, 3
      %p102 = pnand %p100, %p101
      %p103 = pneg %p102
      // Predicated region
      $region51: #{custom-call.24} parent=5 // pred_check
        _
      $region52: #{custom-call.24} parent=5 // pred_check_branch
        %105 = sbr.rel (%p102) target = $region54
      $region53: #{custom-call.24} parent=5 // pred_region
        #allocation2 [shape = 'f32[20,20]{1,0}', space=vmem, size = 0x3000, scoped, tag = 'rescaled input a']
        %s106 = ssub.s32 %s3, 1
        %s107 = sand.u32 %s8, 1
        %s108 = sand.u32 %s8, 1
        %s109 = smul.addr %s108, 24
        %s110 = scalar_lea.vmem [#allocation0], %s109
        %s111 = sand.u32 %s8, 1
        %s112 = sand.u32 %s8, 1
        %s113 = smul.addr %s112, 24
        %s114 = scalar_lea.vmem [#allocation0], %s113
        %s115 = sand.u32 %s8, 1
        %s116 = sand.u32 %s8, 1
        %s117 = smul.addr %s116, 24
        %s118 = scalar_lea.vmem [#allocation1], %s117
        %v119 = vlaneseq
        %v120 = vand.u32 %v119, 127
        %vm121 = vcmp.lt.s32.totalorder %v120, 20
        %v122 = vlaneseq
        %v123 = vshrl.u32 %v122, 7
        %vm125 = vcmp.eq.s32.totalorder %v123, %v120
        %v126 = vld [vmem:[%s110] sm:$0xff]
        %v127 = vsel %vm125, %v126, 0.0
        %128 = vadd.xlane.f32.xlu0 %v127
        %v129 = vpop.xlane.xlu0 %128
        %vm130 = vcmp.ge.s32.totalorder %v123, %v120
        %vm131 = vmand %vm130, %vm121
        %v132 = vsel %vm131, %v126, 0.0
        %v133 = vrcp.pop %v129
        %v134 = vmul.f32 %v132, %v133
        %135 = vst [vmem:[#allocation2] sm:$0xff] %v134
        %s136 = scalar_lea.vmem %s110, 8 [#allocation0]
        %s137 = scalar_lea.vmem [#allocation2], 8
        %v138 = vlaneseq
        %v139 = vshrl.u32 %v138, 7
        %v140 = vadd.s32 %v139, 8
        %vm141 = vcmp.eq.s32.totalorder %v140, %v120
        %v142 = vld [vmem:[%s136] sm:$0xff]
        %v143 = vsel %vm141, %v142, 0.0
        %144 = vadd.xlane.f32.xlu0 %v143
        %v145 = vpop.xlane.xlu0 %144
        %vm146 = vcmp.ge.s32.totalorder %v140, %v120
        %vm147 = vmand %vm146, %vm121
        %v148 = vsel %vm147, %v142, 0.0
        %v149 = vrcp.pop %v145
        %v150 = vmul.f32 %v148, %v149
        %151 = vst [vmem:[%s137] sm:$0xff] %v150
        %s152 = scalar_lea.vmem %s110, 16 [#allocation0]
        %s153 = scalar_lea.vmem [#allocation2], 16
        %v154 = vlaneseq
        %v155 = vshrl.u32 %v154, 7
        %v156 = vadd.s32 %v155, 16
        %vm157 = vcmp.eq.s32.totalorder %v156, %v120
        %v158 = vld [vmem:[%s152] sm:$0xff]
        %v159 = vsel %vm157, %v158, 0.0
        %160 = vadd.xlane.f32.xlu0 %v159
        %v161 = vpop.xlane.xlu0 %160
        %vm162 = vcmp.ge.s32.totalorder %v156, %v120
        %vm163 = vmand %vm162, %vm121
        %v164 = vsel %vm163, %v158, 0.0
        %v165 = vrcp.pop %v161
        %v166 = vmul.f32 %v164, %v165
        %167 = vst [vmem:[%s153] sm:$0xff] %v166
        %v168 = vlaneseq
        %v169 = vand.u32 %v168, 127
        %v170 = vlaneseq
        %v171 = vshrl.u32 %v170, 7
        %vm173 = vcmp.eq.s32.totalorder %v169, %v171
        %v174 = vlaneseq
        %v175 = vand.u32 %v174, 127
        %vm176 = vcmp.eq.s32.totalorder %v175, 0
        %v177 = vsel %vm176, 1.0, -1.0
        %v178 = vsel %vm173, %v177, 0.0
        %v179 = vlaneseq
        %v180 = vand.u32 %v179, 127
        %v181 = vlaneseq
        %v182 = vshrl.u32 %v181, 7
        %v183 = vadd.s32 %v182, 8
        %vm184 = vcmp.eq.s32.totalorder %v180, %v183
        %v185 = vsel %vm184, -1.0, 0.0
        %v186 = vlaneseq
        %v187 = vand.u32 %v186, 127
        %v188 = vlaneseq
        %v189 = vshrl.u32 %v188, 7
        %v190 = vadd.s32 %v189, 16
        %vm191 = vcmp.eq.s32.totalorder %v187, %v190
        %v192 = vsel %vm191, -1.0, 0.0
        %s193 = scalar_lea.vmem [#allocation2], 1
        %v194 = vld [vmem:[%s193] ss:$0 sm:$0xff]
        %v195 = vxor.u32 %v194, 2147483648
        %v196 = vlaneseq
        %v197 = vand.u32 %v196, 127
        %vm198 = vcmp.eq.s32.totalorder %v197, 1
        %v199 = vmul.f32 %v195, %v178
        %200 = vadd.xlane.f32.xlu0 %v199
        %v201 = vpop.xlane.xlu0 %200
        %v202 = vsel %vm198, %v201, %v178
        %s203 = scalar_lea.vmem [#allocation2], 2
        %v204 = vld [vmem:[%s203] ss:$0 sm:$0xff]
        %v205 = vxor.u32 %v204, 2147483648
        %v206 = vlaneseq
        %v207 = vand.u32 %v206, 127
        %vm208 = vcmp.eq.s32.totalorder %v207, 2
        %v209 = vmul.f32 %v205, %v202
        %210 = vadd.xlane.f32.xlu0 %v209
        %v211 = vpop.xlane.xlu0 %210
        %v212 = vsel %vm208, %v211, %v202
        %s213 = scalar_lea.vmem [#allocation2], 3
        %v214 = vld [vmem:[%s213] ss:$0 sm:$0xff]
        %v215 = vxor.u32 %v214, 2147483648
        %v216 = vlaneseq
        %v217 = vand.u32 %v216, 127
        %vm218 = vcmp.eq.s32.totalorder %v217, 3
        %v219 = vmul.f32 %v215, %v212
        %220 = vadd.xlane.f32.xlu0 %v219
        %v221 = vpop.xlane.xlu0 %220
        %v222 = vsel %vm218, %v221, %v212
        %s223 = scalar_lea.vmem [#allocation2], 4
        %v224 = vld [vmem:[%s223] ss:$0 sm:$0xff]
        %v225 = vxor.u32 %v224, 2147483648
        %v226 = vlaneseq
        %v227 = vand.u32 %v226, 127
        %vm228 = vcmp.eq.s32.totalorder %v227, 4
        %v229 = vmul.f32 %v225, %v222
        %230 = vadd.xlane.f32.xlu0 %v229
        %v231 = vpop.xlane.xlu0 %230
        %v232 = vsel %vm228, %v231, %v222
        %s233 = scalar_lea.vmem [#allocation2], 5
        %v234 = vld [vmem:[%s233] ss:$0 sm:$0xff]
        %v235 = vxor.u32 %v234, 2147483648
        %v236 = vlaneseq
        %v237 = vand.u32 %v236, 127
        %vm238 = vcmp.eq.s32.totalorder %v237, 5
        %v239 = vmul.f32 %v235, %v232
        %240 = vadd.xlane.f32.xlu0 %v239
        %v241 = vpop.xlane.xlu0 %240
        %v242 = vsel %vm238, %v241, %v232
        %s243 = scalar_lea.vmem [#allocation2], 6
        %v244 = vld [vmem:[%s243] ss:$0 sm:$0xff]
        %v245 = vxor.u32 %v244, 2147483648
        %v246 = vlaneseq
        %v247 = vand.u32 %v246, 127
        %vm248 = vcmp.eq.s32.totalorder %v247, 6
        %v249 = vmul.f32 %v245, %v242
        %250 = vadd.xlane.f32.xlu0 %v249
        %v251 = vpop.xlane.xlu0 %250
        %v252 = vsel %vm248, %v251, %v242
        %s253 = scalar_lea.vmem [#allocation2], 7
        %v254 = vld [vmem:[%s253] ss:$0 sm:$0xff]
        %v255 = vxor.u32 %v254, 2147483648
        %v256 = vlaneseq
        %v257 = vand.u32 %v256, 127
        %vm258 = vcmp.eq.s32.totalorder %v257, 7
        %v259 = vmul.f32 %v255, %v252
        %260 = vadd.xlane.f32.xlu0 %v259
        %v261 = vpop.xlane.xlu0 %260
        %v262 = vsel %vm258, %v261, %v252
        %s263 = scalar_lea.vmem [#allocation2], 8
        %v264 = vld [vmem:[%s263] ss:$0 sm:$0xff]
        %v265 = vxor.u32 %v264, 2147483648
        %v266 = vlaneseq
        %v267 = vand.u32 %v266, 127
        %vm268 = vcmp.eq.s32.totalorder %v267, 8
        %v269 = vmul.f32 %v265, %v262
        %270 = vadd.xlane.f32.xlu0 %v269
        %v271 = vpop.xlane.xlu0 %270
        %v272 = vsel %vm268, %v271, %v262
        %v273 = vmul.f32 %v265, %v185
        %274 = vadd.xlane.f32.xlu0 %v273
        %v275 = vpop.xlane.xlu0 %274
        %v276 = vsel %vm268, %v275, %v185
        %s277 = scalar_lea.vmem [#allocation2], 9
        %v278 = vld [vmem:[%s277] ss:$0 sm:$0xff]
        %v279 = vxor.u32 %v278, 2147483648
        %v280 = vlaneseq
        %v281 = vand.u32 %v280, 127
        %vm282 = vcmp.eq.s32.totalorder %v281, 9
        %v283 = vmul.f32 %v279, %v272
        %284 = vadd.xlane.f32.xlu0 %v283
        %v285 = vpop.xlane.xlu0 %284
        %v286 = vsel %vm282, %v285, %v272
        %v287 = vmul.f32 %v279, %v276
        %288 = vadd.xlane.f32.xlu0 %v287
        %v289 = vpop.xlane.xlu0 %288
        %v290 = vsel %vm282, %v289, %v276
        %s291 = scalar_lea.vmem [#allocation2], 10
        %v292 = vld [vmem:[%s291] ss:$0 sm:$0xff]
        %v293 = vxor.u32 %v292, 2147483648
        %v294 = vlaneseq
        %v295 = vand.u32 %v294, 127
        %vm296 = vcmp.eq.s32.totalorder %v295, 10
        %v297 = vmul.f32 %v293, %v286
        %298 = vadd.xlane.f32.xlu0 %v297
        %v299 = vpop.xlane.xlu0 %298
        %v300 = vsel %vm296, %v299, %v286
        %v301 = vmul.f32 %v293, %v290
        %302 = vadd.xlane.f32.xlu0 %v301
        %v303 = vpop.xlane.xlu0 %302
        %v304 = vsel %vm296, %v303, %v290
        %s305 = scalar_lea.vmem [#allocation2], 11
        %v306 = vld [vmem:[%s305] ss:$0 sm:$0xff]
        %v307 = vxor.u32 %v306, 2147483648
        %v308 = vlaneseq
        %v309 = vand.u32 %v308, 127
        %vm310 = vcmp.eq.s32.totalorder %v309, 11
        %v311 = vmul.f32 %v307, %v300
        %312 = vadd.xlane.f32.xlu0 %v311
        %v313 = vpop.xlane.xlu0 %312
        %v314 = vsel %vm310, %v313, %v300
        %v315 = vmul.f32 %v307, %v304
        %316 = vadd.xlane.f32.xlu0 %v315
        %v317 = vpop.xlane.xlu0 %316
        %v318 = vsel %vm310, %v317, %v304
        %s319 = scalar_lea.vmem [#allocation2], 12
        %v320 = vld [vmem:[%s319] ss:$0 sm:$0xff]
        %v321 = vxor.u32 %v320, 2147483648
        %v322 = vlaneseq
        %v323 = vand.u32 %v322, 127
        %vm324 = vcmp.eq.s32.totalorder %v323, 12
        %v325 = vmul.f32 %v321, %v314
        %326 = vadd.xlane.f32.xlu0 %v325
        %v327 = vpop.xlane.xlu0 %326
        %v328 = vsel %vm324, %v327, %v314
        %v329 = vmul.f32 %v321, %v318
        %330 = vadd.xlane.f32.xlu0 %v329
        %v331 = vpop.xlane.xlu0 %330
        %v332 = vsel %vm324, %v331, %v318
        %s333 = scalar_lea.vmem [#allocation2], 13
        %v334 = vld [vmem:[%s333] ss:$0 sm:$0xff]
        %v335 = vxor.u32 %v334, 2147483648
        %v336 = vlaneseq
        %v337 = vand.u32 %v336, 127
        %vm338 = vcmp.eq.s32.totalorder %v337, 13
        %v339 = vmul.f32 %v335, %v328
        %340 = vadd.xlane.f32.xlu0 %v339
        %v341 = vpop.xlane.xlu0 %340
        %v342 = vsel %vm338, %v341, %v328
        %v343 = vmul.f32 %v335, %v332
        %344 = vadd.xlane.f32.xlu0 %v343
        %v345 = vpop.xlane.xlu0 %344
        %v346 = vsel %vm338, %v345, %v332
        %s347 = scalar_lea.vmem [#allocation2], 14
        %v348 = vld [vmem:[%s347] ss:$0 sm:$0xff]
        %v349 = vxor.u32 %v348, 2147483648
        %v350 = vlaneseq
        %v351 = vand.u32 %v350, 127
        %vm352 = vcmp.eq.s32.totalorder %v351, 14
        %v353 = vmul.f32 %v349, %v342
        %354 = vadd.xlane.f32.xlu0 %v353
        %v355 = vpop.xlane.xlu0 %354
        %v356 = vsel %vm352, %v355, %v342
        %v357 = vmul.f32 %v349, %v346
        %358 = vadd.xlane.f32.xlu0 %v357
        %v359 = vpop.xlane.xlu0 %358
        %v360 = vsel %vm352, %v359, %v346
        %s361 = scalar_lea.vmem [#allocation2], 15
        %v362 = vld [vmem:[%s361] ss:$0 sm:$0xff]
        %v363 = vxor.u32 %v362, 2147483648
        %v364 = vlaneseq
        %v365 = vand.u32 %v364, 127
        %vm366 = vcmp.eq.s32.totalorder %v365, 15
        %v367 = vmul.f32 %v363, %v356
        %368 = vadd.xlane.f32.xlu0 %v367
        %v369 = vpop.xlane.xlu0 %368
        %v370 = vsel %vm366, %v369, %v356
        %v371 = vmul.f32 %v363, %v360
        %372 = vadd.xlane.f32.xlu0 %v371
        %v373 = vpop.xlane.xlu0 %372
        %v374 = vsel %vm366, %v373, %v360
        %s375 = scalar_lea.vmem [#allocation2], 16
        %v376 = vld [vmem:[%s375] ss:$0 sm:$0xff]
        %v377 = vxor.u32 %v376, 2147483648
        %v378 = vlaneseq
        %v379 = vand.u32 %v378, 127
        %vm380 = vcmp.eq.s32.totalorder %v379, 16
        %v381 = vmul.f32 %v377, %v370
        %382 = vadd.xlane.f32.xlu0 %v381
        %v383 = vpop.xlane.xlu0 %382
        %v384 = vsel %vm380, %v383, %v370
        %v385 = vmul.f32 %v377, %v374
        %386 = vadd.xlane.f32.xlu0 %v385
        %v387 = vpop.xlane.xlu0 %386
        %v388 = vsel %vm380, %v387, %v374
        %v389 = vmul.f32 %v377, %v192
        %390 = vadd.xlane.f32.xlu0 %v389
        %v391 = vpop.xlane.xlu0 %390
        %v392 = vsel %vm380, %v391, %v192
        %s393 = scalar_lea.vmem [#allocation2], 17
        %v394 = vld [vmem:[%s393] ss:$0 sm:$0xff]
        %v395 = vxor.u32 %v394, 2147483648
        %v396 = vlaneseq
        %v397 = vand.u32 %v396, 127
        %vm398 = vcmp.eq.s32.totalorder %v397, 17
        %v399 = vmul.f32 %v395, %v384
        %400 = vadd.xlane.f32.xlu0 %v399
        %v401 = vpop.xlane.xlu0 %400
        %v402 = vsel %vm398, %v401, %v384
        %v403 = vmul.f32 %v395, %v388
        %404 = vadd.xlane.f32.xlu0 %v403
        %v405 = vpop.xlane.xlu0 %404
        %v406 = vsel %vm398, %v405, %v388
        %v407 = vmul.f32 %v395, %v392
        %408 = vadd.xlane.f32.xlu0 %v407
        %v409 = vpop.xlane.xlu0 %408
        %v410 = vsel %vm398, %v409, %v392
        %s411 = scalar_lea.vmem [#allocation2], 18
        %v412 = vld [vmem:[%s411] ss:$0 sm:$0xff]
        %v413 = vxor.u32 %v412, 2147483648
        %v414 = vlaneseq
        %v415 = vand.u32 %v414, 127
        %vm416 = vcmp.eq.s32.totalorder %v415, 18
        %v417 = vmul.f32 %v413, %v402
        %418 = vadd.xlane.f32.xlu0 %v417
        %v419 = vpop.xlane.xlu0 %418
        %v420 = vsel %vm416, %v419, %v402
        %v421 = vmul.f32 %v413, %v406
        %422 = vadd.xlane.f32.xlu0 %v421
        %v423 = vpop.xlane.xlu0 %422
        %v424 = vsel %vm416, %v423, %v406
        %v425 = vmul.f32 %v413, %v410
        %426 = vadd.xlane.f32.xlu0 %v425
        %v427 = vpop.xlane.xlu0 %426
        %v428 = vsel %vm416, %v427, %v410
        %s429 = scalar_lea.vmem [#allocation2], 19
        %v430 = vld [vmem:[%s429] ss:$0 sm:$0xff]
        %v431 = vxor.u32 %v430, 2147483648
        %v432 = vlaneseq
        %v433 = vand.u32 %v432, 127
        %vm434 = vcmp.eq.s32.totalorder %v433, 19
        %v435 = vmul.f32 %v431, %v420
        %436 = vadd.xlane.f32.xlu0 %v435
        %v437 = vpop.xlane.xlu0 %436
        %v438 = vsel %vm434, %v437, %v420
        %v439 = vmul.f32 %v431, %v424
        %440 = vadd.xlane.f32.xlu0 %v439
        %v441 = vpop.xlane.xlu0 %440
        %v442 = vsel %vm434, %v441, %v424
        %v443 = vmul.f32 %v431, %v428
        %444 = vadd.xlane.f32.xlu0 %v443
        %v445 = vpop.xlane.xlu0 %444
        %v446 = vsel %vm434, %v445, %v428
        %v447 = vrcp.pop %v129
        %v448 = vmul.f32 %v438, %v447
        %vm449 = vweird.f32 %v129
        %v450 = vsel %vm449, %v438, %v448
        %451 = vst [vmem:[%s118] sm:$0xff] %v450
        %v452 = vrcp.pop %v145
        %v453 = vmul.f32 %v442, %v452
        %vm454 = vweird.f32 %v145
        %v455 = vsel %vm454, %v442, %v453
        %s456 = scalar_lea.vmem %s118, 8 [#allocation1]
        %457 = vst [vmem:[%s456] sm:$0xff] %v455
        %v458 = vrcp.pop %v161
        %v459 = vmul.f32 %v446, %v458
        %vm460 = vweird.f32 %v161
        %v461 = vsel %vm460, %v446, %v459
        %s462 = scalar_lea.vmem %s118, 16 [#allocation1]
        %463 = vst [vmem:[%s462] sm:$0xff] %v461
        %s464 = sand.u32 %s8, 1
        %s465 = sand.u32 %s8, 1
        %s466 = smul.addr %s465, 24
        %s467 = scalar_lea.vmem [#allocation1], %s466
        %s468 = sadd.s32 %s17, %s16
        %s469 = smul.addr %s15, 3
        %s470 = sadd.s32 %s468, %s469
        %s471 = smul.addr %s14, 3
        %s472 = sadd.s32 %s470, %s471
        %s473 = smul.addr %s472, 8
        %s474 = scalar_lea.vmem %s1, %s473
        // Predicated region
        $region55: #{custom-call.24} parent=53 // pred_check
          _
        $region56: #{custom-call.24} parent=53 // pred_check_branch
          %476 = sbr.rel (0) target = $region58
        $region57: #{custom-call.24} parent=53 // pred_region
          // Predicated region
          $region59: #{custom-call.24} parent=57 // pred_check
            _
          $region60: #{custom-call.24} parent=57 // pred_check_branch
            %478 = sbr.rel (0) target = $region62
          $region61: #{custom-call.24} parent=57 // pred_region
            // Predicated region
            $region74: #{custom-call.24} parent=61 // pred_check
              _
            $region75: #{custom-call.24} parent=61 // pred_check_branch
              %498 = sbr.rel (0) target = $region77
            $region76: #{custom-call.24} parent=61 // pred_region
              loop: start=0, step=1, limit=1
              $region78: #{custom-call.24} parent=76 // loop_pre_header
                _
              $region79: #{custom-call.24} parent=76 // loop_header
                %s500 = sphi 0, %s504
                %p501 = scmp.ge.s32.totalorder %s500, 1
                %s505 = sphi %s467, %s467
                %s506 = sphi %s474, %s474
              $region80: #{custom-call.24} parent=76 // loop_header_branch
                %503 = sbr.rel (%p501) target = $region84
              $region81: #{custom-call.24} parent=76 // loop_body
                %v507 = vld [vmem:[%s505] sm:$0xff]
                %508 = vst [vmem:[%s506] sm:$0xff] %v507
                %v509 = vld [vmem:[%s505 + $0x8] sm:$0xff]
                %510 = vst [vmem:[%s506 + $0x8] sm:$0xff] %v509
                %v511 = vld [vmem:[%s505 + $0x10] sm:$0xff]
                %512 = vst [vmem:[%s506 + $0x10] sm:$0xff] %v511
              $region82: #{custom-call.24} parent=76 // loop_footer
                %s504 = sadd.s32 1, %s500
              $region83: #{custom-call.24} parent=76 // loop_footer_branch
                %499 = sbr.rel target = $region79
              $region84: #{custom-call.24} parent=76 // loop_exit
                _
            $region77: #{custom-call.24} parent=61 // pred_fallthru
              _
            // Predicated region
            $region85: #{custom-call.24} parent=61 // pred_check
              _
            $region86: #{custom-call.24} parent=61 // pred_check_branch
              %514 = sbr.rel target = $region88
            $region87: #{custom-call.24} parent=61 // pred_region
              _
            $region88: #{custom-call.24} parent=61 // pred_fallthru
              _
          $region62: #{custom-call.24} parent=57 // pred_fallthru
            _
          // Predicated region
          $region63: #{custom-call.24} parent=57 // pred_check
            _
          $region64: #{custom-call.24} parent=57 // pred_check_branch
            %480 = sbr.rel target = $region66
          $region65: #{custom-call.24} parent=57 // pred_region
            %s482 = ssub.s32 256, 1
            loop: start=0, step=1, limit=1
            $region67: #{custom-call.24} parent=65 // loop_pre_header
              _
            $region68: #{custom-call.24} parent=65 // loop_header
              %s484 = sphi 0, %s488
              %p485 = scmp.ge.s32.totalorder %s484, 1
              %s489 = sphi %s467, %s467
              %s490 = sphi %s474, %s474
            $region69: #{custom-call.24} parent=65 // loop_header_branch
              %487 = sbr.rel (%p485) target = $region73
            $region70: #{custom-call.24} parent=65 // loop_body
              %v491 = vld [vmem:[%s489] sm:%s482]
              %492 = vst [vmem:[%s490] sm:%s482] %v491
              %v493 = vld [vmem:[%s489 + $0x8] sm:%s482]
              %494 = vst [vmem:[%s490 + $0x8] sm:%s482] %v493
              %v495 = vld [vmem:[%s489 + $0x10] sm:%s482]
              %496 = vst [vmem:[%s490 + $0x10] sm:%s482] %v495
            $region71: #{custom-call.24} parent=65 // loop_footer
              %s488 = sadd.s32 1, %s484
            $region72: #{custom-call.24} parent=65 // loop_footer_branch
              %483 = sbr.rel target = $region68
            $region73: #{custom-call.24} parent=65 // loop_exit
              _
          $region66: #{custom-call.24} parent=57 // pred_fallthru
            _
        $region58: #{custom-call.24} parent=53 // pred_fallthru
          _
        %515 = vnop
      $region54: #{custom-call.24} parent=5 // pred_fallthru
        _
      %p516 = scmp.le.s32.totalorder 2, %s3
      // Predicated region
      $region89: #{custom-call.24} parent=5 // pred_check
        %p517 = pneg %p516
      $region90: #{custom-call.24} parent=5 // pred_check_branch
        %519 = sbr.rel (%p517) target = $region92
      $region91: #{custom-call.24} parent=5 // pred_region
        %s520 = ssub.s32 %s3, 2
        %s521 = sand.u32 %s9, 1
        %s522 = sand.u32 %s9, 1
        %s523 = smul.addr %s522, 24
        %s524 = scalar_lea.vmem [#allocation1], %s523
      $region92: #{custom-call.24} parent=5 // pred_fallthru
        _
    $region6: #{custom-call.24} parent=1 // loop_footer
      %s7 = sadd.s32 1, %s3
    $region7: #{custom-call.24} parent=1 // loop_footer_branch
      %2 = sbr.rel target = $region3
    $region8: #{custom-call.24} parent=1 // loop_exit
      _

// kernel: whitened_kmeans_loss.1
$region0: #{whitened_kmeans_loss.1}
  #allocation0 [shape = 'u32[]', space=smem, size = 0x4, offset = 0x4, fixed_abs, tag = 'smem constant byte address 0x4 - core index']
  #allocation1 [shape = 'u32[144,128]{1,0:T(1,128)}', space=vmem, size = 0x12000, scoped, tag = 'internal scratch']
  %s0 = inlined_call_operand.vmem [shape: f32[2,128,20], index: 0, kind: input, shape index: {}]
  %s1 = inlined_call_operand.vmem [shape: f32[2,128,4], index: 1, kind: input, shape index: {}]
  %s2 = inlined_call_operand.vmem [shape: f32[2,128,1], index: 2, kind: input, shape index: {}]
  %s3 = inlined_call_operand.vmem [shape: f32[2,24,24], index: 3, kind: output, shape index: {}]
  %s4 = sld [smem:[#allocation0]]
  $region49: #{whitened_kmeans_loss.1} parent=0
    _
  %s6 = ssub.s32 1, %s4
  %s7 = scalar_select 0, %s6, %s4
  loop: start=0, step=1, limit=4
  $region2: #{whitened_kmeans_loss.1} parent=0 // loop_pre_header
    _
  $region3: #{whitened_kmeans_loss.1} parent=0 // loop_header
    %s9 = sphi 0, %s13
    %p10 = scmp.ge.s32.totalorder %s9, 4
    %s16 = sphi 0, %s28
    %s17 = sphi 0, %s24
    %s18 = sphi 0, %s16
    %s19 = sphi 0, %s17
    %s20 = sphi 0, %s18
    %s21 = sphi 0, %s19
    %s33 = sphi 0, %s35
    %s36 = sphi 0, %s33
    %s37 = sphi 0, %s36
    %s53 = sphi 0, %s37
    %s61 = sphi 0, %s63
    %s64 = sphi 0, %s61
    %s65 = sphi 0, %s64
    %s81 = sphi 0, %s65
    %s89 = sphi 0, %s91
    %s92 = sphi 0, %s89
    %s93 = sphi 0, %s92
    %s109 = sphi 0, %s93
    %s115 = sphi 0, %s117
    %s118 = sphi 0, %s115
    %s119 = sphi 0, %s118
    %s135 = sphi 0, %s119
  $region4: #{whitened_kmeans_loss.1} parent=0 // loop_header_branch
    %12 = sbr.rel (%p10) target = $region8
  $region5: #{whitened_kmeans_loss.1} parent=0 // loop_body
    %s14 = ssub.s32 %s9, 1
    %s15 = ssub.s32 %s9, 2
    %s22 = sadd.s32 1, %s17
    %p23 = scmp.ge.s32.totalorder %s22, 1
    %s24 = scalar_select %p23, 0, %s22
    %s25 = sadd.s32 1, %s16
    %s26 = scalar_select %p23, %s25, %s16
    %p27 = scmp.ge.s32.totalorder %s26, 2
    %s28 = scalar_select %p27, 0, %s26
    %s29 = ssub.s32 %s16, %s28
    %s30 = ssub.s32 %s17, %s24
    %s31 = sor.u32 %s29, %s30
    %p32 = scmp.eq.s32.totalorder %s31, 0
    %s34 = sadd.s32 %s33, 1
    %s35 = scalar_select %p32, %s33, %s34
    %p38 = pneg %p32
    %p39 = scmp.eq.s32.totalorder %s9, 1
    %p40 = por %p38, %p39
    %p41 = scmp.ne.s32.totalorder %s33, %s36
    %p42 = scmp.eq.s32.totalorder %s9, 0
    %p43 = por %p41, %p42
    %p44 = scmp.ne.s32.totalorder %s33, %s36
    %p45 = scmp.eq.s32.totalorder %s14, 1
    %p46 = por %p44, %p45
    %p47 = scmp.ne.s32.totalorder %s36, %s37
    %p48 = scmp.eq.s32.totalorder %s14, 0
    %p49 = por %p47, %p48
    %p50 = scmp.ne.s32.totalorder %s36, %s37
    %p51 = scmp.eq.s32.totalorder %s15, 1
    %p52 = por %p50, %p51
    %p54 = scmp.ne.s32.totalorder %s37, %s53
    %p55 = scmp.eq.s32.totalorder %s15, 0
    %p56 = por %p54, %p55
    %s57 = ssub.s32 %s16, %s28
    %s58 = ssub.s32 %s17, %s24
    %s59 = sor.u32 %s57, %s58
    %p60 = scmp.eq.s32.totalorder %s59, 0
    %s62 = sadd.s32 %s61, 1
    %s63 = scalar_select %p60, %s61, %s62
    %p66 = pneg %p60
    %p67 = scmp.eq.s32.totalorder %s9, 1
    %p68 = por %p66, %p67
    %p69 = scmp.ne.s32.totalorder %s61, %s64
    %p70 = scmp.eq.s32.totalorder %s9, 0
    %p71 = por %p69, %p70
    %p72 = scmp.ne.s32.totalorder %s61, %s64
    %p73 = scmp.eq.s32.totalorder %s14, 1
    %p74 = por %p72, %p73
    %p75 = scmp.ne.s32.totalorder %s64, %s65
    %p76 = scmp.eq.s32.totalorder %s14, 0
    %p77 = por %p75, %p76
    %p78 = scmp.ne.s32.totalorder %s64, %s65
    %p79 = scmp.eq.s32.totalorder %s15, 1
    %p80 = por %p78, %p79
    %p82 = scmp.ne.s32.totalorder %s65, %s81
    %p83 = scmp.eq.s32.totalorder %s15, 0
    %p84 = por %p82, %p83
    %s85 = ssub.s32 %s16, %s28
    %s86 = ssub.s32 %s17, %s24
    %s87 = sor.u32 %s85, %s86
    %p88 = scmp.eq.s32.totalorder %s87, 0
    %s90 = sadd.s32 %s89, 1
    %s91 = scalar_select %p88, %s89, %s90
    %p94 = pneg %p88
    %p95 = scmp.eq.s32.totalorder %s9, 1
    %p96 = por %p94, %p95
    %p97 = scmp.ne.s32.totalorder %s89, %s92
    %p98 = scmp.eq.s32.totalorder %s9, 0
    %p99 = por %p97, %p98
    %p100 = scmp.ne.s32.totalorder %s89, %s92
    %p101 = scmp.eq.s32.totalorder %s14, 1
    %p102 = por %p100, %p101
    %p103 = scmp.ne.s32.totalorder %s92, %s93
    %p104 = scmp.eq.s32.totalorder %s14, 0
    %p105 = por %p103, %p104
    %p106 = scmp.ne.s32.totalorder %s92, %s93
    %p107 = scmp.eq.s32.totalorder %s15, 1
    %p108 = por %p106, %p107
    %p110 = scmp.ne.s32.totalorder %s93, %s109
    %p111 = scmp.eq.s32.totalorder %s15, 0
    %p112 = por %p110, %p111
    %s113 = ssub.s32 %s16, %s28
    %p114 = scmp.eq.s32.totalorder %s113, 0
    %s116 = sadd.s32 %s115, 1
    %s117 = scalar_select %p114, %s115, %s116
    %p120 = pneg %p114
    %p121 = scmp.eq.s32.totalorder %s9, 1
    %p122 = por %p120, %p121
    %p123 = scmp.ne.s32.totalorder %s115, %s118
    %p124 = scmp.eq.s32.totalorder %s9, 0
    %p125 = por %p123, %p124
    %p126 = scmp.ne.s32.totalorder %s115, %s118
    %p127 = scmp.eq.s32.totalorder %s14, 1
    %p128 = por %p126, %p127
    %p129 = scmp.ne.s32.totalorder %s118, %s119
    %p130 = scmp.eq.s32.totalorder %s14, 0
    %p131 = por %p129, %p130
    %p132 = scmp.ne.s32.totalorder %s118, %s119
    %p133 = scmp.eq.s32.totalorder %s15, 1
    %p134 = por %p132, %p133
    %p136 = scmp.ne.s32.totalorder %s119, %s135
    %p137 = scmp.eq.s32.totalorder %s15, 0
    %p138 = por %p136, %p137
    %p139 = scmp.le.s32.totalorder 1, %s9
    %p140 = scmp.lt.s32.totalorder %s9, 3
    %p141 = pnand %p139, %p140
    %p142 = pneg %p141
    // Predicated region
    $region9: #{whitened_kmeans_loss.1} parent=5 // pred_check
      _
    $region10: #{whitened_kmeans_loss.1} parent=5 // pred_check_branch
      %144 = sbr.rel (%p141) target = $region12
    $region11: #{whitened_kmeans_loss.1} parent=5 // pred_region
      %s145 = ssub.s32 %s9, 1
    $region12: #{whitened_kmeans_loss.1} parent=5 // pred_fallthru
      _
    %p146 = scmp.lt.s32.totalorder %s9, 2
    // Predicated region
    $region13: #{whitened_kmeans_loss.1} parent=5 // pred_check
      %p147 = pneg %p146
    $region14: #{whitened_kmeans_loss.1} parent=5 // pred_check_branch
      %149 = sbr.rel (%p147) target = $region16
    $region15: #{whitened_kmeans_loss.1} parent=5 // pred_region
      // Predicated region
      $region17: #{whitened_kmeans_loss.1} parent=15 // pred_check
        %p150 = pneg %p43
      $region18: #{whitened_kmeans_loss.1} parent=15 // pred_check_branch
        %152 = sbr.rel (%p150) target = $region20
      $region19: #{whitened_kmeans_loss.1} parent=15 // pred_region
        %s153 = smul.u32 16, %s17
        %p154 = scmp.lt.s32.totalorder %s16, 1
        %s155 = scalar_select %p154, %s16, 1
        %p156 = scmp.lt.s32.totalorder %s153, 15
        %s157 = scalar_select %p156, %s153, 15
        %s158 = smul.addr %s155, 16
        %s159 = sadd.s32 %s157, %s158
        %s160 = smul.addr %s159, 8
        %s161 = scalar_lea.vmem %s0, %s160
        %s162 = smul.u32 16, %s17
      $region20: #{whitened_kmeans_loss.1} parent=15 // pred_fallthru
        _
      // Predicated region
      $region21: #{whitened_kmeans_loss.1} parent=15 // pred_check
        %p163 = pneg %p71
      $region22: #{whitened_kmeans_loss.1} parent=15 // pred_check_branch
        %165 = sbr.rel (%p163) target = $region24
      $region23: #{whitened_kmeans_loss.1} parent=15 // pred_region
        %s166 = smul.u32 16, %s17
        %p167 = scmp.lt.s32.totalorder %s16, 1
        %s168 = scalar_select %p167, %s16, 1
        %p169 = scmp.lt.s32.totalorder %s166, 15
        %s170 = scalar_select %p169, %s166, 15
        %s171 = smul.addr %s168, 16
        %s172 = sadd.s32 %s170, %s171
        %s173 = smul.addr %s172, 8
        %s174 = scalar_lea.vmem %s1, %s173
        %s175 = smul.u32 16, %s17
      $region24: #{whitened_kmeans_loss.1} parent=15 // pred_fallthru
        _
      // Predicated region
      $region25: #{whitened_kmeans_loss.1} parent=15 // pred_check
        %p176 = pneg %p99
      $region26: #{whitened_kmeans_loss.1} parent=15 // pred_check_branch
        %178 = sbr.rel (%p176) target = $region28
      $region27: #{whitened_kmeans_loss.1} parent=15 // pred_region
        %s179 = smul.u32 16, %s17
        %p180 = scmp.lt.s32.totalorder %s16, 1
        %s181 = scalar_select %p180, %s16, 1
        %p182 = scmp.lt.s32.totalorder %s179, 15
        %s183 = scalar_select %p182, %s179, 15
        %s184 = smul.addr %s181, 16
        %s185 = sadd.s32 %s183, %s184
        %s186 = smul.addr %s185, 8
        %s187 = scalar_lea.vmem %s2, %s186
        %s188 = smul.u32 16, %s17
      $region28: #{whitened_kmeans_loss.1} parent=15 // pred_fallthru
        _
    $region16: #{whitened_kmeans_loss.1} parent=5 // pred_fallthru
      _
    %p189 = scmp.le.s32.totalorder 1, %s9
    %p190 = scmp.lt.s32.totalorder %s9, 3
    %p191 = pnand %p189, %p190
    %p192 = pneg %p191
    // Predicated region
    $region29: #{whitened_kmeans_loss.1} parent=5 // pred_check
      _
    $region30: #{whitened_kmeans_loss.1} parent=5 // pred_check_branch
      %194 = sbr.rel (%p191) target = $region32
    $region31: #{whitened_kmeans_loss.1} parent=5 // pred_region
      %s195 = ssub.s32 %s9, 1
      %s196 = smul.u32 16, %s19
      %p197 = scmp.lt.s32.totalorder %s18, 1
      %s198 = scalar_select %p197, %s18, 1
      %p199 = scmp.lt.s32.totalorder %s196, 15
      %s200 = scalar_select %p199, %s196, 15
      %s201 = smul.addr %s198, 16
      %s202 = sadd.s32 %s200, %s201
      %s203 = smul.addr %s202, 8
      %s204 = scalar_lea.vmem %s0, %s203
      %p205 = pneg %p49
      %p206 = pneg %p46
      %s207 = smul.u32 16, %s19
      %p208 = scmp.lt.s32.totalorder %s18, 1
      %s209 = scalar_select %p208, %s18, 1
      %p210 = scmp.lt.s32.totalorder %s207, 15
      %s211 = scalar_select %p210, %s207, 15
      %s212 = smul.addr %s209, 16
      %s213 = sadd.s32 %s211, %s212
      %s214 = smul.addr %s213, 8
      %s215 = scalar_lea.vmem %s1, %s214
      %p216 = pneg %p77
      %p217 = pneg %p74
      %s218 = smul.u32 16, %s19
      %p219 = scmp.lt.s32.totalorder %s18, 1
      %s220 = scalar_select %p219, %s18, 1
      %p221 = scmp.lt.s32.totalorder %s218, 15
      %s222 = scalar_select %p221, %s218, 15
      %s223 = smul.addr %s220, 16
      %s224 = sadd.s32 %s222, %s223
      %s225 = smul.addr %s224, 8
      %s226 = scalar_lea.vmem %s2, %s225
      %p227 = pneg %p105
      %p228 = pneg %p102
      %p229 = pneg %p131
      %p230 = pneg %p128
      %p231 = scmp.lt.s32.totalorder %s18, 1
      %s232 = scalar_select %p231, %s18, 1
      %s233 = smul.addr %s232, 3
      %s234 = smul.addr %s233, 8
      %s235 = scalar_lea.vmem %s3, %s234
      %s236 = smul.u32 16, %s19
      %p237 = scmp.lt.s32.totalorder %s18, 1
      %s238 = scalar_select %p237, %s18, 1
      %p239 = scmp.lt.s32.totalorder %s236, 15
      %s240 = scalar_select %p239, %s236, 15
      %s241 = smul.addr %s238, 16
      %s242 = sadd.s32 %s240, %s241
      %s243 = smul.addr %s242, 8
      %s244 = scalar_lea.vmem %s0, %s243
      %s245 = smul.u32 16, %s19
      %s246 = smul.u32 16, %s19
      %p247 = scmp.lt.s32.totalorder %s18, 1
      %s248 = scalar_select %p247, %s18, 1
      %p249 = scmp.lt.s32.totalorder %s246, 15
      %s250 = scalar_select %p249, %s246, 15
      %s251 = smul.addr %s248, 16
      %s252 = sadd.s32 %s250, %s251
      %s253 = smul.addr %s252, 8
      %s254 = scalar_lea.vmem %s1, %s253
      %s255 = smul.u32 16, %s19
      %s256 = smul.u32 16, %s19
      %p257 = scmp.lt.s32.totalorder %s18, 1
      %s258 = scalar_select %p257, %s18, 1
      %p259 = scmp.lt.s32.totalorder %s256, 15
      %s260 = scalar_select %p259, %s256, 15
      %s261 = smul.addr %s258, 16
      %s262 = sadd.s32 %s260, %s261
      %s263 = smul.addr %s262, 8
      %s264 = scalar_lea.vmem %s2, %s263
      %s265 = smul.u32 16, %s19
      %p266 = scmp.lt.s32.totalorder %s18, 1
      %s267 = scalar_select %p266, %s18, 1
      %s268 = smul.addr %s267, 3
      %s269 = smul.addr %s268, 8
      %s270 = scalar_lea.vmem %s3, %s269
      %p272 = scmp.eq.s32.totalorder %s19, 0
      // Predicated region
      $region33: #{whitened_kmeans_loss.1} parent=31 // pred_check
        %p273 = pneg %p272
      $region34: #{whitened_kmeans_loss.1} parent=31 // pred_check_branch
        %275 = sbr.rel (%p273) target = $region36
      $region35: #{whitened_kmeans_loss.1} parent=31 // pred_region
        %vm276 = vcmask 195584
        %277 = vst.msk [vmem:[%s270] sm:$0xff] %vm276, 0.0
        %278 = vst.msk [vmem:[%s270 + $0x8] sm:$0xff] %vm276, 0.0
        %279 = vst.msk [vmem:[%s270 + $0x10] sm:$0xff] %vm276, 0.0
      $region36: #{whitened_kmeans_loss.1} parent=31 // pred_fallthru
        _
      %v280 = vld [vmem:[%s244] sm:$0xff]
      %v281 = vld [vmem:[%s244 + $0x8] sm:$0xff]
      %v282 = vld [vmem:[%s244 + $0x10] sm:$0xff]
      %v283 = vld [vmem:[%s244 + $0x18] sm:$0xff]
      %v284 = vld [vmem:[%s244 + $0x20] sm:$0xff]
      %v285 = vld [vmem:[%s244 + $0x28] sm:$0xff]
      %v286 = vld [vmem:[%s244 + $0x30] sm:$0xff]
      %v287 = vld [vmem:[%s244 + $0x38] sm:$0xff]
      %v288 = vld [vmem:[%s244 + $0x40] sm:$0xff]
      %v289 = vld [vmem:[%s244 + $0x48] sm:$0xff]
      %v290 = vld [vmem:[%s244 + $0x50] sm:$0xff]
      %v291 = vld [vmem:[%s244 + $0x58] sm:$0xff]
      %v292 = vld [vmem:[%s244 + $0x60] sm:$0xff]
      %v293 = vld [vmem:[%s244 + $0x68] sm:$0xff]
      %v294 = vld [vmem:[%s244 + $0x70] sm:$0xff]
      %v295 = vld [vmem:[%s244 + $0x78] sm:$0xff]
      %v296 = vld [vmem:[%s254] sm:$0xff]
      %v297 = vld [vmem:[%s254 + $0x8] sm:$0xff]
      %v298 = vld [vmem:[%s254 + $0x10] sm:$0xff]
      %v299 = vld [vmem:[%s254 + $0x18] sm:$0xff]
      %v300 = vld [vmem:[%s254 + $0x20] sm:$0xff]
      %v301 = vld [vmem:[%s254 + $0x28] sm:$0xff]
      %v302 = vld [vmem:[%s254 + $0x30] sm:$0xff]
      %v303 = vld [vmem:[%s254 + $0x38] sm:$0xff]
      %v304 = vld [vmem:[%s254 + $0x40] sm:$0xff]
      %v305 = vld [vmem:[%s254 + $0x48] sm:$0xff]
      %v306 = vld [vmem:[%s254 + $0x50] sm:$0xff]
      %v307 = vld [vmem:[%s254 + $0x58] sm:$0xff]
      %v308 = vld [vmem:[%s254 + $0x60] sm:$0xff]
      %v309 = vld [vmem:[%s254 + $0x68] sm:$0xff]
      %v310 = vld [vmem:[%s254 + $0x70] sm:$0xff]
      %v311 = vld [vmem:[%s254 + $0x78] sm:$0xff]
      %v312 = vld [vmem:[%s264] sm:$0xff]
      %v313 = vld [vmem:[%s264 + $0x8] sm:$0xff]
      %v314 = vld [vmem:[%s264 + $0x10] sm:$0xff]
      %v315 = vld [vmem:[%s264 + $0x18] sm:$0xff]
      %v316 = vld [vmem:[%s264 + $0x20] sm:$0xff]
      %v317 = vld [vmem:[%s264 + $0x28] sm:$0xff]
      %v318 = vld [vmem:[%s264 + $0x30] sm:$0xff]
      %v319 = vld [vmem:[%s264 + $0x38] sm:$0xff]
      %v320 = vld [vmem:[%s264 + $0x40] sm:$0xff]
      %v321 = vld [vmem:[%s264 + $0x48] sm:$0xff]
      %v322 = vld [vmem:[%s264 + $0x50] sm:$0xff]
      %v323 = vld [vmem:[%s264 + $0x58] sm:$0xff]
      %v324 = vld [vmem:[%s264 + $0x60] sm:$0xff]
      %v325 = vld [vmem:[%s264 + $0x68] sm:$0xff]
      %v326 = vld [vmem:[%s264 + $0x70] sm:$0xff]
      %v327 = vld [vmem:[%s264 + $0x78] sm:$0xff]
      %v328 = vmul.f32 %v280, %v280
      %v329 = vmul.f32 %v281, %v281
      %v330 = vmul.f32 %v282, %v282
      %v331 = vmul.f32 %v283, %v283
      %v332 = vmul.f32 %v284, %v284
      %v333 = vmul.f32 %v285, %v285
      %v334 = vmul.f32 %v286, %v286
      %v335 = vmul.f32 %v287, %v287
      %v336 = vmul.f32 %v288, %v288
      %v337 = vmul.f32 %v289, %v289
      %v338 = vmul.f32 %v290, %v290
      %v339 = vmul.f32 %v291, %v291
      %v340 = vmul.f32 %v292, %v292
      %v341 = vmul.f32 %v293, %v293
      %v342 = vmul.f32 %v294, %v294
      %v343 = vmul.f32 %v295, %v295
      %vm344 = vcmask 162816
      %v345 = vsel %vm344, %v328, 0.0
      %346 = vadd.xlane.f32.xlu0 %v345
      %v347 = vpop.xlane.xlu0 %346
      %v348 = vsel %vm344, %v329, 0.0
      %349 = vadd.xlane.f32.xlu0 %v348
      %v350 = vpop.xlane.xlu0 %349
      %v351 = vsel %vm344, %v330, 0.0
      %352 = vadd.xlane.f32.xlu0 %v351
      %v353 = vpop.xlane.xlu0 %352
      %v354 = vsel %vm344, %v331, 0.0
      %355 = vadd.xlane.f32.xlu0 %v354
      %v356 = vpop.xlane.xlu0 %355
      %v357 = vsel %vm344, %v332, 0.0
      %358 = vadd.xlane.f32.xlu0 %v357
      %v359 = vpop.xlane.xlu0 %358
      %v360 = vsel %vm344, %v333, 0.0
      %361 = vadd.xlane.f32.xlu0 %v360
      %v362 = vpop.xlane.xlu0 %361
      %v363 = vsel %vm344, %v334, 0.0
      %364 = vadd.xlane.f32.xlu0 %v363
      %v365 = vpop.xlane.xlu0 %364
      %v366 = vsel %vm344, %v335, 0.0
      %367 = vadd.xlane.f32.xlu0 %v366
      %v368 = vpop.xlane.xlu0 %367
      %v369 = vsel %vm344, %v336, 0.0
      %370 = vadd.xlane.f32.xlu0 %v369
      %v371 = vpop.xlane.xlu0 %370
      %v372 = vsel %vm344, %v337, 0.0
      %373 = vadd.xlane.f32.xlu0 %v372
      %v374 = vpop.xlane.xlu0 %373
      %v375 = vsel %vm344, %v338, 0.0
      %376 = vadd.xlane.f32.xlu0 %v375
      %v377 = vpop.xlane.xlu0 %376
      %v378 = vsel %vm344, %v339, 0.0
      %379 = vadd.xlane.f32.xlu0 %v378
      %v380 = vpop.xlane.xlu0 %379
      %v381 = vsel %vm344, %v340, 0.0
      %382 = vadd.xlane.f32.xlu0 %v381
      %v383 = vpop.xlane.xlu0 %382
      %v384 = vsel %vm344, %v341, 0.0
      %385 = vadd.xlane.f32.xlu0 %v384
      %v386 = vpop.xlane.xlu0 %385
      %v387 = vsel %vm344, %v342, 0.0
      %388 = vadd.xlane.f32.xlu0 %v387
      %v389 = vpop.xlane.xlu0 %388
      %v390 = vsel %vm344, %v343, 0.0
      %391 = vadd.xlane.f32.xlu0 %v390
      %v392 = vpop.xlane.xlu0 %391
      %v393 = vmax.f32 %v347, 1e-24
      %v394 = vmax.f32 %v350, 1e-24
      %v395 = vmax.f32 %v353, 1e-24
      %v396 = vmax.f32 %v356, 1e-24
      %v397 = vmax.f32 %v359, 1e-24
      %v398 = vmax.f32 %v362, 1e-24
      %v399 = vmax.f32 %v365, 1e-24
      %v400 = vmax.f32 %v368, 1e-24
      %v401 = vmax.f32 %v371, 1e-24
      %v402 = vmax.f32 %v374, 1e-24
      %v403 = vmax.f32 %v377, 1e-24
      %v404 = vmax.f32 %v380, 1e-24
      %v405 = vmax.f32 %v383, 1e-24
      %v406 = vmax.f32 %v386, 1e-24
      %v407 = vmax.f32 %v389, 1e-24
      %v408 = vmax.f32 %v392, 1e-24
      %v409 = vrsqrt.pop %v393
      %v410 = vrsqrt.pop %v394
      %v411 = vrsqrt.pop %v395
      %v412 = vrsqrt.pop %v396
      %v413 = vrsqrt.pop %v397
      %v414 = vrsqrt.pop %v398
      %v415 = vrsqrt.pop %v399
      %v416 = vrsqrt.pop %v400
      %v417 = vrsqrt.pop %v401
      %v418 = vrsqrt.pop %v402
      %v419 = vrsqrt.pop %v403
      %v420 = vrsqrt.pop %v404
      %v421 = vrsqrt.pop %v405
      %v422 = vrsqrt.pop %v406
      %v423 = vrsqrt.pop %v407
      %v424 = vrsqrt.pop %v408
      %v425 = vmul.f32 %v312, %v409
      %v426 = vmul.f32 %v313, %v410
      %v427 = vmul.f32 %v314, %v411
      %v428 = vmul.f32 %v315, %v412
      %v429 = vmul.f32 %v316, %v413
      %v430 = vmul.f32 %v317, %v414
      %v431 = vmul.f32 %v318, %v415
      %v432 = vmul.f32 %v319, %v416
      %v433 = vmul.f32 %v320, %v417
      %v434 = vmul.f32 %v321, %v418
      %v435 = vmul.f32 %v322, %v419
      %v436 = vmul.f32 %v323, %v420
      %v437 = vmul.f32 %v324, %v421
      %v438 = vmul.f32 %v325, %v422
      %v439 = vmul.f32 %v326, %v423
      %v440 = vmul.f32 %v327, %v424
      %v441 = vmul.f32 %v296, %v296
      %v442 = vmul.f32 %v297, %v297
      %v443 = vmul.f32 %v298, %v298
      %v444 = vmul.f32 %v299, %v299
      %v445 = vmul.f32 %v300, %v300
      %v446 = vmul.f32 %v301, %v301
      %v447 = vmul.f32 %v302, %v302
      %v448 = vmul.f32 %v303, %v303
      %v449 = vmul.f32 %v304, %v304
      %v450 = vmul.f32 %v305, %v305
      %v451 = vmul.f32 %v306, %v306
      %v452 = vmul.f32 %v307, %v307
      %v453 = vmul.f32 %v308, %v308
      %v454 = vmul.f32 %v309, %v309
      %v455 = vmul.f32 %v310, %v310
      %v456 = vmul.f32 %v311, %v311
      %vm457 = vcmask 31744
      %v458 = vsel %vm457, %v441, 0.0
      %459 = vadd.xlane.f32.xlu0 %v458
      %v460 = vpop.xlane.xlu0 %459
      %v461 = vsel %vm457, %v442, 0.0
      %462 = vadd.xlane.f32.xlu0 %v461
      %v463 = vpop.xlane.xlu0 %462
      %v464 = vsel %vm457, %v443, 0.0
      %465 = vadd.xlane.f32.xlu0 %v464
      %v466 = vpop.xlane.xlu0 %465
      %v467 = vsel %vm457, %v444, 0.0
      %468 = vadd.xlane.f32.xlu0 %v467
      %v469 = vpop.xlane.xlu0 %468
      %v470 = vsel %vm457, %v445, 0.0
      %471 = vadd.xlane.f32.xlu0 %v470
      %v472 = vpop.xlane.xlu0 %471
      %v473 = vsel %vm457, %v446, 0.0
      %474 = vadd.xlane.f32.xlu0 %v473
      %v475 = vpop.xlane.xlu0 %474
      %v476 = vsel %vm457, %v447, 0.0
      %477 = vadd.xlane.f32.xlu0 %v476
      %v478 = vpop.xlane.xlu0 %477
      %v479 = vsel %vm457, %v448, 0.0
      %480 = vadd.xlane.f32.xlu0 %v479
      %v481 = vpop.xlane.xlu0 %480
      %v482 = vsel %vm457, %v449, 0.0
      %483 = vadd.xlane.f32.xlu0 %v482
      %v484 = vpop.xlane.xlu0 %483
      %v485 = vsel %vm457, %v450, 0.0
      %486 = vadd.xlane.f32.xlu0 %v485
      %v487 = vpop.xlane.xlu0 %486
      %v488 = vsel %vm457, %v451, 0.0
      %489 = vadd.xlane.f32.xlu0 %v488
      %v490 = vpop.xlane.xlu0 %489
      %v491 = vsel %vm457, %v452, 0.0
      %492 = vadd.xlane.f32.xlu0 %v491
      %v493 = vpop.xlane.xlu0 %492
      %v494 = vsel %vm457, %v453, 0.0
      %495 = vadd.xlane.f32.xlu0 %v494
      %v496 = vpop.xlane.xlu0 %495
      %v497 = vsel %vm457, %v454, 0.0
      %498 = vadd.xlane.f32.xlu0 %v497
      %v499 = vpop.xlane.xlu0 %498
      %v500 = vsel %vm457, %v455, 0.0
      %501 = vadd.xlane.f32.xlu0 %v500
      %v502 = vpop.xlane.xlu0 %501
      %v503 = vsel %vm457, %v456, 0.0
      %504 = vadd.xlane.f32.xlu0 %v503
      %v505 = vpop.xlane.xlu0 %504
      %v506 = vmax.f32 %v460, 1e-24
      %v507 = vmax.f32 %v463, 1e-24
      %v508 = vmax.f32 %v466, 1e-24
      %v509 = vmax.f32 %v469, 1e-24
      %v510 = vmax.f32 %v472, 1e-24
      %v511 = vmax.f32 %v475, 1e-24
      %v512 = vmax.f32 %v478, 1e-24
      %v513 = vmax.f32 %v481, 1e-24
      %v514 = vmax.f32 %v484, 1e-24
      %v515 = vmax.f32 %v487, 1e-24
      %v516 = vmax.f32 %v490, 1e-24
      %v517 = vmax.f32 %v493, 1e-24
      %v518 = vmax.f32 %v496, 1e-24
      %v519 = vmax.f32 %v499, 1e-24
      %v520 = vmax.f32 %v502, 1e-24
      %v521 = vmax.f32 %v505, 1e-24
      %v522 = vrsqrt.pop %v506
      %v523 = vrsqrt.pop %v507
      %v524 = vrsqrt.pop %v508
      %v525 = vrsqrt.pop %v509
      %v526 = vrsqrt.pop %v510
      %v527 = vrsqrt.pop %v511
      %v528 = vrsqrt.pop %v512
      %v529 = vrsqrt.pop %v513
      %v530 = vrsqrt.pop %v514
      %v531 = vrsqrt.pop %v515
      %v532 = vrsqrt.pop %v516
      %v533 = vrsqrt.pop %v517
      %v534 = vrsqrt.pop %v518
      %v535 = vrsqrt.pop %v519
      %v536 = vrsqrt.pop %v520
      %v537 = vrsqrt.pop %v521
      %v538 = vmul.f32 %v312, %v522
      %v539 = vmul.f32 %v313, %v523
      %v540 = vmul.f32 %v314, %v524
      %v541 = vmul.f32 %v315, %v525
      %v542 = vmul.f32 %v316, %v526
      %v543 = vmul.f32 %v317, %v527
      %v544 = vmul.f32 %v318, %v528
      %v545 = vmul.f32 %v319, %v529
      %v546 = vmul.f32 %v320, %v530
      %v547 = vmul.f32 %v321, %v531
      %v548 = vmul.f32 %v322, %v532
      %v549 = vmul.f32 %v323, %v533
      %v550 = vmul.f32 %v324, %v534
      %v551 = vmul.f32 %v325, %v535
      %v552 = vmul.f32 %v326, %v536
      %v553 = vmul.f32 %v327, %v537
      %555 = vset.pattern.permute.xlu0 0
      %556 = vperm.xlu0 %555, %v425
      %v557 = vpop.permute.xlu0 %556
      %560 = vset.pattern.permute.xlu0 0
      %561 = vperm.xlu0 %560, %v426
      %v562 = vpop.permute.xlu0 %561
      %565 = vset.pattern.permute.xlu0 0
      %566 = vperm.xlu0 %565, %v427
      %v567 = vpop.permute.xlu0 %566
      %570 = vset.pattern.permute.xlu0 0
      %571 = vperm.xlu0 %570, %v428
      %v572 = vpop.permute.xlu0 %571
      %575 = vset.pattern.permute.xlu0 0
      %576 = vperm.xlu0 %575, %v429
      %v577 = vpop.permute.xlu0 %576
      %580 = vset.pattern.permute.xlu0 0
      %581 = vperm.xlu0 %580, %v430
      %v582 = vpop.permute.xlu0 %581
      %585 = vset.pattern.permute.xlu0 0
      %586 = vperm.xlu0 %585, %v431
      %v587 = vpop.permute.xlu0 %586
      %590 = vset.pattern.permute.xlu0 0
      %591 = vperm.xlu0 %590, %v432
      %v592 = vpop.permute.xlu0 %591
      %595 = vset.pattern.permute.xlu0 0
      %596 = vperm.xlu0 %595, %v433
      %v597 = vpop.permute.xlu0 %596
      %600 = vset.pattern.permute.xlu0 0
      %601 = vperm.xlu0 %600, %v434
      %v602 = vpop.permute.xlu0 %601
      %605 = vset.pattern.permute.xlu0 0
      %606 = vperm.xlu0 %605, %v435
      %v607 = vpop.permute.xlu0 %606
      %610 = vset.pattern.permute.xlu0 0
      %611 = vperm.xlu0 %610, %v436
      %v612 = vpop.permute.xlu0 %611
      %615 = vset.pattern.permute.xlu0 0
      %616 = vperm.xlu0 %615, %v437
      %v617 = vpop.permute.xlu0 %616
      %620 = vset.pattern.permute.xlu0 0
      %621 = vperm.xlu0 %620, %v438
      %v622 = vpop.permute.xlu0 %621
      %625 = vset.pattern.permute.xlu0 0
      %626 = vperm.xlu0 %625, %v439
      %v627 = vpop.permute.xlu0 %626
      %630 = vset.pattern.permute.xlu0 0
      %631 = vperm.xlu0 %630, %v440
      %v632 = vpop.permute.xlu0 %631
      %v634 = vmul.f32 %v280, %v557
      %v635 = vmul.f32 %v281, %v562
      %v636 = vmul.f32 %v282, %v567
      %v637 = vmul.f32 %v283, %v572
      %v638 = vmul.f32 %v284, %v577
      %v639 = vmul.f32 %v285, %v582
      %v640 = vmul.f32 %v286, %v587
      %v641 = vmul.f32 %v287, %v592
      %v642 = vmul.f32 %v288, %v597
      %v643 = vmul.f32 %v289, %v602
      %v644 = vmul.f32 %v290, %v607
      %v645 = vmul.f32 %v291, %v612
      %v646 = vmul.f32 %v292, %v617
      %v647 = vmul.f32 %v293, %v622
      %v648 = vmul.f32 %v294, %v627
      %v649 = vmul.f32 %v295, %v632
      %651 = vset.pattern.permute.xlu0 0
      %652 = vperm.xlu0 %651, %v538
      %v653 = vpop.permute.xlu0 %652
      %656 = vset.pattern.permute.xlu0 0
      %657 = vperm.xlu0 %656, %v539
      %v658 = vpop.permute.xlu0 %657
      %661 = vset.pattern.permute.xlu0 0
      %662 = vperm.xlu0 %661, %v540
      %v663 = vpop.permute.xlu0 %662
      %666 = vset.pattern.permute.xlu0 0
      %667 = vperm.xlu0 %666, %v541
      %v668 = vpop.permute.xlu0 %667
      %671 = vset.pattern.permute.xlu0 0
      %672 = vperm.xlu0 %671, %v542
      %v673 = vpop.permute.xlu0 %672
      %676 = vset.pattern.permute.xlu0 0
      %677 = vperm.xlu0 %676, %v543
      %v678 = vpop.permute.xlu0 %677
      %681 = vset.pattern.permute.xlu0 0
      %682 = vperm.xlu0 %681, %v544
      %v683 = vpop.permute.xlu0 %682
      %686 = vset.pattern.permute.xlu0 0
      %687 = vperm.xlu0 %686, %v545
      %v688 = vpop.permute.xlu0 %687
      %691 = vset.pattern.permute.xlu0 0
      %692 = vperm.xlu0 %691, %v546
      %v693 = vpop.permute.xlu0 %692
      %696 = vset.pattern.permute.xlu0 0
      %697 = vperm.xlu0 %696, %v547
      %v698 = vpop.permute.xlu0 %697
      %701 = vset.pattern.permute.xlu0 0
      %702 = vperm.xlu0 %701, %v548
      %v703 = vpop.permute.xlu0 %702
      %706 = vset.pattern.permute.xlu0 0
      %707 = vperm.xlu0 %706, %v549
      %v708 = vpop.permute.xlu0 %707
      %711 = vset.pattern.permute.xlu0 0
      %712 = vperm.xlu0 %711, %v550
      %v713 = vpop.permute.xlu0 %712
      %716 = vset.pattern.permute.xlu0 0
      %717 = vperm.xlu0 %716, %v551
      %v718 = vpop.permute.xlu0 %717
      %721 = vset.pattern.permute.xlu0 0
      %722 = vperm.xlu0 %721, %v552
      %v723 = vpop.permute.xlu0 %722
      %726 = vset.pattern.permute.xlu0 0
      %727 = vperm.xlu0 %726, %v553
      %v728 = vpop.permute.xlu0 %727
      %v730 = vmul.f32 %v296, %v653
      %v731 = vmul.f32 %v297, %v658
      %v732 = vmul.f32 %v298, %v663
      %v733 = vmul.f32 %v299, %v668
      %v734 = vmul.f32 %v300, %v673
      %v735 = vmul.f32 %v301, %v678
      %v736 = vmul.f32 %v302, %v683
      %v737 = vmul.f32 %v303, %v688
      %v738 = vmul.f32 %v304, %v693
      %v739 = vmul.f32 %v305, %v698
      %v740 = vmul.f32 %v306, %v703
      %v741 = vmul.f32 %v307, %v708
      %v742 = vmul.f32 %v308, %v713
      %v743 = vmul.f32 %v309, %v718
      %v744 = vmul.f32 %v310, %v723
      %v745 = vmul.f32 %v311, %v728
      %762 = vrot.lane.b32.xlu0 %v730, 20
      %v763 = vpop.permute.xlu0 %762
      %764 = vrot.lane.b32.xlu0 %v731, 20
      %v765 = vpop.permute.xlu0 %764
      %766 = vrot.lane.b32.xlu0 %v732, 20
      %v767 = vpop.permute.xlu0 %766
      %768 = vrot.lane.b32.xlu0 %v733, 20
      %v769 = vpop.permute.xlu0 %768
      %770 = vrot.lane.b32.xlu0 %v734, 20
      %v771 = vpop.permute.xlu0 %770
      %772 = vrot.lane.b32.xlu0 %v735, 20
      %v773 = vpop.permute.xlu0 %772
      %774 = vrot.lane.b32.xlu0 %v736, 20
      %v775 = vpop.permute.xlu0 %774
      %776 = vrot.lane.b32.xlu0 %v737, 20
      %v777 = vpop.permute.xlu0 %776
      %778 = vrot.lane.b32.xlu0 %v738, 20
      %v779 = vpop.permute.xlu0 %778
      %780 = vrot.lane.b32.xlu0 %v739, 20
      %v781 = vpop.permute.xlu0 %780
      %782 = vrot.lane.b32.xlu0 %v740, 20
      %v783 = vpop.permute.xlu0 %782
      %784 = vrot.lane.b32.xlu0 %v741, 20
      %v785 = vpop.permute.xlu0 %784
      %786 = vrot.lane.b32.xlu0 %v742, 20
      %v787 = vpop.permute.xlu0 %786
      %788 = vrot.lane.b32.xlu0 %v743, 20
      %v789 = vpop.permute.xlu0 %788
      %790 = vrot.lane.b32.xlu0 %v744, 20
      %v791 = vpop.permute.xlu0 %790
      %792 = vrot.lane.b32.xlu0 %v745, 20
      %v793 = vpop.permute.xlu0 %792
      %v810 = vsel %vm344, %v634, %v763
      %v811 = vsel %vm344, %v635, %v765
      %v812 = vsel %vm344, %v636, %v767
      %v813 = vsel %vm344, %v637, %v769
      %v814 = vsel %vm344, %v638, %v771
      %v815 = vsel %vm344, %v639, %v773
      %v816 = vsel %vm344, %v640, %v775
      %v817 = vsel %vm344, %v641, %v777
      %v818 = vsel %vm344, %v642, %v779
      %v819 = vsel %vm344, %v643, %v781
      %v820 = vsel %vm344, %v644, %v783
      %v821 = vsel %vm344, %v645, %v785
      %v822 = vsel %vm344, %v646, %v787
      %v823 = vsel %vm344, %v647, %v789
      %v824 = vsel %vm344, %v648, %v791
      %v825 = vsel %vm344, %v649, %v793
      %v826 = vpack.c.bf16 %v811, %v810
      %v827 = vpack.c.bf16 %v813, %v812
      %v828 = vpack.c.bf16 %v815, %v814
      %v829 = vpack.c.bf16 %v817, %v816
      %v830 = vpack.c.bf16 %v819, %v818
      %v831 = vpack.c.bf16 %v821, %v820
      %v832 = vpack.c.bf16 %v823, %v822
      %v833 = vpack.c.bf16 %v825, %v824
      %v834 = vunpack.c.l.bf16 %v826
      %v835 = vunpack.c.h.bf16 %v826
      %v836 = vunpack.c.l.bf16 %v827
      %v837 = vunpack.c.h.bf16 %v827
      %v838 = vunpack.c.l.bf16 %v828
      %v839 = vunpack.c.h.bf16 %v828
      %v840 = vunpack.c.l.bf16 %v829
      %v841 = vunpack.c.h.bf16 %v829
      %v842 = vunpack.c.l.bf16 %v830
      %v843 = vunpack.c.h.bf16 %v830
      %v844 = vunpack.c.l.bf16 %v831
      %v845 = vunpack.c.h.bf16 %v831
      %v846 = vunpack.c.l.bf16 %v832
      %v847 = vunpack.c.h.bf16 %v832
      %v848 = vunpack.c.l.bf16 %v833
      %v849 = vunpack.c.h.bf16 %v833
      %v850 = vsub.f32 %v810, %v834
      %v851 = vsub.f32 %v811, %v835
      %v852 = vsub.f32 %v812, %v836
      %v853 = vsub.f32 %v813, %v837
      %v854 = vsub.f32 %v814, %v838
      %v855 = vsub.f32 %v815, %v839
      %v856 = vsub.f32 %v816, %v840
      %v857 = vsub.f32 %v817, %v841
      %v858 = vsub.f32 %v818, %v842
      %v859 = vsub.f32 %v819, %v843
      %v860 = vsub.f32 %v820, %v844
      %v861 = vsub.f32 %v821, %v845
      %v862 = vsub.f32 %v822, %v846
      %v863 = vsub.f32 %v823, %v847
      %v864 = vsub.f32 %v824, %v848
      %v865 = vsub.f32 %v825, %v849
      %v866 = vpack.c.bf16 %v851, %v850
      %v867 = vpack.c.bf16 %v853, %v852
      %v868 = vpack.c.bf16 %v855, %v854
      %v869 = vpack.c.bf16 %v857, %v856
      %v870 = vpack.c.bf16 %v859, %v858
      %v871 = vpack.c.bf16 %v861, %v860
      %v872 = vpack.c.bf16 %v863, %v862
      %v873 = vpack.c.bf16 %v865, %v864
      %874 = vxpose.xlu0.c.b16.start [1/8] %v826, 128
      %875 = vxpose.xlu0.c.b16.cont [2/8] %v827, 128
      %876 = vxpose.xlu0.c.b16.cont [3/8] %v828, 128
      %877 = vxpose.xlu0.c.b16.cont [4/8] %v829, 128
      %878 = vxpose.xlu0.c.b16.cont [5/8] %v830, 128
      %879 = vxpose.xlu0.c.b16.cont [6/8] %v831, 128
      %880 = vxpose.xlu0.c.b16.cont [7/8] %v832, 128
      %881 = vxpose.xlu0.c.b16.end [8/8] %v833, 128
      %v882 = vpop.trf.xlu0
      %v883 = vpop.trf.xlu0
      %v884 = vpop.trf.xlu0
      %v885 = vpop.trf.xlu0
      %v886 = vpop.trf.xlu0
      %v887 = vpop.trf.xlu0
      %v888 = vpop.trf.xlu0
      %v889 = vpop.trf.xlu0
      %890 = vmatprep.subr.bf16.mxu0 0
      %891 = vmatpush1.bf16.msra.mxu0 %v833
      %892 = vmatprep.subr.bf16.mxu0 0
      %893 = vmatpush1.bf16.msra.mxu0 %v832
      %894 = vmatprep.subr.bf16.mxu0 0
      %895 = vmatpush1.bf16.msra.mxu0 %v831
      %896 = vmatprep.subr.bf16.mxu0 0
      %897 = vmatpush1.bf16.msra.mxu0 %v830
      %898 = vmatprep.subr.bf16.mxu0 0
      %899 = vmatpush1.bf16.msra.mxu0 %v829
      %900 = vmatprep.subr.bf16.mxu0 0
      %901 = vmatpush1.bf16.msra.mxu0 %v828
      %902 = vmatprep.subr.bf16.mxu0 0
      %903 = vmatpush1.bf16.msra.mxu0 %v827
      %904 = vmatprep.subr.bf16.mxu0 0
      %905 = vmatpush1.bf16.msra.mxu0 %v826
      %906 = vmatprep.subr.bf16.mxu0 0
      %907 = vmatpush2.bf16.msra.mxu0 0
      %908 = vmatprep.subr.bf16.mxu0 0
      %909 = vmatpush2.bf16.msra.mxu0 0
      %910 = vmatprep.subr.bf16.mxu0 0
      %911 = vmatpush2.bf16.msra.mxu0 0
      %912 = vmatprep.subr.bf16.mxu0 0
      %913 = vmatpush2.bf16.msra.mxu0 0
      %914 = vmatprep.subr.bf16.mxu0 0
      %915 = vmatpush2.bf16.msra.mxu0 0
      %916 = vmatprep.subr.bf16.mxu0 0
      %917 = vmatpush2.bf16.msra.mxu0 0
      %918 = vmatprep.subr.bf16.mxu0 0
      %919 = vmatpush2.bf16.msra.mxu0 0
      %920 = vmatprep.subr.bf16.mxu0 0
      %921 = vmatpush2.bf16.msra.mxu0 0
      %922 = vmatprep.mubr.bf16.mxu0 0
      %923 = vmatmul.mubr.bf16.gmra.mxu0 %v882
      %v924 = vpop.f32.mrf.mxu0
      %v925 = vadd.f32 0.0, %v924
      %v926 = vpop.f32.mrf.mxu0
      %v927 = vpop.f32.mrf.mxu0
      %v928 = vadd.f32 0.0, %v927
      %v929 = vpop.f32.mrf.mxu0
      %930 = vmatprep.mubr.bf16.mxu0 0
      %931 = vmatmul.mubr.bf16.gmra.mxu0 %v883
      %v932 = vpop.f32.mrf.mxu0
      %v933 = vadd.f32 0.0, %v932
      %v934 = vpop.f32.mrf.mxu0
      %v935 = vpop.f32.mrf.mxu0
      %v936 = vpop.f32.mrf.mxu0
      %937 = vdwg.mxu0
      %938 = vmatprep.subr.bf16.mxu0 0
      %939 = vmatpush1.bf16.msra.mxu0 %v873
      %940 = vmatprep.subr.bf16.mxu0 0
      %941 = vmatpush1.bf16.msra.mxu0 %v872
      %942 = vmatprep.subr.bf16.mxu0 0
      %943 = vmatpush1.bf16.msra.mxu0 %v871
      %944 = vmatprep.subr.bf16.mxu0 0
      %945 = vmatpush1.bf16.msra.mxu0 %v870
      %946 = vmatprep.subr.bf16.mxu0 0
      %947 = vmatpush1.bf16.msra.mxu0 %v869
      %948 = vmatprep.subr.bf16.mxu0 0
      %949 = vmatpush1.bf16.msra.mxu0 %v868
      %950 = vmatprep.subr.bf16.mxu0 0
      %951 = vmatpush1.bf16.msra.mxu0 %v867
      %952 = vmatprep.subr.bf16.mxu0 0
      %953 = vmatpush1.bf16.msra.mxu0 %v866
      %954 = vmatprep.subr.bf16.mxu0 0
      %955 = vmatpush2.bf16.msra.mxu0 0
      %956 = vmatprep.subr.bf16.mxu0 0
      %957 = vmatpush2.bf16.msra.mxu0 0
      %958 = vmatprep.subr.bf16.mxu0 0
      %959 = vmatpush2.bf16.msra.mxu0 0
      %960 = vmatprep.subr.bf16.mxu0 0
      %961 = vmatpush2.bf16.msra.mxu0 0
      %962 = vmatprep.subr.bf16.mxu0 0
      %963 = vmatpush2.bf16.msra.mxu0 0
      %964 = vmatprep.subr.bf16.mxu0 0
      %965 = vmatpush2.bf16.msra.mxu0 0
      %966 = vmatprep.subr.bf16.mxu0 0
      %967 = vmatpush2.bf16.msra.mxu0 0
      %968 = vmatprep.subr.bf16.mxu0 0
      %969 = vmatpush2.bf16.msra.mxu0 0
      %970 = vmatprep.mubr.bf16.mxu0 0
      %971 = vmatmul.mubr.bf16.gmra.mxu0 %v882
      %v972 = vpop.f32.mrf.mxu0
      %v973 = vadd.f32 0.0, %v972
      %v974 = vpop.f32.mrf.mxu0
      %v975 = vpop.f32.mrf.mxu0
      %v976 = vadd.f32 0.0, %v975
      %v977 = vpop.f32.mrf.mxu0
      %978 = vmatprep.mubr.bf16.mxu0 0
      %979 = vmatmul.mubr.bf16.gmra.mxu0 %v883
      %v980 = vpop.f32.mrf.mxu0
      %v981 = vadd.f32 0.0, %v980
      %v982 = vpop.f32.mrf.mxu0
      %v983 = vpop.f32.mrf.mxu0
      %v984 = vpop.f32.mrf.mxu0
      %985 = vdwg.mxu0
      %v986 = vld [vmem:[%s270] sm:$0xff]
      %v987 = vld [vmem:[%s270 + $0x8] sm:$0xff]
      %v988 = vld [vmem:[%s270 + $0x10] sm:$0xff]
      %v989 = vmul.f32 %v925, 0.5
      %v990 = vmul.f32 %v928, 0.5
      %v991 = vmul.f32 %v933, 0.5
      %v992 = vadd.f32 %v989, %v973
      %v993 = vadd.f32 %v990, %v976
      %v994 = vadd.f32 %v991, %v981
      %v995 = vadd.f32 %v986, %v992
      %v996 = vadd.f32 %v987, %v993
      %v997 = vadd.f32 %v988, %v994
      %vm998 = vcmask 195584
      %999 = vst.msk [vmem:[%s270] sm:$0xff] %vm998, %v995
      %1000 = vst.msk [vmem:[%s270 + $0x8] sm:$0xff] %vm998, %v996
      %1001 = vst.msk [vmem:[%s270 + $0x10] sm:$0xff] %vm998, %v997
      %p1002 = scmp.lt.s32.totalorder %s18, 1
      %s1003 = scalar_select %p1002, %s18, 1
      %s1004 = smul.addr %s1003, 3
      %s1005 = smul.addr %s1004, 8
      %s1006 = scalar_lea.vmem %s3, %s1005
      // Predicated region
      $region37: #{whitened_kmeans_loss.1} parent=31 // pred_check
        %p1007 = pneg %p128
      $region38: #{whitened_kmeans_loss.1} parent=31 // pred_check_branch
        %1009 = sbr.rel (%p1007) target = $region40
      $region39: #{whitened_kmeans_loss.1} parent=31 // pred_region
        _
      $region40: #{whitened_kmeans_loss.1} parent=31 // pred_fallthru
        _
    $region32: #{whitened_kmeans_loss.1} parent=5 // pred_fallthru
      _
    %p1010 = scmp.le.s32.totalorder 2, %s9
    // Predicated region
    $region41: #{whitened_kmeans_loss.1} parent=5 // pred_check
      %p1011 = pneg %p1010
    $region42: #{whitened_kmeans_loss.1} parent=5 // pred_check_branch
      %1013 = sbr.rel (%p1011) target = $region44
    $region43: #{whitened_kmeans_loss.1} parent=5 // pred_region
      %s1014 = ssub.s32 %s9, 2
      // Predicated region
      $region45: #{whitened_kmeans_loss.1} parent=43 // pred_check
        %p1015 = pneg %p134
      $region46: #{whitened_kmeans_loss.1} parent=43 // pred_check_branch
        %1017 = sbr.rel (%p1015) target = $region48
      $region47: #{whitened_kmeans_loss.1} parent=43 // pred_region
        %p1018 = scmp.lt.s32.totalorder %s20, 1
        %s1019 = scalar_select %p1018, %s20, 1
        %s1020 = smul.addr %s1019, 3
        %s1021 = smul.addr %s1020, 8
        %s1022 = scalar_lea.vmem %s3, %s1021
      $region48: #{whitened_kmeans_loss.1} parent=43 // pred_fallthru
        _
    $region44: #{whitened_kmeans_loss.1} parent=5 // pred_fallthru
      _
  $region6: #{whitened_kmeans_loss.1} parent=0 // loop_footer
    %s13 = sadd.s32 1, %s9
  $region7: #{whitened_kmeans_loss.1} parent=0 // loop_footer_branch
    %8 = sbr.rel target = $region3
  $region8: #{whitened_kmeans_loss.1} parent=0 // loop_exit
    _

// kernel: custom-call.23
$region0: #{custom-call.23}
  %s0 = inlined_call_operand.vmem [shape: f32[2,1,20,20], index: 0, kind: input, shape index: {}]
  %s1 = inlined_call_operand.vmem [shape: f32[2,1,20,20], index: 1, kind: output, shape index: {}]
  $region1: #{custom-call.23} parent=0
    #allocation0 [shape = 'u8[24576]{0}', space=vmem, size = 0x6000, scoped, tag = 'operand span for operand 0']
    #allocation1 [shape = 'u8[24576]{0}', space=vmem, size = 0x6000, scoped, tag = 'operand span for operand 1']
    loop: start=0, step=1, limit=4
    $region2: #{custom-call.23} parent=1 // loop_pre_header
      _
    $region3: #{custom-call.23} parent=1 // loop_header
      %s3 = sphi 0, %s7
      %p4 = scmp.ge.s32.totalorder %s3, 4
      %s10 = sphi 0, %s36
      %s11 = sphi 0, %s32
      %s12 = sphi 0, %s28
      %s13 = sphi 0, %s24
      %s14 = sphi 0, %s10
      %s15 = sphi 0, %s11
      %s16 = sphi 0, %s12
      %s17 = sphi 0, %s13
      %s18 = sphi 0, %s14
      %s19 = sphi 0, %s15
      %s20 = sphi 0, %s16
      %s21 = sphi 0, %s17
    $region4: #{custom-call.23} parent=1 // loop_header_branch
      %6 = sbr.rel (%p4) target = $region8
    $region5: #{custom-call.23} parent=1 // loop_body
      %s8 = ssub.s32 %s3, 1
      %s9 = ssub.s32 %s3, 2
      %s22 = sadd.s32 1, %s13
      %p23 = scmp.ge.s32.totalorder %s22, 1
      %s24 = scalar_select %p23, 0, %s22
      %s25 = sadd.s32 1, %s12
      %s26 = scalar_select %p23, %s25, %s12
      %p27 = scmp.ge.s32.totalorder %s26, 1
      %s28 = scalar_select %p27, 0, %s26
      %s29 = sadd.s32 1, %s11
      %s30 = scalar_select %p27, %s29, %s11
      %p31 = scmp.ge.s32.totalorder %s30, 1
      %s32 = scalar_select %p31, 0, %s30
      %s33 = sadd.s32 1, %s10
      %s34 = scalar_select %p31, %s33, %s10
      %p35 = scmp.ge.s32.totalorder %s34, 2
      %s36 = scalar_select %p35, 0, %s34
      %p37 = scmp.le.s32.totalorder 1, %s3
      %p38 = scmp.lt.s32.totalorder %s3, 3
      %p39 = pnand %p37, %p38
      %p40 = pneg %p39
      // Predicated region
      $region9: #{custom-call.23} parent=5 // pred_check
        _
      $region10: #{custom-call.23} parent=5 // pred_check_branch
        %42 = sbr.rel (%p39) target = $region12
      $region11: #{custom-call.23} parent=5 // pred_region
        %s43 = ssub.s32 %s3, 1
      $region12: #{custom-call.23} parent=5 // pred_fallthru
        _
      %p44 = scmp.lt.s32.totalorder %s3, 2
      // Predicated region
      $region13: #{custom-call.23} parent=5 // pred_check
        %p45 = pneg %p44
      $region14: #{custom-call.23} parent=5 // pred_check_branch
        %47 = sbr.rel (%p45) target = $region16
      $region15: #{custom-call.23} parent=5 // pred_region
        %s48 = sand.u32 %s3, 1
        %s49 = sand.u32 %s3, 1
        %s50 = smul.addr %s49, 24
        %s51 = scalar_lea.vmem [#allocation0], %s50
        %s52 = sadd.s32 %s13, %s12
        %s53 = smul.addr %s11, 3
        %s54 = sadd.s32 %s52, %s53
        %s55 = smul.addr %s10, 3
        %s56 = sadd.s32 %s54, %s55
        %s57 = smul.addr %s56, 8
        %s58 = scalar_lea.vmem %s0, %s57
        // Predicated region
        $region17: #{custom-call.23} parent=15 // pred_check
          _
        $region18: #{custom-call.23} parent=15 // pred_check_branch
          %60 = sbr.rel (0) target = $region20
        $region19: #{custom-call.23} parent=15 // pred_region
          // Predicated region
          $region21: #{custom-call.23} parent=19 // pred_check
            _
          $region22: #{custom-call.23} parent=19 // pred_check_branch
            %62 = sbr.rel (0) target = $region24
          $region23: #{custom-call.23} parent=19 // pred_region
            // Predicated region
            $region36: #{custom-call.23} parent=23 // pred_check
              _
            $region37: #{custom-call.23} parent=23 // pred_check_branch
              %82 = sbr.rel (0) target = $region39
            $region38: #{custom-call.23} parent=23 // pred_region
              loop: start=0, step=1, limit=1
              $region40: #{custom-call.23} parent=38 // loop_pre_header
                _
              $region41: #{custom-call.23} parent=38 // loop_header
                %s84 = sphi 0, %s88
                %p85 = scmp.ge.s32.totalorder %s84, 1
                %s89 = sphi %s58, %s58
                %s90 = sphi %s51, %s51
              $region42: #{custom-call.23} parent=38 // loop_header_branch
                %87 = sbr.rel (%p85) target = $region46
              $region43: #{custom-call.23} parent=38 // loop_body
                %v91 = vld [vmem:[%s89] sm:$0xff]
                %92 = vst [vmem:[%s90] sm:$0xff] %v91
                %v93 = vld [vmem:[%s89 + $0x8] sm:$0xff]
                %94 = vst [vmem:[%s90 + $0x8] sm:$0xff] %v93
                %v95 = vld [vmem:[%s89 + $0x10] sm:$0xff]
                %96 = vst [vmem:[%s90 + $0x10] sm:$0xff] %v95
              $region44: #{custom-call.23} parent=38 // loop_footer
                %s88 = sadd.s32 1, %s84
              $region45: #{custom-call.23} parent=38 // loop_footer_branch
                %83 = sbr.rel target = $region41
              $region46: #{custom-call.23} parent=38 // loop_exit
                _
            $region39: #{custom-call.23} parent=23 // pred_fallthru
              _
            // Predicated region
            $region47: #{custom-call.23} parent=23 // pred_check
              _
            $region48: #{custom-call.23} parent=23 // pred_check_branch
              %98 = sbr.rel target = $region50
            $region49: #{custom-call.23} parent=23 // pred_region
              _
            $region50: #{custom-call.23} parent=23 // pred_fallthru
              _
          $region24: #{custom-call.23} parent=19 // pred_fallthru
            _
          // Predicated region
          $region25: #{custom-call.23} parent=19 // pred_check
            _
          $region26: #{custom-call.23} parent=19 // pred_check_branch
            %64 = sbr.rel target = $region28
          $region27: #{custom-call.23} parent=19 // pred_region
            %s66 = ssub.s32 256, 1
            loop: start=0, step=1, limit=1
            $region29: #{custom-call.23} parent=27 // loop_pre_header
              _
            $region30: #{custom-call.23} parent=27 // loop_header
              %s68 = sphi 0, %s72
              %p69 = scmp.ge.s32.totalorder %s68, 1
              %s73 = sphi %s58, %s58
              %s74 = sphi %s51, %s51
            $region31: #{custom-call.23} parent=27 // loop_header_branch
              %71 = sbr.rel (%p69) target = $region35
            $region32: #{custom-call.23} parent=27 // loop_body
              %v75 = vld [vmem:[%s73] sm:%s66]
              %76 = vst [vmem:[%s74] sm:%s66] %v75
              %v77 = vld [vmem:[%s73 + $0x8] sm:%s66]
              %78 = vst [vmem:[%s74 + $0x8] sm:%s66] %v77
              %v79 = vld [vmem:[%s73 + $0x10] sm:%s66]
              %80 = vst [vmem:[%s74 + $0x10] sm:%s66] %v79
            $region33: #{custom-call.23} parent=27 // loop_footer
              %s72 = sadd.s32 1, %s68
            $region34: #{custom-call.23} parent=27 // loop_footer_branch
              %67 = sbr.rel target = $region30
            $region35: #{custom-call.23} parent=27 // loop_exit
              _
          $region28: #{custom-call.23} parent=19 // pred_fallthru
            _
        $region20: #{custom-call.23} parent=15 // pred_fallthru
          _
        %99 = vnop
      $region16: #{custom-call.23} parent=5 // pred_fallthru
        _
      %p100 = scmp.le.s32.totalorder 1, %s3
      %p101 = scmp.lt.s32.totalorder %s3, 3
      %p102 = pnand %p100, %p101
      %p103 = pneg %p102
      // Predicated region
      $region51: #{custom-call.23} parent=5 // pred_check
        _
      $region52: #{custom-call.23} parent=5 // pred_check_branch
        %105 = sbr.rel (%p102) target = $region54
      $region53: #{custom-call.23} parent=5 // pred_region
        #allocation2 [shape = 'f32[20,20]{1,0}', space=vmem, size = 0x3000, scoped, tag = 'rescaled input a']
        %s106 = ssub.s32 %s3, 1
        %s107 = sand.u32 %s8, 1
        %s108 = sand.u32 %s8, 1
        %s109 = smul.addr %s108, 24
        %s110 = scalar_lea.vmem [#allocation0], %s109
        %s111 = sand.u32 %s8, 1
        %s112 = sand.u32 %s8, 1
        %s113 = smul.addr %s112, 24
        %s114 = scalar_lea.vmem [#allocation0], %s113
        %s115 = sand.u32 %s8, 1
        %s116 = sand.u32 %s8, 1
        %s117 = smul.addr %s116, 24
        %s118 = scalar_lea.vmem [#allocation1], %s117
        %v119 = vlaneseq
        %v120 = vand.u32 %v119, 127
        %vm121 = vcmp.lt.s32.totalorder %v120, 20
        %v122 = vlaneseq
        %v123 = vshrl.u32 %v122, 7
        %vm125 = vcmp.eq.s32.totalorder %v123, %v120
        %v126 = vld [vmem:[%s110] sm:$0xff]
        %v127 = vsel %vm125, %v126, 0.0
        %128 = vadd.xlane.f32.xlu0 %v127
        %v129 = vpop.xlane.xlu0 %128
        %vm130 = vcmp.le.s32.totalorder %v123, %v120
        %vm131 = vmand %vm130, %vm121
        %v132 = vsel %vm131, %v126, 0.0
        %v133 = vrcp.pop %v129
        %v134 = vmul.f32 %v132, %v133
        %135 = vst [vmem:[#allocation2] sm:$0xff] %v134
        %s136 = scalar_lea.vmem %s110, 8 [#allocation0]
        %s137 = scalar_lea.vmem [#allocation2], 8
        %v138 = vlaneseq
        %v139 = vshrl.u32 %v138, 7
        %v140 = vadd.s32 %v139, 8
        %vm141 = vcmp.eq.s32.totalorder %v140, %v120
        %v142 = vld [vmem:[%s136] sm:$0xff]
        %v143 = vsel %vm141, %v142, 0.0
        %144 = vadd.xlane.f32.xlu0 %v143
        %v145 = vpop.xlane.xlu0 %144
        %vm146 = vcmp.le.s32.totalorder %v140, %v120
        %vm147 = vmand %vm146, %vm121
        %v148 = vsel %vm147, %v142, 0.0
        %v149 = vrcp.pop %v145
        %v150 = vmul.f32 %v148, %v149
        %151 = vst [vmem:[%s137] sm:$0xff] %v150
        %s152 = scalar_lea.vmem %s110, 16 [#allocation0]
        %s153 = scalar_lea.vmem [#allocation2], 16
        %v154 = vlaneseq
        %v155 = vshrl.u32 %v154, 7
        %v156 = vadd.s32 %v155, 16
        %vm157 = vcmp.eq.s32.totalorder %v156, %v120
        %v158 = vld [vmem:[%s152] sm:$0xff]
        %v159 = vsel %vm157, %v158, 0.0
        %160 = vadd.xlane.f32.xlu0 %v159
        %v161 = vpop.xlane.xlu0 %160
        %vm162 = vcmp.le.s32.totalorder %v156, %v120
        %vm163 = vmand %vm162, %vm121
        %v164 = vsel %vm163, %v158, 0.0
        %v165 = vrcp.pop %v161
        %v166 = vmul.f32 %v164, %v165
        %167 = vst [vmem:[%s153] sm:$0xff] %v166
        %v168 = vlaneseq
        %v169 = vand.u32 %v168, 127
        %v170 = vlaneseq
        %v171 = vshrl.u32 %v170, 7
        %vm173 = vcmp.eq.s32.totalorder %v169, %v171
        %v174 = vsel %vm173, -1.0, 0.0
        %v175 = vlaneseq
        %v176 = vand.u32 %v175, 127
        %v177 = vlaneseq
        %v178 = vshrl.u32 %v177, 7
        %v179 = vadd.s32 %v178, 8
        %vm180 = vcmp.eq.s32.totalorder %v176, %v179
        %v181 = vsel %vm180, -1.0, 0.0
        %v182 = vlaneseq
        %v183 = vand.u32 %v182, 127
        %v184 = vlaneseq
        %v185 = vshrl.u32 %v184, 7
        %v186 = vadd.s32 %v185, 16
        %vm187 = vcmp.eq.s32.totalorder %v183, %v186
        %v188 = vlaneseq
        %v189 = vand.u32 %v188, 127
        %vm190 = vcmp.eq.s32.totalorder %v189, 19
        %v191 = vsel %vm190, 1.0, -1.0
        %v192 = vsel %vm187, %v191, 0.0
        %s193 = scalar_lea.vmem [#allocation2], 18
        %v194 = vld [vmem:[%s193] ss:$0 sm:$0xff]
        %v195 = vxor.u32 %v194, 2147483648
        %v196 = vlaneseq
        %v197 = vand.u32 %v196, 127
        %vm198 = vcmp.eq.s32.totalorder %v197, 18
        %v199 = vmul.f32 %v195, %v192
        %200 = vadd.xlane.f32.xlu0 %v199
        %v201 = vpop.xlane.xlu0 %200
        %v202 = vsel %vm198, %v201, %v192
        %s203 = scalar_lea.vmem [#allocation2], 17
        %v204 = vld [vmem:[%s203] ss:$0 sm:$0xff]
        %v205 = vxor.u32 %v204, 2147483648
        %v206 = vlaneseq
        %v207 = vand.u32 %v206, 127
        %vm208 = vcmp.eq.s32.totalorder %v207, 17
        %v209 = vmul.f32 %v205, %v202
        %210 = vadd.xlane.f32.xlu0 %v209
        %v211 = vpop.xlane.xlu0 %210
        %v212 = vsel %vm208, %v211, %v202
        %s213 = scalar_lea.vmem [#allocation2], 16
        %v214 = vld [vmem:[%s213] ss:$0 sm:$0xff]
        %v215 = vxor.u32 %v214, 2147483648
        %v216 = vlaneseq
        %v217 = vand.u32 %v216, 127
        %vm218 = vcmp.eq.s32.totalorder %v217, 16
        %v219 = vmul.f32 %v215, %v212
        %220 = vadd.xlane.f32.xlu0 %v219
        %v221 = vpop.xlane.xlu0 %220
        %v222 = vsel %vm218, %v221, %v212
        %s223 = scalar_lea.vmem [#allocation2], 15
        %v224 = vld [vmem:[%s223] ss:$0 sm:$0xff]
        %v225 = vxor.u32 %v224, 2147483648
        %v226 = vlaneseq
        %v227 = vand.u32 %v226, 127
        %vm228 = vcmp.eq.s32.totalorder %v227, 15
        %v229 = vmul.f32 %v225, %v181
        %230 = vadd.xlane.f32.xlu0 %v229
        %v231 = vpop.xlane.xlu0 %230
        %v232 = vsel %vm228, %v231, %v181
        %v233 = vmul.f32 %v225, %v222
        %234 = vadd.xlane.f32.xlu0 %v233
        %v235 = vpop.xlane.xlu0 %234
        %v236 = vsel %vm228, %v235, %v222
        %s237 = scalar_lea.vmem [#allocation2], 14
        %v238 = vld [vmem:[%s237] ss:$0 sm:$0xff]
        %v239 = vxor.u32 %v238, 2147483648
        %v240 = vlaneseq
        %v241 = vand.u32 %v240, 127
        %vm242 = vcmp.eq.s32.totalorder %v241, 14
        %v243 = vmul.f32 %v239, %v232
        %244 = vadd.xlane.f32.xlu0 %v243
        %v245 = vpop.xlane.xlu0 %244
        %v246 = vsel %vm242, %v245, %v232
        %v247 = vmul.f32 %v239, %v236
        %248 = vadd.xlane.f32.xlu0 %v247
        %v249 = vpop.xlane.xlu0 %248
        %v250 = vsel %vm242, %v249, %v236
        %s251 = scalar_lea.vmem [#allocation2], 13
        %v252 = vld [vmem:[%s251] ss:$0 sm:$0xff]
        %v253 = vxor.u32 %v252, 2147483648
        %v254 = vlaneseq
        %v255 = vand.u32 %v254, 127
        %vm256 = vcmp.eq.s32.totalorder %v255, 13
        %v257 = vmul.f32 %v253, %v246
        %258 = vadd.xlane.f32.xlu0 %v257
        %v259 = vpop.xlane.xlu0 %258
        %v260 = vsel %vm256, %v259, %v246
        %v261 = vmul.f32 %v253, %v250
        %262 = vadd.xlane.f32.xlu0 %v261
        %v263 = vpop.xlane.xlu0 %262
        %v264 = vsel %vm256, %v263, %v250
        %s265 = scalar_lea.vmem [#allocation2], 12
        %v266 = vld [vmem:[%s265] ss:$0 sm:$0xff]
        %v267 = vxor.u32 %v266, 2147483648
        %v268 = vlaneseq
        %v269 = vand.u32 %v268, 127
        %vm270 = vcmp.eq.s32.totalorder %v269, 12
        %v271 = vmul.f32 %v267, %v260
        %272 = vadd.xlane.f32.xlu0 %v271
        %v273 = vpop.xlane.xlu0 %272
        %v274 = vsel %vm270, %v273, %v260
        %v275 = vmul.f32 %v267, %v264
        %276 = vadd.xlane.f32.xlu0 %v275
        %v277 = vpop.xlane.xlu0 %276
        %v278 = vsel %vm270, %v277, %v264
        %s279 = scalar_lea.vmem [#allocation2], 11
        %v280 = vld [vmem:[%s279] ss:$0 sm:$0xff]
        %v281 = vxor.u32 %v280, 2147483648
        %v282 = vlaneseq
        %v283 = vand.u32 %v282, 127
        %vm284 = vcmp.eq.s32.totalorder %v283, 11
        %v285 = vmul.f32 %v281, %v274
        %286 = vadd.xlane.f32.xlu0 %v285
        %v287 = vpop.xlane.xlu0 %286
        %v288 = vsel %vm284, %v287, %v274
        %v289 = vmul.f32 %v281, %v278
        %290 = vadd.xlane.f32.xlu0 %v289
        %v291 = vpop.xlane.xlu0 %290
        %v292 = vsel %vm284, %v291, %v278
        %s293 = scalar_lea.vmem [#allocation2], 10
        %v294 = vld [vmem:[%s293] ss:$0 sm:$0xff]
        %v295 = vxor.u32 %v294, 2147483648
        %v296 = vlaneseq
        %v297 = vand.u32 %v296, 127
        %vm298 = vcmp.eq.s32.totalorder %v297, 10
        %v299 = vmul.f32 %v295, %v288
        %300 = vadd.xlane.f32.xlu0 %v299
        %v301 = vpop.xlane.xlu0 %300
        %v302 = vsel %vm298, %v301, %v288
        %v303 = vmul.f32 %v295, %v292
        %304 = vadd.xlane.f32.xlu0 %v303
        %v305 = vpop.xlane.xlu0 %304
        %v306 = vsel %vm298, %v305, %v292
        %s307 = scalar_lea.vmem [#allocation2], 9
        %v308 = vld [vmem:[%s307] ss:$0 sm:$0xff]
        %v309 = vxor.u32 %v308, 2147483648
        %v310 = vlaneseq
        %v311 = vand.u32 %v310, 127
        %vm312 = vcmp.eq.s32.totalorder %v311, 9
        %v313 = vmul.f32 %v309, %v302
        %314 = vadd.xlane.f32.xlu0 %v313
        %v315 = vpop.xlane.xlu0 %314
        %v316 = vsel %vm312, %v315, %v302
        %v317 = vmul.f32 %v309, %v306
        %318 = vadd.xlane.f32.xlu0 %v317
        %v319 = vpop.xlane.xlu0 %318
        %v320 = vsel %vm312, %v319, %v306
        %s321 = scalar_lea.vmem [#allocation2], 8
        %v322 = vld [vmem:[%s321] ss:$0 sm:$0xff]
        %v323 = vxor.u32 %v322, 2147483648
        %v324 = vlaneseq
        %v325 = vand.u32 %v324, 127
        %vm326 = vcmp.eq.s32.totalorder %v325, 8
        %v327 = vmul.f32 %v323, %v316
        %328 = vadd.xlane.f32.xlu0 %v327
        %v329 = vpop.xlane.xlu0 %328
        %v330 = vsel %vm326, %v329, %v316
        %v331 = vmul.f32 %v323, %v320
        %332 = vadd.xlane.f32.xlu0 %v331
        %v333 = vpop.xlane.xlu0 %332
        %v334 = vsel %vm326, %v333, %v320
        %s335 = scalar_lea.vmem [#allocation2], 7
        %v336 = vld [vmem:[%s335] ss:$0 sm:$0xff]
        %v337 = vxor.u32 %v336, 2147483648
        %v338 = vlaneseq
        %v339 = vand.u32 %v338, 127
        %vm340 = vcmp.eq.s32.totalorder %v339, 7
        %v341 = vmul.f32 %v337, %v174
        %342 = vadd.xlane.f32.xlu0 %v341
        %v343 = vpop.xlane.xlu0 %342
        %v344 = vsel %vm340, %v343, %v174
        %v345 = vmul.f32 %v337, %v330
        %346 = vadd.xlane.f32.xlu0 %v345
        %v347 = vpop.xlane.xlu0 %346
        %v348 = vsel %vm340, %v347, %v330
        %v349 = vmul.f32 %v337, %v334
        %350 = vadd.xlane.f32.xlu0 %v349
        %v351 = vpop.xlane.xlu0 %350
        %v352 = vsel %vm340, %v351, %v334
        %s353 = scalar_lea.vmem [#allocation2], 6
        %v354 = vld [vmem:[%s353] ss:$0 sm:$0xff]
        %v355 = vxor.u32 %v354, 2147483648
        %v356 = vlaneseq
        %v357 = vand.u32 %v356, 127
        %vm358 = vcmp.eq.s32.totalorder %v357, 6
        %v359 = vmul.f32 %v355, %v344
        %360 = vadd.xlane.f32.xlu0 %v359
        %v361 = vpop.xlane.xlu0 %360
        %v362 = vsel %vm358, %v361, %v344
        %v363 = vmul.f32 %v355, %v348
        %364 = vadd.xlane.f32.xlu0 %v363
        %v365 = vpop.xlane.xlu0 %364
        %v366 = vsel %vm358, %v365, %v348
        %v367 = vmul.f32 %v355, %v352
        %368 = vadd.xlane.f32.xlu0 %v367
        %v369 = vpop.xlane.xlu0 %368
        %v370 = vsel %vm358, %v369, %v352
        %s371 = scalar_lea.vmem [#allocation2], 5
        %v372 = vld [vmem:[%s371] ss:$0 sm:$0xff]
        %v373 = vxor.u32 %v372, 2147483648
        %v374 = vlaneseq
        %v375 = vand.u32 %v374, 127
        %vm376 = vcmp.eq.s32.totalorder %v375, 5
        %v377 = vmul.f32 %v373, %v362
        %378 = vadd.xlane.f32.xlu0 %v377
        %v379 = vpop.xlane.xlu0 %378
        %v380 = vsel %vm376, %v379, %v362
        %v381 = vmul.f32 %v373, %v366
        %382 = vadd.xlane.f32.xlu0 %v381
        %v383 = vpop.xlane.xlu0 %382
        %v384 = vsel %vm376, %v383, %v366
        %v385 = vmul.f32 %v373, %v370
        %386 = vadd.xlane.f32.xlu0 %v385
        %v387 = vpop.xlane.xlu0 %386
        %v388 = vsel %vm376, %v387, %v370
        %s389 = scalar_lea.vmem [#allocation2], 4
        %v390 = vld [vmem:[%s389] ss:$0 sm:$0xff]
        %v391 = vxor.u32 %v390, 2147483648
        %v392 = vlaneseq
        %v393 = vand.u32 %v392, 127
        %vm394 = vcmp.eq.s32.totalorder %v393, 4
        %v395 = vmul.f32 %v391, %v380
        %396 = vadd.xlane.f32.xlu0 %v395
        %v397 = vpop.xlane.xlu0 %396
        %v398 = vsel %vm394, %v397, %v380
        %v399 = vmul.f32 %v391, %v384
        %400 = vadd.xlane.f32.xlu0 %v399
        %v401 = vpop.xlane.xlu0 %400
        %v402 = vsel %vm394, %v401, %v384
        %v403 = vmul.f32 %v391, %v388
        %404 = vadd.xlane.f32.xlu0 %v403
        %v405 = vpop.xlane.xlu0 %404
        %v406 = vsel %vm394, %v405, %v388
        %s407 = scalar_lea.vmem [#allocation2], 3
        %v408 = vld [vmem:[%s407] ss:$0 sm:$0xff]
        %v409 = vxor.u32 %v408, 2147483648
        %v410 = vlaneseq
        %v411 = vand.u32 %v410, 127
        %vm412 = vcmp.eq.s32.totalorder %v411, 3
        %v413 = vmul.f32 %v409, %v398
        %414 = vadd.xlane.f32.xlu0 %v413
        %v415 = vpop.xlane.xlu0 %414
        %v416 = vsel %vm412, %v415, %v398
        %v417 = vmul.f32 %v409, %v402
        %418 = vadd.xlane.f32.xlu0 %v417
        %v419 = vpop.xlane.xlu0 %418
        %v420 = vsel %vm412, %v419, %v402
        %v421 = vmul.f32 %v409, %v406
        %422 = vadd.xlane.f32.xlu0 %v421
        %v423 = vpop.xlane.xlu0 %422
        %v424 = vsel %vm412, %v423, %v406
        %s425 = scalar_lea.vmem [#allocation2], 2
        %v426 = vld [vmem:[%s425] ss:$0 sm:$0xff]
        %v427 = vxor.u32 %v426, 2147483648
        %v428 = vlaneseq
        %v429 = vand.u32 %v428, 127
        %vm430 = vcmp.eq.s32.totalorder %v429, 2
        %v431 = vmul.f32 %v427, %v416
        %432 = vadd.xlane.f32.xlu0 %v431
        %v433 = vpop.xlane.xlu0 %432
        %v434 = vsel %vm430, %v433, %v416
        %v435 = vmul.f32 %v427, %v420
        %436 = vadd.xlane.f32.xlu0 %v435
        %v437 = vpop.xlane.xlu0 %436
        %v438 = vsel %vm430, %v437, %v420
        %v439 = vmul.f32 %v427, %v424
        %440 = vadd.xlane.f32.xlu0 %v439
        %v441 = vpop.xlane.xlu0 %440
        %v442 = vsel %vm430, %v441, %v424
        %s443 = scalar_lea.vmem [#allocation2], 1
        %v444 = vld [vmem:[%s443] ss:$0 sm:$0xff]
        %v445 = vxor.u32 %v444, 2147483648
        %v446 = vlaneseq
        %v447 = vand.u32 %v446, 127
        %vm448 = vcmp.eq.s32.totalorder %v447, 1
        %v449 = vmul.f32 %v445, %v434
        %450 = vadd.xlane.f32.xlu0 %v449
        %v451 = vpop.xlane.xlu0 %450
        %v452 = vsel %vm448, %v451, %v434
        %v453 = vmul.f32 %v445, %v438
        %454 = vadd.xlane.f32.xlu0 %v453
        %v455 = vpop.xlane.xlu0 %454
        %v456 = vsel %vm448, %v455, %v438
        %v457 = vmul.f32 %v445, %v442
        %458 = vadd.xlane.f32.xlu0 %v457
        %v459 = vpop.xlane.xlu0 %458
        %v460 = vsel %vm448, %v459, %v442
        %v461 = vld [vmem:[#allocation2] ss:$0 sm:$0xff]
        %v462 = vxor.u32 %v461, 2147483648
        %v463 = vlaneseq
        %v464 = vand.u32 %v463, 127
        %vm465 = vcmp.eq.s32.totalorder %v464, 0
        %v466 = vmul.f32 %v462, %v452
        %467 = vadd.xlane.f32.xlu0 %v466
        %v468 = vpop.xlane.xlu0 %467
        %v469 = vsel %vm465, %v468, %v452
        %v470 = vmul.f32 %v462, %v456
        %471 = vadd.xlane.f32.xlu0 %v470
        %v472 = vpop.xlane.xlu0 %471
        %v473 = vsel %vm465, %v472, %v456
        %v474 = vmul.f32 %v462, %v460
        %475 = vadd.xlane.f32.xlu0 %v474
        %v476 = vpop.xlane.xlu0 %475
        %v477 = vsel %vm465, %v476, %v460
        %v478 = vrcp.pop %v129
        %v479 = vmul.f32 %v469, %v478
        %vm480 = vweird.f32 %v129
        %v481 = vsel %vm480, %v469, %v479
        %482 = vst [vmem:[%s118] sm:$0xff] %v481
        %v483 = vrcp.pop %v145
        %v484 = vmul.f32 %v473, %v483
        %vm485 = vweird.f32 %v145
        %v486 = vsel %vm485, %v473, %v484
        %s487 = scalar_lea.vmem %s118, 8 [#allocation1]
        %488 = vst [vmem:[%s487] sm:$0xff] %v486
        %v489 = vrcp.pop %v161
        %v490 = vmul.f32 %v477, %v489
        %vm491 = vweird.f32 %v161
        %v492 = vsel %vm491, %v477, %v490
        %s493 = scalar_lea.vmem %s118, 16 [#allocation1]
        %494 = vst [vmem:[%s493] sm:$0xff] %v492
        %s495 = sand.u32 %s8, 1
        %s496 = sand.u32 %s8, 1
        %s497 = smul.addr %s496, 24
        %s498 = scalar_lea.vmem [#allocation1], %s497
        %s499 = sadd.s32 %s17, %s16
        %s500 = smul.addr %s15, 3
        %s501 = sadd.s32 %s499, %s500
        %s502 = smul.addr %s14, 3
        %s503 = sadd.s32 %s501, %s502
        %s504 = smul.addr %s503, 8
        %s505 = scalar_lea.vmem %s1, %s504
        // Predicated region
        $region55: #{custom-call.23} parent=53 // pred_check
          _
        $region56: #{custom-call.23} parent=53 // pred_check_branch
          %507 = sbr.rel (0) target = $region58
        $region57: #{custom-call.23} parent=53 // pred_region
          // Predicated region
          $region59: #{custom-call.23} parent=57 // pred_check
            _
          $region60: #{custom-call.23} parent=57 // pred_check_branch
            %509 = sbr.rel (0) target = $region62
          $region61: #{custom-call.23} parent=57 // pred_region
            // Predicated region
            $region74: #{custom-call.23} parent=61 // pred_check
              _
            $region75: #{custom-call.23} parent=61 // pred_check_branch
              %529 = sbr.rel (0) target = $region77
            $region76: #{custom-call.23} parent=61 // pred_region
              loop: start=0, step=1, limit=1
              $region78: #{custom-call.23} parent=76 // loop_pre_header
                _
              $region79: #{custom-call.23} parent=76 // loop_header
                %s531 = sphi 0, %s535
                %p532 = scmp.ge.s32.totalorder %s531, 1
                %s536 = sphi %s498, %s498
                %s537 = sphi %s505, %s505
              $region80: #{custom-call.23} parent=76 // loop_header_branch
                %534 = sbr.rel (%p532) target = $region84
              $region81: #{custom-call.23} parent=76 // loop_body
                %v538 = vld [vmem:[%s536] sm:$0xff]
                %539 = vst [vmem:[%s537] sm:$0xff] %v538
                %v540 = vld [vmem:[%s536 + $0x8] sm:$0xff]
                %541 = vst [vmem:[%s537 + $0x8] sm:$0xff] %v540
                %v542 = vld [vmem:[%s536 + $0x10] sm:$0xff]
                %543 = vst [vmem:[%s537 + $0x10] sm:$0xff] %v542
              $region82: #{custom-call.23} parent=76 // loop_footer
                %s535 = sadd.s32 1, %s531
              $region83: #{custom-call.23} parent=76 // loop_footer_branch
                %530 = sbr.rel target = $region79
              $region84: #{custom-call.23} parent=76 // loop_exit
                _
            $region77: #{custom-call.23} parent=61 // pred_fallthru
              _
            // Predicated region
            $region85: #{custom-call.23} parent=61 // pred_check
              _
            $region86: #{custom-call.23} parent=61 // pred_check_branch
              %545 = sbr.rel target = $region88
            $region87: #{custom-call.23} parent=61 // pred_region
              _
            $region88: #{custom-call.23} parent=61 // pred_fallthru
              _
          $region62: #{custom-call.23} parent=57 // pred_fallthru
            _
          // Predicated region
          $region63: #{custom-call.23} parent=57 // pred_check
            _
          $region64: #{custom-call.23} parent=57 // pred_check_branch
            %511 = sbr.rel target = $region66
          $region65: #{custom-call.23} parent=57 // pred_region
            %s513 = ssub.s32 256, 1
            loop: start=0, step=1, limit=1
            $region67: #{custom-call.23} parent=65 // loop_pre_header
              _
            $region68: #{custom-call.23} parent=65 // loop_header
              %s515 = sphi 0, %s519
              %p516 = scmp.ge.s32.totalorder %s515, 1
              %s520 = sphi %s498, %s498
              %s521 = sphi %s505, %s505
            $region69: #{custom-call.23} parent=65 // loop_header_branch
              %518 = sbr.rel (%p516) target = $region73
            $region70: #{custom-call.23} parent=65 // loop_body
              %v522 = vld [vmem:[%s520] sm:%s513]
              %523 = vst [vmem:[%s521] sm:%s513] %v522
              %v524 = vld [vmem:[%s520 + $0x8] sm:%s513]
              %525 = vst [vmem:[%s521 + $0x8] sm:%s513] %v524
              %v526 = vld [vmem:[%s520 + $0x10] sm:%s513]
              %527 = vst [vmem:[%s521 + $0x10] sm:%s513] %v526
            $region71: #{custom-call.23} parent=65 // loop_footer
              %s519 = sadd.s32 1, %s515
            $region72: #{custom-call.23} parent=65 // loop_footer_branch
              %514 = sbr.rel target = $region68
            $region73: #{custom-call.23} parent=65 // loop_exit
              _
          $region66: #{custom-call.23} parent=57 // pred_fallthru
            _
        $region58: #{custom-call.23} parent=53 // pred_fallthru
          _
        %546 = vnop
      $region54: #{custom-call.23} parent=5 // pred_fallthru
        _
      %p547 = scmp.le.s32.totalorder 2, %s3
      // Predicated region
      $region89: #{custom-call.23} parent=5 // pred_check
        %p548 = pneg %p547
      $region90: #{custom-call.23} parent=5 // pred_check_branch
        %550 = sbr.rel (%p548) target = $region92
      $region91: #{custom-call.23} parent=5 // pred_region
        %s551 = ssub.s32 %s3, 2
        %s552 = sand.u32 %s9, 1
        %s553 = sand.u32 %s9, 1
        %s554 = smul.addr %s553, 24
        %s555 = scalar_lea.vmem [#allocation1], %s554
      $region92: #{custom-call.23} parent=5 // pred_fallthru
        _
    $region6: #{custom-call.23} parent=1 // loop_footer
      %s7 = sadd.s32 1, %s3
    $region7: #{custom-call.23} parent=1 // loop_footer_branch
      %2 = sbr.rel target = $region3
    $region8: #{custom-call.23} parent=1 // loop_exit
      _

// kernel: custom-call.25
$region0: #{custom-call.25}
  %s0 = inlined_call_operand.vmem [shape: f32[2,4,4], index: 0, kind: input, shape index: {}]
  %s1 = inlined_call_operand.vmem [shape: f32[2,4,4], index: 1, kind: output, shape index: {0}]
  %s2 = inlined_call_operand.hbm [shape: s32[2,4], index: 2, kind: output, shape index: {1}]
  %s3 = inlined_call_operand.vmem [shape: s32[2,4], index: 3, kind: output, shape index: {2}]
  %4 = xla_tuple %s1, %s2, %s3
  $region1: #{custom-call.25} parent=0
    #allocation0 [shape = 'u8[4096]{0}', space=vmem, size = 0x1000, scoped, tag = 'operand span for operand 0']
    #allocation1 [shape = 'u8[4096]{0}', space=vmem, size = 0x1000, scoped, tag = 'packed  for operand 0']
    #allocation2 [shape = 'u8[4096]{0}', space=vmem, size = 0x1000, scoped, tag = 'operand span for operand 1']
    #allocation3 [shape = 'u8[4096]{0}', space=vmem, size = 0x1000, scoped, tag = 'packed  for operand 1']
    #allocation4 [shape = 'u8[4096]{0}', space=vmem, size = 0x1000, scoped, tag = 'operand span for operand 2']
    #allocation5 [shape = 'u8[2048]{0}', space=vmem, size = 0x800, scoped, tag = 'packed  for operand 2']
    #allocation6 [shape = 's32[2]{0}', space=sflag, size = 0x8, scoped, tag = 'scoped memory for custom-call.25']
    #allocation7 [shape = 'u8[4096]{0}', space=vmem, size = 0x1000, scoped, tag = 'operand span for operand 3']
    #allocation8 [shape = 'u8[2048]{0}', space=vmem, size = 0x800, scoped, tag = 'packed  for operand 3']
    %5 = vsyncpa [#allocation6], 0
    %s6 = scalar_lea.sflag [#allocation6], 1
    %7 = vsyncpa %s6, 0
    loop: start=0, step=1, limit=4
    $region2: #{custom-call.25} parent=1 // loop_pre_header
      _
    $region3: #{custom-call.25} parent=1 // loop_header
      %s9 = sphi 0, %s13
      %p10 = scmp.ge.s32.totalorder %s9, 4
      %s21 = sphi 0, %s23
      %s24 = sphi 0, %s21
      %s25 = sphi 0, %s24
      %s41 = sphi 0, %s25
      %s49 = sphi 0, %s51
      %s52 = sphi 0, %s49
      %s53 = sphi 0, %s52
      %s69 = sphi 0, %s53
    $region4: #{custom-call.25} parent=1 // loop_header_branch
      %12 = sbr.rel (%p10) target = $region8
    $region5: #{custom-call.25} parent=1 // loop_body
      %s14 = ssub.s32 %s9, 1
      %s15 = ssub.s32 %s9, 2
      %s16 = sadd.s32 %s9, 1
      %s17 = sshrl.u32 %s9, 3
      %s18 = sshrl.u32 %s16, 3
      %s19 = ssub.s32 %s17, %s18
      %p20 = scmp.eq.s32.totalorder %s19, 0
      %s22 = sadd.s32 %s21, 1
      %s23 = scalar_select %p20, %s21, %s22
      %p26 = pneg %p20
      %p27 = scmp.eq.s32.totalorder %s9, 1
      %p28 = por %p26, %p27
      %p29 = scmp.ne.s32.totalorder %s21, %s24
      %p30 = scmp.eq.s32.totalorder %s9, 0
      %p31 = por %p29, %p30
      %p32 = scmp.ne.s32.totalorder %s21, %s24
      %p33 = scmp.eq.s32.totalorder %s14, 1
      %p34 = por %p32, %p33
      %p35 = scmp.ne.s32.totalorder %s24, %s25
      %p36 = scmp.eq.s32.totalorder %s14, 0
      %p37 = por %p35, %p36
      %p38 = scmp.ne.s32.totalorder %s24, %s25
      %p39 = scmp.eq.s32.totalorder %s15, 1
      %p40 = por %p38, %p39
      %p42 = scmp.ne.s32.totalorder %s25, %s41
      %p43 = scmp.eq.s32.totalorder %s15, 0
      %p44 = por %p42, %p43
      %s45 = sshrl.u32 %s9, 3
      %s46 = sshrl.u32 %s16, 3
      %s47 = ssub.s32 %s45, %s46
      %p48 = scmp.eq.s32.totalorder %s47, 0
      %s50 = sadd.s32 %s49, 1
      %s51 = scalar_select %p48, %s49, %s50
      %p54 = pneg %p48
      %p55 = scmp.eq.s32.totalorder %s9, 1
      %p56 = por %p54, %p55
      %p57 = scmp.ne.s32.totalorder %s49, %s52
      %p58 = scmp.eq.s32.totalorder %s9, 0
      %p59 = por %p57, %p58
      %p60 = scmp.ne.s32.totalorder %s49, %s52
      %p61 = scmp.eq.s32.totalorder %s14, 1
      %p62 = por %p60, %p61
      %p63 = scmp.ne.s32.totalorder %s52, %s53
      %p64 = scmp.eq.s32.totalorder %s14, 0
      %p65 = por %p63, %p64
      %p66 = scmp.ne.s32.totalorder %s52, %s53
      %p67 = scmp.eq.s32.totalorder %s15, 1
      %p68 = por %p66, %p67
      %p70 = scmp.ne.s32.totalorder %s53, %s69
      %p71 = scmp.eq.s32.totalorder %s15, 0
      %p72 = por %p70, %p71
      %p73 = scmp.le.s32.totalorder 1, %s9
      %p74 = scmp.lt.s32.totalorder %s9, 3
      %p75 = pnand %p73, %p74
      %p76 = pneg %p75
      // Predicated region
      $region9: #{custom-call.25} parent=5 // pred_check
        _
      $region10: #{custom-call.25} parent=5 // pred_check_branch
        %78 = sbr.rel (%p75) target = $region12
      $region11: #{custom-call.25} parent=5 // pred_region
        %s79 = ssub.s32 %s9, 1
      $region12: #{custom-call.25} parent=5 // pred_fallthru
        _
      %p80 = scmp.lt.s32.totalorder %s9, 2
      // Predicated region
      $region13: #{custom-call.25} parent=5 // pred_check
        %p81 = pneg %p80
      $region14: #{custom-call.25} parent=5 // pred_check_branch
        %83 = sbr.rel (%p81) target = $region16
      $region15: #{custom-call.25} parent=5 // pred_region
        %s84 = sand.u32 %s9, 1
        %s85 = sand.u32 %s9, 1
        %s86 = smul.addr %s85, 4
        %s87 = scalar_lea.vmem [#allocation1], %s86
        %s88 = smul.addr %s9, 4
        %s89 = scalar_lea.vmem %s0, %s88
        // Predicated region
        $region17: #{custom-call.25} parent=15 // pred_check
          _
        $region18: #{custom-call.25} parent=15 // pred_check_branch
          %91 = sbr.rel (0) target = $region20
        $region19: #{custom-call.25} parent=15 // pred_region
          // Predicated region
          $region21: #{custom-call.25} parent=19 // pred_check
            _
          $region22: #{custom-call.25} parent=19 // pred_check_branch
            %93 = sbr.rel target = $region24
          $region23: #{custom-call.25} parent=19 // pred_region
            // Predicated region
            $region36: #{custom-call.25} parent=23 // pred_check
              _
            $region37: #{custom-call.25} parent=23 // pred_check_branch
              %109 = sbr.rel (0) target = $region39
            $region38: #{custom-call.25} parent=23 // pred_region
              %s111 = ssub.s32 16, 1
              loop: start=0, step=1, limit=1
              $region40: #{custom-call.25} parent=38 // loop_pre_header
                _
              $region41: #{custom-call.25} parent=38 // loop_header
                %s113 = sphi 0, %s117
                %p114 = scmp.ge.s32.totalorder %s113, 1
                %s118 = sphi %s89, %s89
                %s119 = sphi %s87, %s87
              $region42: #{custom-call.25} parent=38 // loop_header_branch
                %116 = sbr.rel (%p114) target = $region46
              $region43: #{custom-call.25} parent=38 // loop_body
                %v120 = vld [vmem:[%s118] sm:%s111]
                %121 = vst [vmem:[%s119] sm:%s111] %v120
              $region44: #{custom-call.25} parent=38 // loop_footer
                %s117 = sadd.s32 1, %s113
              $region45: #{custom-call.25} parent=38 // loop_footer_branch
                %112 = sbr.rel target = $region41
              $region46: #{custom-call.25} parent=38 // loop_exit
                _
            $region39: #{custom-call.25} parent=23 // pred_fallthru
              _
          $region24: #{custom-call.25} parent=19 // pred_fallthru
            _
          // Predicated region
          $region25: #{custom-call.25} parent=19 // pred_check
            _
          $region26: #{custom-call.25} parent=19 // pred_check_branch
            %95 = sbr.rel (0) target = $region28
          $region27: #{custom-call.25} parent=19 // pred_region
            %s97 = ssub.s32 16, 1
            loop: start=0, step=1, limit=1
            $region29: #{custom-call.25} parent=27 // loop_pre_header
              _
            $region30: #{custom-call.25} parent=27 // loop_header
              %s99 = sphi 0, %s103
              %p100 = scmp.ge.s32.totalorder %s99, 1
              %s104 = sphi %s89, %s89
              %s105 = sphi %s87, %s87
            $region31: #{custom-call.25} parent=27 // loop_header_branch
              %102 = sbr.rel (%p100) target = $region35
            $region32: #{custom-call.25} parent=27 // loop_body
              %v106 = vld [vmem:[%s104] sm:%s97]
              %107 = vst [vmem:[%s105] sm:%s97] %v106
            $region33: #{custom-call.25} parent=27 // loop_footer
              %s103 = sadd.s32 1, %s99
            $region34: #{custom-call.25} parent=27 // loop_footer_branch
              %98 = sbr.rel target = $region30
            $region35: #{custom-call.25} parent=27 // loop_exit
              _
          $region28: #{custom-call.25} parent=19 // pred_fallthru
            _
        $region20: #{custom-call.25} parent=15 // pred_fallthru
          _
        %122 = vnop
      $region16: #{custom-call.25} parent=5 // pred_fallthru
        _
      %p123 = scmp.le.s32.totalorder 1, %s9
      %p124 = scmp.lt.s32.totalorder %s9, 3
      %p125 = pnand %p123, %p124
      %p126 = pneg %p125
      // Predicated region
      $region47: #{custom-call.25} parent=5 // pred_check
        _
      $region48: #{custom-call.25} parent=5 // pred_check_branch
        %128 = sbr.rel (%p125) target = $region50
      $region49: #{custom-call.25} parent=5 // pred_region
        #allocation9 [shape = 's32[4,128]{1,0}', space=vmem, size = 0x1000, scoped, tag = 'scratch for permutations']
        %s129 = ssub.s32 %s9, 1
        %s130 = sand.u32 %s14, 1
        %s131 = sand.u32 %s14, 1
        %s132 = smul.addr %s131, 4
        %s133 = scalar_lea.vmem [#allocation1], %s132
        %s134 = sand.u32 %s14, 1
        %s135 = sand.u32 %s14, 1
        %s136 = smul.addr %s135, 4
        %s137 = scalar_lea.vmem [#allocation1], %s136
        %s138 = sand.u32 %s14, 1
        %s139 = sand.u32 %s14, 1
        %s140 = smul.addr %s139, 4
        %s141 = scalar_lea.vmem [#allocation3], %s140
        %p142 = pneg %p37
        %p143 = pneg %p34
        %s144 = sand.u32 %s24, 1
        %s145 = scalar_lea.sflag [#allocation6], %s144
        %s146 = sand.u32 %s24, 1
        %s147 = smul.addr %s146, 2
        %s148 = scalar_lea.vmem [#allocation5], %s147
        %p149 = pneg %p65
        %p150 = pneg %p62
        %s151 = sand.u32 %s52, 1
        %s152 = sand.u32 %s52, 1
        %s153 = smul.addr %s152, 2
        %s154 = scalar_lea.vmem [#allocation8], %s153
        %s156 = sshll.u32 1, 4
        %s157 = ssub.s32 %s156, 1
        %v158 = vld [vmem:[%s137] sm:%s157]
        %159 = vst [vmem:[#allocation0] sm:%s157] %v158
        %s160 = sshrl.u32 %s14, 3
        %s161 = sshrl.u32 %s14, 3
        %v162 = vld [vmem:[#allocation0] sm:$0xff]
        %163 = vst [vmem:[#allocation2] sm:$0xff] %v162
        %s164 = sand.u32 %s14, 7
        %s165 = scalar_lea.vmem [#allocation4], %s164
        %s166 = sand.u32 %s14, 7
        %s167 = scalar_lea.vmem [#allocation7], %s166
        %168 = vst [vmem:[%s165] sm:$0x1] 0
        %v169 = vlaneseq
        %v170 = vshrl.u32 %v169, 7
        %v171 = vmov %v170
        %173 = vst [vmem:[#allocation9] sm:$0xff] %v171
        loop: start=0, step=1, limit=4
        $region52: #{custom-call.25} parent=49 // loop_pre_header
          _
        $region53: #{custom-call.25} parent=49 // loop_header
          %s175 = sphi 0, %s179
          %p176 = scmp.ge.s32.totalorder %s175, 4
        $region54: #{custom-call.25} parent=49 // loop_header_branch
          %178 = sbr.rel (%p176) target = $region58
        $region55: #{custom-call.25} parent=49 // loop_body
          %v180 = vstv %s175
          %v181 = vlaneseq
          %v182 = vshrl.u32 %v181, 7
          %v183 = vmov %v182
          %v184 = vld [vmem:[#allocation2] sm:$0xff]
          %v185 = vand.u32 2147483647, %v184
          %v187 = vstv %s175
          %vm188 = vcmp.ge.s32.totalorder %v183, %v187
          %vm189 = vcmp.lt.s32.totalorder %v183, 4
          %vm190 = vmand %vm188, %vm189
          %vm191 = vcmp.lt.f32.partialorder -inf, %v185
          %vm192 = vmand %vm190, %vm191
          %v193 = vsel %vm192, %v183, %v180
          %v194 = vsel %vm192, %v185, -inf
          %v195 = vrot.slane %v194, 1
          %v196 = vrot.slane %v193, 1
          %vm197 = vcmp.ge.f32.partialorder %v195, %v194
          %v198 = vsel %vm197, %v195, %v194
          %v199 = vsel %vm197, %v196, %v193
          %v200 = vrot.slane %v195, 1
          %v201 = vrot.slane %v196, 1
          %vm202 = vcmp.ge.f32.partialorder %v200, %v198
          %v203 = vsel %vm202, %v200, %v198
          %v204 = vsel %vm202, %v201, %v199
          %v205 = vrot.slane %v200, 1
          %v206 = vrot.slane %v201, 1
          %vm207 = vcmp.ge.f32.partialorder %v205, %v203
          %v208 = vsel %vm207, %v205, %v203
          %v209 = vsel %vm207, %v206, %v204
          %v210 = vrot.slane %v205, 1
          %v211 = vrot.slane %v206, 1
          %vm212 = vcmp.ge.f32.partialorder %v210, %v208
          %v213 = vsel %vm212, %v210, %v208
          %v214 = vsel %vm212, %v211, %v209
          %v215 = vrot.slane %v210, 1
          %v216 = vrot.slane %v211, 1
          %vm217 = vcmp.ge.f32.partialorder %v215, %v213
          %v218 = vsel %vm217, %v215, %v213
          %v219 = vsel %vm217, %v216, %v214
          %v220 = vrot.slane %v215, 1
          %v221 = vrot.slane %v216, 1
          %vm222 = vcmp.ge.f32.partialorder %v220, %v218
          %v223 = vsel %vm222, %v220, %v218
          %v224 = vsel %vm222, %v221, %v219
          %v225 = vrot.slane %v220, 1
          %v226 = vrot.slane %v221, 1
          %vm227 = vcmp.ge.f32.partialorder %v225, %v223
          %v228 = vsel %vm227, %v225, %v223
          %v229 = vsel %vm227, %v226, %v224
          %s230 = ssub.s32 128, %s175
          %231 = vrot.lane.b32.xlu0 %v229, %s230
          %v232 = vpop.permute.xlu0 %231
          %s233 = vtos %v232
          %v234 = vstv %s175
          %v235 = vlaneseq
          %v236 = vand.u32 %v235, 127
          %vm237 = vcmp.eq.s32.totalorder %v236, %v234
          %v238 = vstv %s233
          %v239 = vld [vmem:[%s165] ss:$0 sm:$0xff]
          %v240 = vsel %vm237, %v238, %v239
          %241 = vst [vmem:[%s165] sm:$0x1] %v240
          %s242 = scalar_lea.vmem [#allocation2], %s175
          %s243 = scalar_lea.vmem [#allocation2], %s233
          %v244 = vld [vmem:[%s242] ss:$0 sm:$0xff]
          %v245 = vld [vmem:[%s243] ss:$0 sm:$0xff]
          %246 = vst [vmem:[%s243] sm:$0x1] %v244
          %247 = vst [vmem:[%s242] sm:$0x1] %v245
          %s248 = scalar_lea.vmem [#allocation9], %s175
          %s249 = scalar_lea.vmem [#allocation9], %s233
          %v250 = vld [vmem:[%s248] ss:$0 sm:$0xff]
          %v251 = vld [vmem:[%s249] ss:$0 sm:$0xff]
          %252 = vst [vmem:[%s249] sm:$0x1] %v250
          %253 = vst [vmem:[%s248] sm:$0x1] %v251
          %vm254 = vcmp.ne.f32.partialorder %v245, 0.0
          %vm255 = vmand %vm237, %vm254
          %v256 = vsel %vm255, %v245, 1.0
          %v257 = vlaneseq
          %v258 = vand.u32 %v257, 127
          %v259 = vstv %s175
          %vm260 = vcmp.gt.s32.totalorder %v258, %v259
          %v261 = vsel %vm260, %v245, 0.0
          %v262 = vlaneseq
          %v263 = vshrl.u32 %v262, 7
          %v264 = vmov %v263
          %v265 = vld [vmem:[#allocation2] sm:$0xff]
          %v267 = vstv %s175
          %vm268 = vcmp.gt.s32.totalorder %v264, %v267
          %v269 = vsel %vm268, %v256, 1.0
          %v270 = vrcp.pop %v269
          %v271 = vmul.f32 %v265, %v270
          %vm272 = vmand %vm268, %vm237
          %v273 = vsel %vm272, %v271, 0.0
          %274 = vadd.xlane.f32.xlu0 %v273
          %v275 = vpop.xlane.xlu0 %274
          %v276 = vmul.f32 %v275, %v261
          %v277 = vsub.f32 %v271, %v276
          %278 = vst [vmem:[#allocation2] sm:$0xff] %v277
        $region56: #{custom-call.25} parent=49 // loop_footer
          %s179 = sadd.s32 1, %s175
        $region57: #{custom-call.25} parent=49 // loop_footer_branch
          %174 = sbr.rel target = $region53
        $region58: #{custom-call.25} parent=49 // loop_exit
          _
        %v279 = vld [vmem:[#allocation9] sm:$0xff]
        %s280 = scalar_lea.vmem [#allocation9], 8
        %s281 = scalar_lea.vmem [#allocation9], 16
        %s282 = scalar_lea.vmem [#allocation9], 24
        %s283 = scalar_lea.vmem [#allocation9], 32
        %s284 = scalar_lea.vmem [#allocation9], 40
        %s285 = scalar_lea.vmem [#allocation9], 48
        %s286 = scalar_lea.vmem [#allocation9], 56
        %s287 = scalar_lea.vmem [#allocation9], 64
        %s288 = scalar_lea.vmem [#allocation9], 72
        %s289 = scalar_lea.vmem [#allocation9], 80
        %s290 = scalar_lea.vmem [#allocation9], 88
        %s291 = scalar_lea.vmem [#allocation9], 96
        %s292 = scalar_lea.vmem [#allocation9], 104
        %s293 = scalar_lea.vmem [#allocation9], 112
        %s294 = scalar_lea.vmem [#allocation9], 120
        %295 = vxpose.xlu0.b32.start [1/16] %v279, 128
        %296 = vxpose.xlu0.b32.cont [2/16] 0, 128
        %297 = vxpose.xlu0.b32.cont [3/16] 0, 128
        %298 = vxpose.xlu0.b32.cont [4/16] 0, 128
        %299 = vxpose.xlu0.b32.cont [5/16] 0, 128
        %300 = vxpose.xlu0.b32.cont [6/16] 0, 128
        %301 = vxpose.xlu0.b32.cont [7/16] 0, 128
        %302 = vxpose.xlu0.b32.cont [8/16] 0, 128
        %303 = vxpose.xlu0.b32.cont [9/16] 0, 128
        %304 = vxpose.xlu0.b32.cont [10/16] 0, 128
        %305 = vxpose.xlu0.b32.cont [11/16] 0, 128
        %306 = vxpose.xlu0.b32.cont [12/16] 0, 128
        %307 = vxpose.xlu0.b32.cont [13/16] 0, 128
        %308 = vxpose.xlu0.b32.cont [14/16] 0, 128
        %309 = vxpose.xlu0.b32.cont [15/16] 0, 128
        %310 = vxpose.xlu0.b32.end [16/16] 0, 128
        %v311 = vpop.trf.xlu0
        %v312 = vpop.trf.xlu0
        %v313 = vpop.trf.xlu0
        %v314 = vpop.trf.xlu0
        %v315 = vpop.trf.xlu0
        %v316 = vpop.trf.xlu0
        %v317 = vpop.trf.xlu0
        %v318 = vpop.trf.xlu0
        %v319 = vpop.trf.xlu0
        %v320 = vpop.trf.xlu0
        %v321 = vpop.trf.xlu0
        %v322 = vpop.trf.xlu0
        %v323 = vpop.trf.xlu0
        %v324 = vpop.trf.xlu0
        %v325 = vpop.trf.xlu0
        %v326 = vpop.trf.xlu0
        %327 = vst [vmem:[%s167] sm:$0x1] %v311
        %s329 = sshll.u32 1, 4
        %s330 = ssub.s32 %s329, 1
        %v332 = vld [vmem:[#allocation2] sm:%s330]
        %s333 = sshll.u32 1, 4
        %s334 = ssub.s32 %s333, 1
        %335 = vst [vmem:[%s141] sm:%s334] %v332
        %s337 = sshll.u32 1, 2
        %s338 = ssub.s32 %s337, 1
        %v340 = vld [vmem:[#allocation4] sm:%s338]
        %s341 = sshll.u32 1, 2
        %s342 = ssub.s32 %s341, 1
        %343 = vst [vmem:[%s148] sm:%s342] %v340
        %s345 = sshll.u32 1, 2
        %s346 = ssub.s32 %s345, 1
        %v348 = vld [vmem:[#allocation7] sm:%s346]
        %s349 = sshll.u32 1, 2
        %s350 = ssub.s32 %s349, 1
        %351 = vst [vmem:[%s154] sm:%s350] %v348
        %s352 = sand.u32 %s14, 1
        %s353 = sand.u32 %s14, 1
        %s354 = smul.addr %s353, 4
        %s355 = scalar_lea.vmem [#allocation3], %s354
        %s356 = sand.u32 %s24, 1
        %s357 = scalar_lea.sflag [#allocation6], %s356
        %s358 = sand.u32 %s24, 1
        %s359 = smul.addr %s358, 2
        %s360 = scalar_lea.vmem [#allocation5], %s359
        %s361 = sand.u32 %s52, 1
        %s362 = sand.u32 %s52, 1
        %s363 = smul.addr %s362, 2
        %s364 = scalar_lea.vmem [#allocation8], %s363
        %s365 = smul.addr %s14, 4
        %s366 = scalar_lea.vmem %s1, %s365
        // Predicated region
        $region59: #{custom-call.25} parent=49 // pred_check
          _
        $region60: #{custom-call.25} parent=49 // pred_check_branch
          %368 = sbr.rel (0) target = $region62
        $region61: #{custom-call.25} parent=49 // pred_region
          // Predicated region
          $region63: #{custom-call.25} parent=61 // pred_check
            _
          $region64: #{custom-call.25} parent=61 // pred_check_branch
            %370 = sbr.rel target = $region66
          $region65: #{custom-call.25} parent=61 // pred_region
            // Predicated region
            $region78: #{custom-call.25} parent=65 // pred_check
              _
            $region79: #{custom-call.25} parent=65 // pred_check_branch
              %386 = sbr.rel (0) target = $region81
            $region80: #{custom-call.25} parent=65 // pred_region
              %s388 = ssub.s32 16, 1
              loop: start=0, step=1, limit=1
              $region82: #{custom-call.25} parent=80 // loop_pre_header
                _
              $region83: #{custom-call.25} parent=80 // loop_header
                %s390 = sphi 0, %s394
                %p391 = scmp.ge.s32.totalorder %s390, 1
                %s395 = sphi %s355, %s355
                %s396 = sphi %s366, %s366
              $region84: #{custom-call.25} parent=80 // loop_header_branch
                %393 = sbr.rel (%p391) target = $region88
              $region85: #{custom-call.25} parent=80 // loop_body
                %v397 = vld [vmem:[%s395] sm:%s388]
                %398 = vst [vmem:[%s396] sm:%s388] %v397
              $region86: #{custom-call.25} parent=80 // loop_footer
                %s394 = sadd.s32 1, %s390
              $region87: #{custom-call.25} parent=80 // loop_footer_branch
                %389 = sbr.rel target = $region83
              $region88: #{custom-call.25} parent=80 // loop_exit
                _
            $region81: #{custom-call.25} parent=65 // pred_fallthru
              _
          $region66: #{custom-call.25} parent=61 // pred_fallthru
            _
          // Predicated region
          $region67: #{custom-call.25} parent=61 // pred_check
            _
          $region68: #{custom-call.25} parent=61 // pred_check_branch
            %372 = sbr.rel (0) target = $region70
          $region69: #{custom-call.25} parent=61 // pred_region
            %s374 = ssub.s32 16, 1
            loop: start=0, step=1, limit=1
            $region71: #{custom-call.25} parent=69 // loop_pre_header
              _
            $region72: #{custom-call.25} parent=69 // loop_header
              %s376 = sphi 0, %s380
              %p377 = scmp.ge.s32.totalorder %s376, 1
              %s381 = sphi %s355, %s355
              %s382 = sphi %s366, %s366
            $region73: #{custom-call.25} parent=69 // loop_header_branch
              %379 = sbr.rel (%p377) target = $region77
            $region74: #{custom-call.25} parent=69 // loop_body
              %v383 = vld [vmem:[%s381] sm:%s374]
              %384 = vst [vmem:[%s382] sm:%s374] %v383
            $region75: #{custom-call.25} parent=69 // loop_footer
              %s380 = sadd.s32 1, %s376
            $region76: #{custom-call.25} parent=69 // loop_footer_branch
              %375 = sbr.rel target = $region72
            $region77: #{custom-call.25} parent=69 // loop_exit
              _
          $region70: #{custom-call.25} parent=61 // pred_fallthru
            _
        $region62: #{custom-call.25} parent=49 // pred_fallthru
          _
        %399 = vnop
        // Predicated region
        $region89: #{custom-call.25} parent=49 // pred_check
          %p400 = pneg %p34
        $region90: #{custom-call.25} parent=49 // pred_check_branch
          %402 = sbr.rel (%p400) target = $region92
        $region91: #{custom-call.25} parent=49 // pred_region
          %s403 = sshrl.u32 %s14, 3
          %s405 = ssub.s32 32, 32
          %406 = vsyncadd %s357, %s405
          %s407 = smul.addr %s403, 32
          %s408 = scalar_lea.hbm %s2, %s407
          %s410 = sshll.u32 %s360, 4
          %s411 = int_to_ptr.vmem [resolvable:$true] %s410
          %413 = dma.vmem_to_hbm [thread:$0]  %s411, 32, %s408, %s357
        $region92: #{custom-call.25} parent=49 // pred_fallthru
          _
        // Predicated region
        $region93: #{custom-call.25} parent=49 // pred_check
          %p414 = pneg %p62
        $region94: #{custom-call.25} parent=49 // pred_check_branch
          %416 = sbr.rel (%p414) target = $region96
        $region95: #{custom-call.25} parent=49 // pred_region
          %s417 = sshrl.u32 %s14, 3
          %s418 = smul.addr %s417, 2
          %s419 = scalar_lea.vmem %s3, %s418
          // Predicated region
          $region97: #{custom-call.25} parent=95 // pred_check
            _
          $region98: #{custom-call.25} parent=95 // pred_check_branch
            %421 = sbr.rel (0) target = $region100
          $region99: #{custom-call.25} parent=95 // pred_region
            // Predicated region
            $region101: #{custom-call.25} parent=99 // pred_check
              _
            $region102: #{custom-call.25} parent=99 // pred_check_branch
              %423 = sbr.rel target = $region104
            $region103: #{custom-call.25} parent=99 // pred_region
              // Predicated region
              $region116: #{custom-call.25} parent=103 // pred_check
                _
              $region117: #{custom-call.25} parent=103 // pred_check_branch
                %439 = sbr.rel (0) target = $region119
              $region118: #{custom-call.25} parent=103 // pred_region
                %s441 = ssub.s32 4, 1
                loop: start=0, step=1, limit=1
                $region120: #{custom-call.25} parent=118 // loop_pre_header
                  _
                $region121: #{custom-call.25} parent=118 // loop_header
                  %s443 = sphi 0, %s447
                  %p444 = scmp.ge.s32.totalorder %s443, 1
                  %s448 = sphi %s364, %s364
                  %s449 = sphi %s419, %s419
                $region122: #{custom-call.25} parent=118 // loop_header_branch
                  %446 = sbr.rel (%p444) target = $region126
                $region123: #{custom-call.25} parent=118 // loop_body
                  %v450 = vld [vmem:[%s448] sm:%s441]
                  %451 = vst [vmem:[%s449] sm:%s441] %v450
                $region124: #{custom-call.25} parent=118 // loop_footer
                  %s447 = sadd.s32 1, %s443
                $region125: #{custom-call.25} parent=118 // loop_footer_branch
                  %442 = sbr.rel target = $region121
                $region126: #{custom-call.25} parent=118 // loop_exit
                  _
              $region119: #{custom-call.25} parent=103 // pred_fallthru
                _
            $region104: #{custom-call.25} parent=99 // pred_fallthru
              _
            // Predicated region
            $region105: #{custom-call.25} parent=99 // pred_check
              _
            $region106: #{custom-call.25} parent=99 // pred_check_branch
              %425 = sbr.rel (0) target = $region108
            $region107: #{custom-call.25} parent=99 // pred_region
              %s427 = ssub.s32 4, 1
              loop: start=0, step=1, limit=1
              $region109: #{custom-call.25} parent=107 // loop_pre_header
                _
              $region110: #{custom-call.25} parent=107 // loop_header
                %s429 = sphi 0, %s433
                %p430 = scmp.ge.s32.totalorder %s429, 1
                %s434 = sphi %s364, %s364
                %s435 = sphi %s419, %s419
              $region111: #{custom-call.25} parent=107 // loop_header_branch
                %432 = sbr.rel (%p430) target = $region115
              $region112: #{custom-call.25} parent=107 // loop_body
                %v436 = vld [vmem:[%s434] sm:%s427]
                %437 = vst [vmem:[%s435] sm:%s427] %v436
              $region113: #{custom-call.25} parent=107 // loop_footer
                %s433 = sadd.s32 1, %s429
              $region114: #{custom-call.25} parent=107 // loop_footer_branch
                %428 = sbr.rel target = $region110
              $region115: #{custom-call.25} parent=107 // loop_exit
                _
            $region108: #{custom-call.25} parent=99 // pred_fallthru
              _
          $region100: #{custom-call.25} parent=95 // pred_fallthru
            _
          %452 = vnop
        $region96: #{custom-call.25} parent=49 // pred_fallthru
          _
      $region50: #{custom-call.25} parent=5 // pred_fallthru
        _
      %p453 = scmp.le.s32.totalorder 2, %s9
      // Predicated region
      $region127: #{custom-call.25} parent=5 // pred_check
        %p454 = pneg %p453
      $region128: #{custom-call.25} parent=5 // pred_check_branch
        %456 = sbr.rel (%p454) target = $region130
      $region129: #{custom-call.25} parent=5 // pred_region
        %s457 = ssub.s32 %s9, 2
        %s458 = sand.u32 %s15, 1
        %s459 = sand.u32 %s15, 1
        %s460 = smul.addr %s459, 4
        %s461 = scalar_lea.vmem [#allocation3], %s460
        // Predicated region
        $region131: #{custom-call.25} parent=129 // pred_check
          %p462 = pneg %p40
        $region132: #{custom-call.25} parent=129 // pred_check_branch
          %464 = sbr.rel (%p462) target = $region134
        $region133: #{custom-call.25} parent=129 // pred_region
          %s465 = sand.u32 %s25, 1
          %s466 = scalar_lea.sflag [#allocation6], %s465
          %s467 = sand.u32 %s25, 1
          %s468 = smul.addr %s467, 2
          %s469 = scalar_lea.vmem [#allocation5], %s468
          %470 = dma.done %s466, 32
        $region134: #{custom-call.25} parent=129 // pred_fallthru
          _
        // Predicated region
        $region135: #{custom-call.25} parent=129 // pred_check
          %p471 = pneg %p68
        $region136: #{custom-call.25} parent=129 // pred_check_branch
          %473 = sbr.rel (%p471) target = $region138
        $region137: #{custom-call.25} parent=129 // pred_region
          %s474 = sand.u32 %s53, 1
          %s475 = sand.u32 %s53, 1
          %s476 = smul.addr %s475, 2
          %s477 = scalar_lea.vmem [#allocation8], %s476
        $region138: #{custom-call.25} parent=129 // pred_fallthru
          _
      $region130: #{custom-call.25} parent=5 // pred_fallthru
        _
    $region6: #{custom-call.25} parent=1 // loop_footer
      %s13 = sadd.s32 1, %s9
    $region7: #{custom-call.25} parent=1 // loop_footer_branch
      %8 = sbr.rel target = $region3
    $region8: #{custom-call.25} parent=1 // loop_exit
      _
    %478 = vsyncpa [#allocation6], 1
    %s479 = scalar_lea.sflag [#allocation6], 1
    %480 = vsyncpa %s479, 1

// kernel: custom-call.27
$region0: #{custom-call.27}
  %s0 = inlined_call_operand.vmem [shape: f32[2,1,4,4], index: 0, kind: input, shape index: {}]
  %s1 = inlined_call_operand.vmem [shape: f32[2,1,4,4], index: 1, kind: output, shape index: {}]
  $region1: #{custom-call.27} parent=0
    #allocation0 [shape = 'u8[4096]{0}', space=vmem, size = 0x1000, scoped, tag = 'operand span for operand 0']
    #allocation1 [shape = 'u8[4096]{0}', space=vmem, size = 0x1000, scoped, tag = 'packed  for operand 0']
    #allocation2 [shape = 'u8[4096]{0}', space=vmem, size = 0x1000, scoped, tag = 'operand span for operand 1']
    #allocation3 [shape = 'u8[4096]{0}', space=vmem, size = 0x1000, scoped, tag = 'packed  for operand 1']
    loop: start=0, step=1, limit=4
    $region2: #{custom-call.27} parent=1 // loop_pre_header
      _
    $region3: #{custom-call.27} parent=1 // loop_header
      %s3 = sphi 0, %s7
      %p4 = scmp.ge.s32.totalorder %s3, 4
      %s10 = sphi 0, %s36
      %s11 = sphi 0, %s32
      %s12 = sphi 0, %s28
      %s13 = sphi 0, %s24
      %s14 = sphi 0, %s10
      %s15 = sphi 0, %s11
      %s16 = sphi 0, %s12
      %s17 = sphi 0, %s13
      %s18 = sphi 0, %s14
      %s19 = sphi 0, %s15
      %s20 = sphi 0, %s16
      %s21 = sphi 0, %s17
    $region4: #{custom-call.27} parent=1 // loop_header_branch
      %6 = sbr.rel (%p4) target = $region8
    $region5: #{custom-call.27} parent=1 // loop_body
      %s8 = ssub.s32 %s3, 1
      %s9 = ssub.s32 %s3, 2
      %s22 = sadd.s32 1, %s13
      %p23 = scmp.ge.s32.totalorder %s22, 1
      %s24 = scalar_select %p23, 0, %s22
      %s25 = sadd.s32 1, %s12
      %s26 = scalar_select %p23, %s25, %s12
      %p27 = scmp.ge.s32.totalorder %s26, 1
      %s28 = scalar_select %p27, 0, %s26
      %s29 = sadd.s32 1, %s11
      %s30 = scalar_select %p27, %s29, %s11
      %p31 = scmp.ge.s32.totalorder %s30, 1
      %s32 = scalar_select %p31, 0, %s30
      %s33 = sadd.s32 1, %s10
      %s34 = scalar_select %p31, %s33, %s10
      %p35 = scmp.ge.s32.totalorder %s34, 2
      %s36 = scalar_select %p35, 0, %s34
      %p37 = scmp.le.s32.totalorder 1, %s3
      %p38 = scmp.lt.s32.totalorder %s3, 3
      %p39 = pnand %p37, %p38
      %p40 = pneg %p39
      // Predicated region
      $region9: #{custom-call.27} parent=5 // pred_check
        _
      $region10: #{custom-call.27} parent=5 // pred_check_branch
        %42 = sbr.rel (%p39) target = $region12
      $region11: #{custom-call.27} parent=5 // pred_region
        %s43 = ssub.s32 %s3, 1
      $region12: #{custom-call.27} parent=5 // pred_fallthru
        _
      %p44 = scmp.lt.s32.totalorder %s3, 2
      // Predicated region
      $region13: #{custom-call.27} parent=5 // pred_check
        %p45 = pneg %p44
      $region14: #{custom-call.27} parent=5 // pred_check_branch
        %47 = sbr.rel (%p45) target = $region16
      $region15: #{custom-call.27} parent=5 // pred_region
        %s48 = sand.u32 %s3, 1
        %s49 = sand.u32 %s3, 1
        %s50 = smul.addr %s49, 4
        %s51 = scalar_lea.vmem [#allocation1], %s50
        %s52 = sadd.s32 %s13, %s12
        %s53 = sadd.s32 %s52, %s11
        %s54 = sadd.s32 %s53, %s10
        %s55 = smul.addr %s54, 4
        %s56 = scalar_lea.vmem %s0, %s55
        // Predicated region
        $region17: #{custom-call.27} parent=15 // pred_check
          _
        $region18: #{custom-call.27} parent=15 // pred_check_branch
          %58 = sbr.rel (0) target = $region20
        $region19: #{custom-call.27} parent=15 // pred_region
          // Predicated region
          $region21: #{custom-call.27} parent=19 // pred_check
            _
          $region22: #{custom-call.27} parent=19 // pred_check_branch
            %60 = sbr.rel target = $region24
          $region23: #{custom-call.27} parent=19 // pred_region
            // Predicated region
            $region36: #{custom-call.27} parent=23 // pred_check
              _
            $region37: #{custom-call.27} parent=23 // pred_check_branch
              %76 = sbr.rel (0) target = $region39
            $region38: #{custom-call.27} parent=23 // pred_region
              %s78 = ssub.s32 16, 1
              loop: start=0, step=1, limit=1
              $region40: #{custom-call.27} parent=38 // loop_pre_header
                _
              $region41: #{custom-call.27} parent=38 // loop_header
                %s80 = sphi 0, %s84
                %p81 = scmp.ge.s32.totalorder %s80, 1
                %s85 = sphi %s56, %s56
                %s86 = sphi %s51, %s51
              $region42: #{custom-call.27} parent=38 // loop_header_branch
                %83 = sbr.rel (%p81) target = $region46
              $region43: #{custom-call.27} parent=38 // loop_body
                %v87 = vld [vmem:[%s85] sm:%s78]
                %88 = vst [vmem:[%s86] sm:%s78] %v87
              $region44: #{custom-call.27} parent=38 // loop_footer
                %s84 = sadd.s32 1, %s80
              $region45: #{custom-call.27} parent=38 // loop_footer_branch
                %79 = sbr.rel target = $region41
              $region46: #{custom-call.27} parent=38 // loop_exit
                _
            $region39: #{custom-call.27} parent=23 // pred_fallthru
              _
          $region24: #{custom-call.27} parent=19 // pred_fallthru
            _
          // Predicated region
          $region25: #{custom-call.27} parent=19 // pred_check
            _
          $region26: #{custom-call.27} parent=19 // pred_check_branch
            %62 = sbr.rel (0) target = $region28
          $region27: #{custom-call.27} parent=19 // pred_region
            %s64 = ssub.s32 16, 1
            loop: start=0, step=1, limit=1
            $region29: #{custom-call.27} parent=27 // loop_pre_header
              _
            $region30: #{custom-call.27} parent=27 // loop_header
              %s66 = sphi 0, %s70
              %p67 = scmp.ge.s32.totalorder %s66, 1
              %s71 = sphi %s56, %s56
              %s72 = sphi %s51, %s51
            $region31: #{custom-call.27} parent=27 // loop_header_branch
              %69 = sbr.rel (%p67) target = $region35
            $region32: #{custom-call.27} parent=27 // loop_body
              %v73 = vld [vmem:[%s71] sm:%s64]
              %74 = vst [vmem:[%s72] sm:%s64] %v73
            $region33: #{custom-call.27} parent=27 // loop_footer
              %s70 = sadd.s32 1, %s66
            $region34: #{custom-call.27} parent=27 // loop_footer_branch
              %65 = sbr.rel target = $region30
            $region35: #{custom-call.27} parent=27 // loop_exit
              _
          $region28: #{custom-call.27} parent=19 // pred_fallthru
            _
        $region20: #{custom-call.27} parent=15 // pred_fallthru
          _
        %89 = vnop
      $region16: #{custom-call.27} parent=5 // pred_fallthru
        _
      %p90 = scmp.le.s32.totalorder 1, %s3
      %p91 = scmp.lt.s32.totalorder %s3, 3
      %p92 = pnand %p90, %p91
      %p93 = pneg %p92
      // Predicated region
      $region47: #{custom-call.27} parent=5 // pred_check
        _
      $region48: #{custom-call.27} parent=5 // pred_check_branch
        %95 = sbr.rel (%p92) target = $region50
      $region49: #{custom-call.27} parent=5 // pred_region
        #allocation4 [shape = 'f32[4,4]{1,0}', space=vmem, size = 0x1000, scoped, tag = 'rescaled input a']
        %s96 = ssub.s32 %s3, 1
        %s97 = sand.u32 %s8, 1
        %s98 = sand.u32 %s8, 1
        %s99 = smul.addr %s98, 4
        %s100 = scalar_lea.vmem [#allocation1], %s99
        %s101 = sand.u32 %s8, 1
        %s102 = sand.u32 %s8, 1
        %s103 = smul.addr %s102, 4
        %s104 = scalar_lea.vmem [#allocation1], %s103
        %s105 = sand.u32 %s8, 1
        %s106 = sand.u32 %s8, 1
        %s107 = smul.addr %s106, 4
        %s108 = scalar_lea.vmem [#allocation3], %s107
        %s110 = sshll.u32 1, 4
        %s111 = ssub.s32 %s110, 1
        %v112 = vld [vmem:[%s104] sm:%s111]
        %113 = vst [vmem:[#allocation0] sm:%s111] %v112
        %v114 = vlaneseq
        %v115 = vand.u32 %v114, 127
        %vm116 = vcmp.lt.s32.totalorder %v115, 4
        %v117 = vlaneseq
        %v118 = vshrl.u32 %v117, 7
        %vm120 = vcmp.eq.s32.totalorder %v118, %v115
        %v121 = vld [vmem:[#allocation0] sm:$0xff]
        %v122 = vsel %vm120, %v121, 0.0
        %123 = vadd.xlane.f32.xlu0 %v122
        %v124 = vpop.xlane.xlu0 %123
        %vm125 = vcmp.ge.s32.totalorder %v118, %v115
        %vm126 = vmand %vm125, %vm116
        %v127 = vsel %vm126, %v121, 0.0
        %v128 = vrcp.pop %v124
        %v129 = vmul.f32 %v127, %v128
        %130 = vst [vmem:[#allocation4] sm:$0xff] %v129
        %v131 = vlaneseq
        %v132 = vand.u32 %v131, 127
        %v133 = vlaneseq
        %v134 = vshrl.u32 %v133, 7
        %vm136 = vcmp.eq.s32.totalorder %v132, %v134
        %v137 = vlaneseq
        %v138 = vand.u32 %v137, 127
        %vm139 = vcmp.eq.s32.totalorder %v138, 0
        %v140 = vsel %vm139, 1.0, -1.0
        %v141 = vsel %vm136, %v140, 0.0
        %s142 = scalar_lea.vmem [#allocation4], 1
        %v143 = vld [vmem:[%s142] ss:$0 sm:$0xff]
        %v144 = vxor.u32 %v143, 2147483648
        %v145 = vlaneseq
        %v146 = vand.u32 %v145, 127
        %vm147 = vcmp.eq.s32.totalorder %v146, 1
        %v148 = vmul.f32 %v144, %v141
        %149 = vadd.xlane.f32.xlu0 %v148
        %v150 = vpop.xlane.xlu0 %149
        %v151 = vsel %vm147, %v150, %v141
        %s152 = scalar_lea.vmem [#allocation4], 2
        %v153 = vld [vmem:[%s152] ss:$0 sm:$0xff]
        %v154 = vxor.u32 %v153, 2147483648
        %v155 = vlaneseq
        %v156 = vand.u32 %v155, 127
        %vm157 = vcmp.eq.s32.totalorder %v156, 2
        %v158 = vmul.f32 %v154, %v151
        %159 = vadd.xlane.f32.xlu0 %v158
        %v160 = vpop.xlane.xlu0 %159
        %v161 = vsel %vm157, %v160, %v151
        %s162 = scalar_lea.vmem [#allocation4], 3
        %v163 = vld [vmem:[%s162] ss:$0 sm:$0xff]
        %v164 = vxor.u32 %v163, 2147483648
        %v165 = vlaneseq
        %v166 = vand.u32 %v165, 127
        %vm167 = vcmp.eq.s32.totalorder %v166, 3
        %v168 = vmul.f32 %v164, %v161
        %169 = vadd.xlane.f32.xlu0 %v168
        %v170 = vpop.xlane.xlu0 %169
        %v171 = vsel %vm167, %v170, %v161
        %v172 = vrcp.pop %v124
        %v173 = vmul.f32 %v171, %v172
        %vm174 = vweird.f32 %v124
        %v175 = vsel %vm174, %v171, %v173
        %176 = vst [vmem:[#allocation2] sm:$0xff] %v175
        %s178 = sshll.u32 1, 4
        %s179 = ssub.s32 %s178, 1
        %v181 = vld [vmem:[#allocation2] sm:%s179]
        %s182 = sshll.u32 1, 4
        %s183 = ssub.s32 %s182, 1
        %184 = vst [vmem:[%s108] sm:%s183] %v181
        %s185 = sand.u32 %s8, 1
        %s186 = sand.u32 %s8, 1
        %s187 = smul.addr %s186, 4
        %s188 = scalar_lea.vmem [#allocation3], %s187
        %s189 = sadd.s32 %s17, %s16
        %s190 = sadd.s32 %s189, %s15
        %s191 = sadd.s32 %s190, %s14
        %s192 = smul.addr %s191, 4
        %s193 = scalar_lea.vmem %s1, %s192
        // Predicated region
        $region51: #{custom-call.27} parent=49 // pred_check
          _
        $region52: #{custom-call.27} parent=49 // pred_check_branch
          %195 = sbr.rel (0) target = $region54
        $region53: #{custom-call.27} parent=49 // pred_region
          // Predicated region
          $region55: #{custom-call.27} parent=53 // pred_check
            _
          $region56: #{custom-call.27} parent=53 // pred_check_branch
            %197 = sbr.rel target = $region58
          $region57: #{custom-call.27} parent=53 // pred_region
            // Predicated region
            $region70: #{custom-call.27} parent=57 // pred_check
              _
            $region71: #{custom-call.27} parent=57 // pred_check_branch
              %213 = sbr.rel (0) target = $region73
            $region72: #{custom-call.27} parent=57 // pred_region
              %s215 = ssub.s32 16, 1
              loop: start=0, step=1, limit=1
              $region74: #{custom-call.27} parent=72 // loop_pre_header
                _
              $region75: #{custom-call.27} parent=72 // loop_header
                %s217 = sphi 0, %s221
                %p218 = scmp.ge.s32.totalorder %s217, 1
                %s222 = sphi %s188, %s188
                %s223 = sphi %s193, %s193
              $region76: #{custom-call.27} parent=72 // loop_header_branch
                %220 = sbr.rel (%p218) target = $region80
              $region77: #{custom-call.27} parent=72 // loop_body
                %v224 = vld [vmem:[%s222] sm:%s215]
                %225 = vst [vmem:[%s223] sm:%s215] %v224
              $region78: #{custom-call.27} parent=72 // loop_footer
                %s221 = sadd.s32 1, %s217
              $region79: #{custom-call.27} parent=72 // loop_footer_branch
                %216 = sbr.rel target = $region75
              $region80: #{custom-call.27} parent=72 // loop_exit
                _
            $region73: #{custom-call.27} parent=57 // pred_fallthru
              _
          $region58: #{custom-call.27} parent=53 // pred_fallthru
            _
          // Predicated region
          $region59: #{custom-call.27} parent=53 // pred_check
            _
          $region60: #{custom-call.27} parent=53 // pred_check_branch
            %199 = sbr.rel (0) target = $region62
          $region61: #{custom-call.27} parent=53 // pred_region
            %s201 = ssub.s32 16, 1
            loop: start=0, step=1, limit=1
            $region63: #{custom-call.27} parent=61 // loop_pre_header
              _
            $region64: #{custom-call.27} parent=61 // loop_header
              %s203 = sphi 0, %s207
              %p204 = scmp.ge.s32.totalorder %s203, 1
              %s208 = sphi %s188, %s188
              %s209 = sphi %s193, %s193
            $region65: #{custom-call.27} parent=61 // loop_header_branch
              %206 = sbr.rel (%p204) target = $region69
            $region66: #{custom-call.27} parent=61 // loop_body
              %v210 = vld [vmem:[%s208] sm:%s201]
              %211 = vst [vmem:[%s209] sm:%s201] %v210
            $region67: #{custom-call.27} parent=61 // loop_footer
              %s207 = sadd.s32 1, %s203
            $region68: #{custom-call.27} parent=61 // loop_footer_branch
              %202 = sbr.rel target = $region64
            $region69: #{custom-call.27} parent=61 // loop_exit
              _
          $region62: #{custom-call.27} parent=53 // pred_fallthru
            _
        $region54: #{custom-call.27} parent=49 // pred_fallthru
          _
        %226 = vnop
      $region50: #{custom-call.27} parent=5 // pred_fallthru
        _
      %p227 = scmp.le.s32.totalorder 2, %s3
      // Predicated region
      $region81: #{custom-call.27} parent=5 // pred_check
        %p228 = pneg %p227
      $region82: #{custom-call.27} parent=5 // pred_check_branch
        %230 = sbr.rel (%p228) target = $region84
      $region83: #{custom-call.27} parent=5 // pred_region
        %s231 = ssub.s32 %s3, 2
        %s232 = sand.u32 %s9, 1
        %s233 = sand.u32 %s9, 1
        %s234 = smul.addr %s233, 4
        %s235 = scalar_lea.vmem [#allocation3], %s234
      $region84: #{custom-call.27} parent=5 // pred_fallthru
        _
    $region6: #{custom-call.27} parent=1 // loop_footer
      %s7 = sadd.s32 1, %s3
    $region7: #{custom-call.27} parent=1 // loop_footer_branch
      %2 = sbr.rel target = $region3
    $region8: #{custom-call.27} parent=1 // loop_exit
      _

// kernel: custom-call.26
$region0: #{custom-call.26}
  %s0 = inlined_call_operand.vmem [shape: f32[2,1,4,4], index: 0, kind: input, shape index: {}]
  %s1 = inlined_call_operand.vmem [shape: f32[2,1,4,4], index: 1, kind: output, shape index: {}]
  $region1: #{custom-call.26} parent=0
    #allocation0 [shape = 'u8[4096]{0}', space=vmem, size = 0x1000, scoped, tag = 'operand span for operand 0']
    #allocation1 [shape = 'u8[4096]{0}', space=vmem, size = 0x1000, scoped, tag = 'packed  for operand 0']
    #allocation2 [shape = 'u8[4096]{0}', space=vmem, size = 0x1000, scoped, tag = 'operand span for operand 1']
    #allocation3 [shape = 'u8[4096]{0}', space=vmem, size = 0x1000, scoped, tag = 'packed  for operand 1']
    loop: start=0, step=1, limit=4
    $region2: #{custom-call.26} parent=1 // loop_pre_header
      _
    $region3: #{custom-call.26} parent=1 // loop_header
      %s3 = sphi 0, %s7
      %p4 = scmp.ge.s32.totalorder %s3, 4
      %s10 = sphi 0, %s36
      %s11 = sphi 0, %s32
      %s12 = sphi 0, %s28
      %s13 = sphi 0, %s24
      %s14 = sphi 0, %s10
      %s15 = sphi 0, %s11
      %s16 = sphi 0, %s12
      %s17 = sphi 0, %s13
      %s18 = sphi 0, %s14
      %s19 = sphi 0, %s15
      %s20 = sphi 0, %s16
      %s21 = sphi 0, %s17
    $region4: #{custom-call.26} parent=1 // loop_header_branch
      %6 = sbr.rel (%p4) target = $region8
    $region5: #{custom-call.26} parent=1 // loop_body
      %s8 = ssub.s32 %s3, 1
      %s9 = ssub.s32 %s3, 2
      %s22 = sadd.s32 1, %s13
      %p23 = scmp.ge.s32.totalorder %s22, 1
      %s24 = scalar_select %p23, 0, %s22
      %s25 = sadd.s32 1, %s12
      %s26 = scalar_select %p23, %s25, %s12
      %p27 = scmp.ge.s32.totalorder %s26, 1
      %s28 = scalar_select %p27, 0, %s26
      %s29 = sadd.s32 1, %s11
      %s30 = scalar_select %p27, %s29, %s11
      %p31 = scmp.ge.s32.totalorder %s30, 1
      %s32 = scalar_select %p31, 0, %s30
      %s33 = sadd.s32 1, %s10
      %s34 = scalar_select %p31, %s33, %s10
      %p35 = scmp.ge.s32.totalorder %s34, 2
      %s36 = scalar_select %p35, 0, %s34
      %p37 = scmp.le.s32.totalorder 1, %s3
      %p38 = scmp.lt.s32.totalorder %s3, 3
      %p39 = pnand %p37, %p38
      %p40 = pneg %p39
      // Predicated region
      $region9: #{custom-call.26} parent=5 // pred_check
        _
      $region10: #{custom-call.26} parent=5 // pred_check_branch
        %42 = sbr.rel (%p39) target = $region12
      $region11: #{custom-call.26} parent=5 // pred_region
        %s43 = ssub.s32 %s3, 1
      $region12: #{custom-call.26} parent=5 // pred_fallthru
        _
      %p44 = scmp.lt.s32.totalorder %s3, 2
      // Predicated region
      $region13: #{custom-call.26} parent=5 // pred_check
        %p45 = pneg %p44
      $region14: #{custom-call.26} parent=5 // pred_check_branch
        %47 = sbr.rel (%p45) target = $region16
      $region15: #{custom-call.26} parent=5 // pred_region
        %s48 = sand.u32 %s3, 1
        %s49 = sand.u32 %s3, 1
        %s50 = smul.addr %s49, 4
        %s51 = scalar_lea.vmem [#allocation1], %s50
        %s52 = sadd.s32 %s13, %s12
        %s53 = sadd.s32 %s52, %s11
        %s54 = sadd.s32 %s53, %s10
        %s55 = smul.addr %s54, 4
        %s56 = scalar_lea.vmem %s0, %s55
        // Predicated region
        $region17: #{custom-call.26} parent=15 // pred_check
          _
        $region18: #{custom-call.26} parent=15 // pred_check_branch
          %58 = sbr.rel (0) target = $region20
        $region19: #{custom-call.26} parent=15 // pred_region
          // Predicated region
          $region21: #{custom-call.26} parent=19 // pred_check
            _
          $region22: #{custom-call.26} parent=19 // pred_check_branch
            %60 = sbr.rel target = $region24
          $region23: #{custom-call.26} parent=19 // pred_region
            // Predicated region
            $region36: #{custom-call.26} parent=23 // pred_check
              _
            $region37: #{custom-call.26} parent=23 // pred_check_branch
              %76 = sbr.rel (0) target = $region39
            $region38: #{custom-call.26} parent=23 // pred_region
              %s78 = ssub.s32 16, 1
              loop: start=0, step=1, limit=1
              $region40: #{custom-call.26} parent=38 // loop_pre_header
                _
              $region41: #{custom-call.26} parent=38 // loop_header
                %s80 = sphi 0, %s84
                %p81 = scmp.ge.s32.totalorder %s80, 1
                %s85 = sphi %s56, %s56
                %s86 = sphi %s51, %s51
              $region42: #{custom-call.26} parent=38 // loop_header_branch
                %83 = sbr.rel (%p81) target = $region46
              $region43: #{custom-call.26} parent=38 // loop_body
                %v87 = vld [vmem:[%s85] sm:%s78]
                %88 = vst [vmem:[%s86] sm:%s78] %v87
              $region44: #{custom-call.26} parent=38 // loop_footer
                %s84 = sadd.s32 1, %s80
              $region45: #{custom-call.26} parent=38 // loop_footer_branch
                %79 = sbr.rel target = $region41
              $region46: #{custom-call.26} parent=38 // loop_exit
                _
            $region39: #{custom-call.26} parent=23 // pred_fallthru
              _
          $region24: #{custom-call.26} parent=19 // pred_fallthru
            _
          // Predicated region
          $region25: #{custom-call.26} parent=19 // pred_check
            _
          $region26: #{custom-call.26} parent=19 // pred_check_branch
            %62 = sbr.rel (0) target = $region28
          $region27: #{custom-call.26} parent=19 // pred_region
            %s64 = ssub.s32 16, 1
            loop: start=0, step=1, limit=1
            $region29: #{custom-call.26} parent=27 // loop_pre_header
              _
            $region30: #{custom-call.26} parent=27 // loop_header
              %s66 = sphi 0, %s70
              %p67 = scmp.ge.s32.totalorder %s66, 1
              %s71 = sphi %s56, %s56
              %s72 = sphi %s51, %s51
            $region31: #{custom-call.26} parent=27 // loop_header_branch
              %69 = sbr.rel (%p67) target = $region35
            $region32: #{custom-call.26} parent=27 // loop_body
              %v73 = vld [vmem:[%s71] sm:%s64]
              %74 = vst [vmem:[%s72] sm:%s64] %v73
            $region33: #{custom-call.26} parent=27 // loop_footer
              %s70 = sadd.s32 1, %s66
            $region34: #{custom-call.26} parent=27 // loop_footer_branch
              %65 = sbr.rel target = $region30
            $region35: #{custom-call.26} parent=27 // loop_exit
              _
          $region28: #{custom-call.26} parent=19 // pred_fallthru
            _
        $region20: #{custom-call.26} parent=15 // pred_fallthru
          _
        %89 = vnop
      $region16: #{custom-call.26} parent=5 // pred_fallthru
        _
      %p90 = scmp.le.s32.totalorder 1, %s3
      %p91 = scmp.lt.s32.totalorder %s3, 3
      %p92 = pnand %p90, %p91
      %p93 = pneg %p92
      // Predicated region
      $region47: #{custom-call.26} parent=5 // pred_check
        _
      $region48: #{custom-call.26} parent=5 // pred_check_branch
        %95 = sbr.rel (%p92) target = $region50
      $region49: #{custom-call.26} parent=5 // pred_region
        #allocation4 [shape = 'f32[4,4]{1,0}', space=vmem, size = 0x1000, scoped, tag = 'rescaled input a']
        %s96 = ssub.s32 %s3, 1
        %s97 = sand.u32 %s8, 1
        %s98 = sand.u32 %s8, 1
        %s99 = smul.addr %s98, 4
        %s100 = scalar_lea.vmem [#allocation1], %s99
        %s101 = sand.u32 %s8, 1
        %s102 = sand.u32 %s8, 1
        %s103 = smul.addr %s102, 4
        %s104 = scalar_lea.vmem [#allocation1], %s103
        %s105 = sand.u32 %s8, 1
        %s106 = sand.u32 %s8, 1
        %s107 = smul.addr %s106, 4
        %s108 = scalar_lea.vmem [#allocation3], %s107
        %s110 = sshll.u32 1, 4
        %s111 = ssub.s32 %s110, 1
        %v112 = vld [vmem:[%s104] sm:%s111]
        %113 = vst [vmem:[#allocation0] sm:%s111] %v112
        %v114 = vlaneseq
        %v115 = vand.u32 %v114, 127
        %vm116 = vcmp.lt.s32.totalorder %v115, 4
        %v117 = vlaneseq
        %v118 = vshrl.u32 %v117, 7
        %vm120 = vcmp.eq.s32.totalorder %v118, %v115
        %v121 = vld [vmem:[#allocation0] sm:$0xff]
        %v122 = vsel %vm120, %v121, 0.0
        %123 = vadd.xlane.f32.xlu0 %v122
        %v124 = vpop.xlane.xlu0 %123
        %vm125 = vcmp.le.s32.totalorder %v118, %v115
        %vm126 = vmand %vm125, %vm116
        %v127 = vsel %vm126, %v121, 0.0
        %v128 = vrcp.pop %v124
        %v129 = vmul.f32 %v127, %v128
        %130 = vst [vmem:[#allocation4] sm:$0xff] %v129
        %v131 = vlaneseq
        %v132 = vand.u32 %v131, 127
        %v133 = vlaneseq
        %v134 = vshrl.u32 %v133, 7
        %vm136 = vcmp.eq.s32.totalorder %v132, %v134
        %v137 = vlaneseq
        %v138 = vand.u32 %v137, 127
        %vm139 = vcmp.eq.s32.totalorder %v138, 3
        %v140 = vsel %vm139, 1.0, -1.0
        %v141 = vsel %vm136, %v140, 0.0
        %s142 = scalar_lea.vmem [#allocation4], 2
        %v143 = vld [vmem:[%s142] ss:$0 sm:$0xff]
        %v144 = vxor.u32 %v143, 2147483648
        %v145 = vlaneseq
        %v146 = vand.u32 %v145, 127
        %vm147 = vcmp.eq.s32.totalorder %v146, 2
        %v148 = vmul.f32 %v144, %v141
        %149 = vadd.xlane.f32.xlu0 %v148
        %v150 = vpop.xlane.xlu0 %149
        %v151 = vsel %vm147, %v150, %v141
        %s152 = scalar_lea.vmem [#allocation4], 1
        %v153 = vld [vmem:[%s152] ss:$0 sm:$0xff]
        %v154 = vxor.u32 %v153, 2147483648
        %v155 = vlaneseq
        %v156 = vand.u32 %v155, 127
        %vm157 = vcmp.eq.s32.totalorder %v156, 1
        %v158 = vmul.f32 %v154, %v151
        %159 = vadd.xlane.f32.xlu0 %v158
        %v160 = vpop.xlane.xlu0 %159
        %v161 = vsel %vm157, %v160, %v151
        %v162 = vld [vmem:[#allocation4] ss:$0 sm:$0xff]
        %v163 = vxor.u32 %v162, 2147483648
        %v164 = vlaneseq
        %v165 = vand.u32 %v164, 127
        %vm166 = vcmp.eq.s32.totalorder %v165, 0
        %v167 = vmul.f32 %v163, %v161
        %168 = vadd.xlane.f32.xlu0 %v167
        %v169 = vpop.xlane.xlu0 %168
        %v170 = vsel %vm166, %v169, %v161
        %v171 = vrcp.pop %v124
        %v172 = vmul.f32 %v170, %v171
        %vm173 = vweird.f32 %v124
        %v174 = vsel %vm173, %v170, %v172
        %175 = vst [vmem:[#allocation2] sm:$0xff] %v174
        %s177 = sshll.u32 1, 4
        %s178 = ssub.s32 %s177, 1
        %v180 = vld [vmem:[#allocation2] sm:%s178]
        %s181 = sshll.u32 1, 4
        %s182 = ssub.s32 %s181, 1
        %183 = vst [vmem:[%s108] sm:%s182] %v180
        %s184 = sand.u32 %s8, 1
        %s185 = sand.u32 %s8, 1
        %s186 = smul.addr %s185, 4
        %s187 = scalar_lea.vmem [#allocation3], %s186
        %s188 = sadd.s32 %s17, %s16
        %s189 = sadd.s32 %s188, %s15
        %s190 = sadd.s32 %s189, %s14
        %s191 = smul.addr %s190, 4
        %s192 = scalar_lea.vmem %s1, %s191
        // Predicated region
        $region51: #{custom-call.26} parent=49 // pred_check
          _
        $region52: #{custom-call.26} parent=49 // pred_check_branch
          %194 = sbr.rel (0) target = $region54
        $region53: #{custom-call.26} parent=49 // pred_region
          // Predicated region
          $region55: #{custom-call.26} parent=53 // pred_check
            _
          $region56: #{custom-call.26} parent=53 // pred_check_branch
            %196 = sbr.rel target = $region58
          $region57: #{custom-call.26} parent=53 // pred_region
            // Predicated region
            $region70: #{custom-call.26} parent=57 // pred_check
              _
            $region71: #{custom-call.26} parent=57 // pred_check_branch
              %212 = sbr.rel (0) target = $region73
            $region72: #{custom-call.26} parent=57 // pred_region
              %s214 = ssub.s32 16, 1
              loop: start=0, step=1, limit=1
              $region74: #{custom-call.26} parent=72 // loop_pre_header
                _
              $region75: #{custom-call.26} parent=72 // loop_header
                %s216 = sphi 0, %s220
                %p217 = scmp.ge.s32.totalorder %s216, 1
                %s221 = sphi %s187, %s187
                %s222 = sphi %s192, %s192
              $region76: #{custom-call.26} parent=72 // loop_header_branch
                %219 = sbr.rel (%p217) target = $region80
              $region77: #{custom-call.26} parent=72 // loop_body
                %v223 = vld [vmem:[%s221] sm:%s214]
                %224 = vst [vmem:[%s222] sm:%s214] %v223
              $region78: #{custom-call.26} parent=72 // loop_footer
                %s220 = sadd.s32 1, %s216
              $region79: #{custom-call.26} parent=72 // loop_footer_branch
                %215 = sbr.rel target = $region75
              $region80: #{custom-call.26} parent=72 // loop_exit
                _
            $region73: #{custom-call.26} parent=57 // pred_fallthru
              _
          $region58: #{custom-call.26} parent=53 // pred_fallthru
            _
          // Predicated region
          $region59: #{custom-call.26} parent=53 // pred_check
            _
          $region60: #{custom-call.26} parent=53 // pred_check_branch
            %198 = sbr.rel (0) target = $region62
          $region61: #{custom-call.26} parent=53 // pred_region
            %s200 = ssub.s32 16, 1
            loop: start=0, step=1, limit=1
            $region63: #{custom-call.26} parent=61 // loop_pre_header
              _
            $region64: #{custom-call.26} parent=61 // loop_header
              %s202 = sphi 0, %s206
              %p203 = scmp.ge.s32.totalorder %s202, 1
              %s207 = sphi %s187, %s187
              %s208 = sphi %s192, %s192
            $region65: #{custom-call.26} parent=61 // loop_header_branch
              %205 = sbr.rel (%p203) target = $region69
            $region66: #{custom-call.26} parent=61 // loop_body
              %v209 = vld [vmem:[%s207] sm:%s200]
              %210 = vst [vmem:[%s208] sm:%s200] %v209
            $region67: #{custom-call.26} parent=61 // loop_footer
              %s206 = sadd.s32 1, %s202
            $region68: #{custom-call.26} parent=61 // loop_footer_branch
              %201 = sbr.rel target = $region64
            $region69: #{custom-call.26} parent=61 // loop_exit
              _
          $region62: #{custom-call.26} parent=53 // pred_fallthru
            _
        $region54: #{custom-call.26} parent=49 // pred_fallthru
          _
        %225 = vnop
      $region50: #{custom-call.26} parent=5 // pred_fallthru
        _
      %p226 = scmp.le.s32.totalorder 2, %s3
      // Predicated region
      $region81: #{custom-call.26} parent=5 // pred_check
        %p227 = pneg %p226
      $region82: #{custom-call.26} parent=5 // pred_check_branch
        %229 = sbr.rel (%p227) target = $region84
      $region83: #{custom-call.26} parent=5 // pred_region
        %s230 = ssub.s32 %s3, 2
        %s231 = sand.u32 %s9, 1
        %s232 = sand.u32 %s9, 1
        %s233 = smul.addr %s232, 4
        %s234 = scalar_lea.vmem [#allocation3], %s233
      $region84: #{custom-call.26} parent=5 // pred_fallthru
        _
    $region6: #{custom-call.26} parent=1 // loop_footer
      %s7 = sadd.s32 1, %s3
    $region7: #{custom-call.26} parent=1 // loop_footer_branch
      %2 = sbr.rel target = $region3
    $region8: #{custom-call.26} parent=1 // loop_exit
      _

</llo_original>
